<compile_context>
chip_gen: v6e
topology: v6e:2x2x1
jax: 0.10.0
libtpu: 0.0.40
codegen_flags: <defaults>
</compile_context>

<pallas_src>
import functools
import math

import jax
import jax.numpy as jnp
from jax.experimental import pallas as pl
from jax.experimental.pallas import tpu as pltpu

F32 = jnp.float32
BF16 = jnp.bfloat16
LN_EPS = 1e-12                       # BERT LayerNorm eps


def _tpu_config():
    """Per-generation (vmem_limit_bytes, dense M-tile target)."""
    kind = ""
    cap = None
    try:
        kind = jax.devices()[0].device_kind.lower()
    except Exception:
        pass
    try:
        cap = int(getattr(pltpu.get_tpu_info(), "vmem_capacity_bytes", 0)) or None
    except Exception:
        pass
    small_vmem = ("v7" in kind) or (cap is not None and cap <= 64 * 1024 * 1024)
    if small_vmem:
        return 48 * 1024 * 1024, 512            # v7x: 64 MiB VMEM/TC, ridge ~310 flops/B
    if "v5 lite" in kind or "v5e" in kind or "v5lite" in kind:
        return 96 * 1024 * 1024, 256            # v5e: ridge ~240 flops/B
    if "v6" in kind or (cap is not None and cap >= 128 * 1024 * 1024):
        return 96 * 1024 * 1024, 1024           # v6e: ridge ~680 flops/B -> big M tiles
    return 48 * 1024 * 1024, 512                # unknown: conservative


VMEM_LIMIT, TM_DENSE = _tpu_config()


def _fit_tile(dim, target, align):
    """Largest tile <= target that divides `dim` and is a multiple of `align`
    (falls back to the full dim, which Pallas always accepts)."""
    if dim <= target:
        return dim
    best = None
    t = align
    while t <= target:
        if dim % t == 0:
            best = t
        t += align
    return best if best is not None else dim


def _gelu(x):
    # tanh approximation of BERT's erf-GELU (EUP tanh unit).
    # TODO(synk): exact erf-GELU (HF default) -> small numeric divergence vs reference.
    c = math.sqrt(2.0 / math.pi)
    return 0.5 * x * (1.0 + jnp.tanh(c * (x + 0.044715 * x * x * x)))


# ----------------------------- tiled dense (x @ w + b) -----------------------------

def _dense_kernel(x_ref, w_ref, b_ref, o_ref, acc_ref):
    k = pl.program_id(2)

    @pl.when(k == 0)
    def _():
        # fold the bias into the accumulator init
        acc_ref[...] = jnp.broadcast_to(b_ref[...].astype(F32), acc_ref.shape)

    acc_ref[...] += jnp.dot(x_ref[...], w_ref[...], preferred_element_type=F32)

    @pl.when(k == pl.num_programs(2) - 1)
    def _():
        o_ref[...] = acc_ref[...].astype(o_ref.dtype)


def dense(x, w, b, *, tm=None, tn=768, tk=768, out_dtype=BF16):
    """y = x @ w + b, tiled with an f32 VMEM accumulator.
    tm defaults to min(M, generation target) so small-batch inference streams every
    frozen weight from HBM exactly once (grid collapses to (1, N/tn, K/tk))."""
    M, K = x.shape
    N = w.shape[1]
    tm = _fit_tile(M, TM_DENSE if tm is None else tm, 8)
    tn = _fit_tile(N, tn, 128)
    tk = _fit_tile(K, tk, 128)
    grid = (M // tm, N // tn, K // tk)
    return pl.pallas_call(
        _dense_kernel,
        out_shape=jax.ShapeDtypeStruct((M, N), out_dtype),
        grid=grid,
        in_specs=[
            pl.BlockSpec((tm, tk), lambda i, j, k: (i, k)),
            pl.BlockSpec((tk, tn), lambda i, j, k: (k, j)),
            pl.BlockSpec((1, tn), lambda i, j, k: (0, j)),
        ],
        out_specs=pl.BlockSpec((tm, tn), lambda i, j, k: (i, j)),
        scratch_shapes=[pltpu.VMEM((tm, tn), F32)],
        compiler_params=pltpu.CompilerParams(
            dimension_semantics=("parallel", "parallel", "arbitrary"),
            vmem_limit_bytes=VMEM_LIMIT),
    )(x, w, b.reshape(1, N))


# -------------------- fused dense + residual add + LayerNorm epilogue --------------------

def _dense_res_ln_kernel(x_ref, w_ref, b_ref, res_ref, g_ref, bln_ref, o_ref, acc_ref):
    k = pl.program_id(1)

    @pl.when(k == 0)
    def _():
        acc_ref[...] = jnp.broadcast_to(b_ref[...].astype(F32), acc_ref.shape)

    acc_ref[...] += jnp.dot(x_ref[...], w_ref[...], preferred_element_type=F32)

    @pl.when(k == pl.num_programs(1) - 1)
    def _():
        y = acc_ref[...] + res_ref[...].astype(F32)
        mu = jnp.mean(y, axis=-1, keepdims=True)
        yc = y - mu
        var = jnp.mean(yc * yc, axis=-1, keepdims=True)
        inv = jax.lax.rsqrt(var + LN_EPS)
        o_ref[...] = (yc * inv * g_ref[...] + bln_ref[...]).astype(o_ref.dtype)


def dense_res_ln(x, w, b, res, gamma, beta, *, tm=None, tk=768, out_dtype=BF16):
    """LayerNorm(x @ w + b + res) — full hidden (N) per tile so LN sees whole rows."""
    M, K = x.shape
    N = w.shape[1]
    tm = _fit_tile(M, TM_DENSE if tm is None else tm, 8)
    tk = _fit_tile(K, tk, 128)
    grid = (M // tm, K // tk)
    return pl.pallas_call(
        _dense_res_ln_kernel,
        out_shape=jax.ShapeDtypeStruct((M, N), out_dtype),
        grid=grid,
        in_specs=[
            pl.BlockSpec((tm, tk), lambda i, k: (i, k)),
            pl.BlockSpec((tk, N), lambda i, k: (k, 0)),
            pl.BlockSpec((1, N), lambda i, k: (0, 0)),
            pl.BlockSpec((tm, N), lambda i, k: (i, 0)),
            pl.BlockSpec((1, N), lambda i, k: (0, 0)),
            pl.BlockSpec((1, N), lambda i, k: (0, 0)),
        ],
        out_specs=pl.BlockSpec((tm, N), lambda i, k: (i, 0)),
        scratch_shapes=[pltpu.VMEM((tm, N), F32)],
        compiler_params=pltpu.CompilerParams(
            dimension_semantics=("parallel", "arbitrary"),
            vmem_limit_bytes=VMEM_LIMIT),
    )(x, w, b.reshape(1, N), res, gamma.reshape(1, N), beta.reshape(1, N))


# ------------------ fully fused FFN: GELU(x@Wi+bi)@Wf + bf + x -> LayerNorm ------------------

def _ffn_kernel(x_ref, wi_ref, bi_ref, wf_ref, bf_ref, g_ref, b_ref, o_ref):
    x = x_ref[...]
    h1 = jnp.dot(x, wi_ref[...], preferred_element_type=F32) + bi_ref[...].astype(F32)
    h1 = _gelu(h1)                                                    # VMEM-resident intermediate
    y = (jnp.dot(h1.astype(wf_ref.dtype), wf_ref[...], preferred_element_type=F32)
         + bf_ref[...].astype(F32) + x.astype(F32))                   # residual
    mu = jnp.mean(y, axis=-1, keepdims=True)
    yc = y - mu
    var = jnp.mean(yc * yc, axis=-1, keepdims=True)
    inv = jax.lax.rsqrt(var + LN_EPS)
    o_ref[...] = (yc * inv * g_ref[...] + b_ref[...]).astype(o_ref.dtype)


def ffn_fused(x, wi, bi, wf, bf, gamma, beta, *, out_dtype=BF16):
    """Whole FFN block in one kernel: the (tm, 4H) GELU intermediate never hits HBM and both
    FFN weights are DMA'd once (constant block index across the grid)."""
    M, H = x.shape
    I = wi.shape[1]
    tm = _fit_tile(M, min(512, TM_DENSE), 8)   # keep (tm, I) f32 intermediate modest in VMEM
    grid = (M // tm,)
    return pl.pallas_call(
        _ffn_kernel,
        out_shape=jax.ShapeDtypeStruct((M, H), out_dtype),
        grid=grid,
        in_specs=[
            pl.BlockSpec((tm, H), lambda i: (i, 0)),
            pl.BlockSpec((H, I), lambda i: (0, 0)),
            pl.BlockSpec((1, I), lambda i: (0, 0)),
            pl.BlockSpec((I, H), lambda i: (0, 0)),
            pl.BlockSpec((1, H), lambda i: (0, 0)),
            pl.BlockSpec((1, H), lambda i: (0, 0)),
            pl.BlockSpec((1, H), lambda i: (0, 0)),
        ],
        out_specs=pl.BlockSpec((tm, H), lambda i: (i, 0)),
        compiler_params=pltpu.CompilerParams(
            dimension_semantics=("parallel",),
            vmem_limit_bytes=VMEM_LIMIT),
    )(x, wi, bi.reshape(1, I), wf, bf.reshape(1, H),
      gamma.reshape(1, H), beta.reshape(1, H))


# ------------------------------ residual-free LayerNorm ------------------------------

def _ln_kernel(x_ref, g_ref, b_ref, o_ref):
    x = x_ref[...].astype(F32)
    mu = jnp.mean(x, axis=-1, keepdims=True)
    xc = x - mu
    var = jnp.mean(xc * xc, axis=-1, keepdims=True)
    inv = jax.lax.rsqrt(var + LN_EPS)
    o_ref[...] = (xc * inv * g_ref[...] + b_ref[...]).astype(o_ref.dtype)


def layernorm(x, gamma, beta, *, tm=512, out_dtype=BF16):
    M, H = x.shape
    tm = _fit_tile(M, tm, 8)
    return pl.pallas_call(
        _ln_kernel,
        out_shape=jax.ShapeDtypeStruct((M, H), out_dtype),
        grid=(M // tm,),
        in_specs=[pl.BlockSpec((tm, H), lambda i: (i, 0)),
                  pl.BlockSpec((1, H), lambda i: (0, 0)),
                  pl.BlockSpec((1, H), lambda i: (0, 0))],
        out_specs=pl.BlockSpec((tm, H), lambda i: (i, 0)),
        compiler_params=pltpu.CompilerParams(
            dimension_semantics=("parallel",),
            vmem_limit_bytes=VMEM_LIMIT),
    )(x, gamma.reshape(1, H), beta.reshape(1, H))


# ------------------------------------- attention -------------------------------------

def _attn_kernel(q_ref, k_ref, v_ref, o_ref, *, hpg, dh, scale):
    # q_ref/k_ref/v_ref: (1, S, hpg*dh) 128-lane head-group slices of the fused [S,3H] activation
    qb = q_ref[0]
    kb = k_ref[0]
    vb = v_ref[0]
    ctxs = []
    for h in range(hpg):                               # static unrolled loop over heads in the group
        lo, hi = h * dh, (h + 1) * dh
        q = qb[:, lo:hi]
        k = kb[:, lo:hi]
        v = vb[:, lo:hi]
        # QK^T: contract the last dims of both operands -> no explicit K transpose.
        s = jax.lax.dot_general(q, k, (((1,), (1,)), ((), ())),
                                preferred_element_type=F32) * scale   # (S, S), lane-dense over S
        s = s - jnp.max(s, axis=-1, keepdims=True)
        p = jnp.exp(s)
        l = jnp.sum(p, axis=-1, keepdims=True)
        ctx = jnp.dot(p.astype(v.dtype), v, preferred_element_type=F32)   # (S, dh)
        ctxs.append((ctx / l).astype(o_ref.dtype))     # exact softmax normalization
    o_ref[0] = jnp.concatenate(ctxs, axis=-1)


def attention(qkv, n_heads):
    """Full (non-causal, no-mask) softmax attention on the fused [B,S,3H] QKV activation.

    grid = (B, n_head_groups): each grid cell DMAs the 128-lane Q/K/V column slices of one
    head group (activation read from HBM exactly once in total, no head-split transposes),
    and computes per-head 2D dots — only one head's SxS f32 score tile is live at a time.
    Two parallel axes keep both v7x TensorCores busy."""
    B, S, H3 = qkv.shape
    H = H3 // 3
    dh = H // n_heads
    if dh % 128 == 0:
        hpg = 1                                   # a single head already spans >=128 lanes
    elif 128 % dh == 0:
        hpg = math.gcd(n_heads, 128 // dh)        # group heads to a 128-lane block
    else:
        hpg = 1
    gw = hpg * dh
    assert gw % 128 == 0, f"unsupported head_dim={dh}, n_heads={n_heads} (need 128-lane groups)"
    n_groups = n_heads // hpg
    scale = 1.0 / math.sqrt(dh)

    q_spec = pl.BlockSpec((1, S, gw), lambda b, g: (b, 0, g))
    k_spec = pl.BlockSpec((1, S, gw), lambda b, g: (b, 0, n_groups + g))
    v_spec = pl.BlockSpec((1, S, gw), lambda b, g: (b, 0, 2 * n_groups + g))

    return pl.pallas_call(
        functools.partial(_attn_kernel, hpg=hpg, dh=dh, scale=scale),
        out_shape=jax.ShapeDtypeStruct((B, S, H), qkv.dtype),
        grid=(B, n_groups),
        in_specs=[q_spec, k_spec, v_spec],
        out_specs=pl.BlockSpec((1, S, gw), lambda b, g: (b, 0, g)),
        compiler_params=pltpu.CompilerParams(
            dimension_semantics=("parallel", "parallel"),
            vmem_limit_bytes=VMEM_LIMIT),
    )(qkv, qkv, qkv)


# ------------------------------ fused pooler + classifier ------------------------------

def _pooler_cls_kernel(cls_ref, wp_ref, bp_ref, wc_ref, bc_ref, o_ref):
    pooled = jnp.tanh(
        jnp.dot(cls_ref[...], wp_ref[...], preferred_element_type=F32) + bp_ref[...])
    logits = jnp.dot(pooled.astype(wc_ref.dtype), wc_ref[...],
                     preferred_element_type=F32) + bc_ref[...]
    o_ref[...] = logits.astype(o_ref.dtype)


def pooler_classifier(cls, wp, bp, wc, bc):
    B, H = cls.shape
    nclasses = wc.shape[1]
    vmem = pl.BlockSpec(memory_space=pltpu.MemorySpace.VMEM)
    return pl.pallas_call(
        _pooler_cls_kernel,
        out_shape=jax.ShapeDtypeStruct((B, nclasses), F32),
        in_specs=[vmem] * 5,
        out_specs=vmem,
        compiler_params=pltpu.CompilerParams(vmem_limit_bytes=VMEM_LIMIT),
    )(cls, wp, bp.reshape(1, H), wc, bc.reshape(1, nclasses))


# ----------------------------- BERT model glue / parameters -----------------------------

def init_params(key, *, vocab, hidden, n_layers, n_heads, intermediate,
                max_pos, type_vocab, nclasses):
    del n_heads  # head split happens inside the attention kernel

    def nrm(k, shape, dtype=BF16):
        # frozen weights stored in bf16 (MXU-native); f32 accumulation in-kernel
        return (0.02 * jax.random.normal(k, shape, F32)).astype(dtype)

    keys = iter(jax.random.split(key, 8 + 6 * n_layers))
    p = {
        "word_emb": nrm(next(keys), (vocab, hidden), F32),
        "pos_emb": nrm(next(keys), (max_pos, hidden), F32),
        "type_emb": nrm(next(keys), (type_vocab, hidden), F32),
        "emb_ln_g": jnp.ones((hidden,), F32),
        "emb_ln_b": jnp.zeros((hidden,), F32),
    }
    layers = []
    for _ in range(n_layers):
        L = {
            "Wqkv": nrm(next(keys), (hidden, 3 * hidden)),   # fused Q|K|V projection
            "bqkv": jnp.zeros((3 * hidden,), F32),
            "Wo": nrm(next(keys), (hidden, hidden)),
            "bo": jnp.zeros((hidden,), F32),
            "Wi": nrm(next(keys), (hidden, intermediate)),
            "bi": jnp.zeros((intermediate,), F32),
            "Wf": nrm(next(keys), (intermediate, hidden)),
            "bf": jnp.zeros((hidden,), F32),
            "ln1_g": jnp.ones((hidden,), F32),
            "ln1_b": jnp.zeros((hidden,), F32),
            "ln2_g": jnp.ones((hidden,), F32),
            "ln2_b": jnp.zeros((hidden,), F32),
        }
        layers.append(L)
    p["layers"] = layers
    p["Wp"] = nrm(next(keys), (hidden, hidden))        # pooler
    p["bp"] = jnp.zeros((hidden,), F32)
    p["Wc"] = nrm(next(keys), (hidden, nclasses))      # classifier head
    p["bc"] = jnp.zeros((nclasses,), F32)
    return p


def bert_seq_noft_forward(params, seq_bert, *, n_heads):
    """Matches BertSeqNoFT.forward: returns (logits, 0)."""
    B, S = seq_bert.shape
    H = params["word_emb"].shape[1]

    # Embeddings: token_type_ids=None -> all-zero segment ids; attention_mask=None -> no mask.
    emb = (params["word_emb"][seq_bert]
           + params["pos_emb"][:S][None, :, :]
           + params["type_emb"][0][None, None, :])
    x = layernorm(emb.reshape(B * S, H), params["emb_ln_g"], params["emb_ln_b"])

    for L in params["layers"]:
        qkv = dense(x, L["Wqkv"], L["bqkv"])                 # one fused QKV GEMM
        ctx = attention(qkv.reshape(B, S, 3 * H), n_heads)   # per-(batch, head-group) kernel
        x = dense_res_ln(ctx.reshape(B * S, H), L["Wo"], L["bo"],
                         x, L["ln1_g"], L["ln1_b"])          # out-proj + residual + LN fused
        x = ffn_fused(x, L["Wi"], L["bi"], L["Wf"], L["bf"],
                      L["ln2_g"], L["ln2_b"])                # whole FFN + residual + LN fused

    cls = x.reshape(B, S, H)[:, 0, :]                        # BERT pooler takes [CLS]
    # self.drop(pooled_out): dropout is identity at inference (module is frozen/eval).
    # TODO(synk): training-mode dropout (p=0.5) not implemented.
    logits = pooler_classifier(cls, params["Wp"], params["bp"],
                               params["Wc"], params["bc"])
    return logits, 0


# ----------------------------------------- main -----------------------------------------

if __name__ == "__main__":
    # Small synthetic BERT config (hidden=128 stands in for the module's 768).
    VOCAB, HIDDEN, LAYERS, HEADS, INTER = 128, 128, 2, 4, 512
    MAXPOS, TYPEVOCAB, NCLASSES = 16, 2, 3
    B, S = 2, 8

    key = jax.random.PRNGKey(0)
    pkey, ikey = jax.random.split(key)
    params = init_params(pkey, vocab=VOCAB, hidden=HIDDEN, n_layers=LAYERS,
                         n_heads=HEADS, intermediate=INTER, max_pos=MAXPOS,
                         type_vocab=TYPEVOCAB, nclasses=NCLASSES)
    seq_bert = jax.random.randint(ikey, (B, S), 0, VOCAB, dtype=jnp.int32)

    fwd = jax.jit(functools.partial(bert_seq_noft_forward, n_heads=HEADS))
    logits, zero = fwd(params, seq_bert)
    jax.block_until_ready(logits)

    assert logits.shape == (B, NCLASSES), logits.shape
    assert zero == 0
    print("KERNEL_OK")
</pallas_src>

<mosaic_0001>
module attributes {stable_mosaic.version = 11 : i64} {
  func.func @_dense_kernel(%arg0: i32, %arg1: i32, %arg2: i32, %arg3: memref<16x128xbf16, #tpu.memory_space<vmem>>, %arg4: memref<128x384xbf16, #tpu.memory_space<vmem>>, %arg5: memref<1x384xf32, #tpu.memory_space<vmem>>, %arg6: memref<16x384xbf16, #tpu.memory_space<vmem>>, %arg7: memref<16x384xf32, #tpu.memory_space<vmem>>) attributes {dimension_semantics = [#tpu.dimension_semantics<parallel>, #tpu.dimension_semantics<parallel>, #tpu.dimension_semantics<arbitrary>], iteration_bounds = array<i64: 1, 1, 1>, scalar_prefetch = 0 : i64, scratch_operands = 1 : i64, tpu.core_type = #tpu.core_type<tc>, window_params = [{transform_indices = @transform_0, window_bounds = array<i64: 16, 128>}, {transform_indices = @transform_1, window_bounds = array<i64: 128, 384>}, {transform_indices = @transform_2, window_bounds = array<i64: 1, 384>}, {transform_indices = @transform_3, window_bounds = array<i64: 16, 384>}]} {
    %c0_i32 = arith.constant 0 : i32
    %0 = arith.cmpi eq, %arg2, %c0_i32 : i32
    %1 = arith.extui %0 : i1 to i32
    %c0_i32_0 = arith.constant 0 : i32
    %2 = arith.cmpi ne, %1, %c0_i32_0 : i32
    scf.if %2 {
      %c0_10 = arith.constant 0 : index
      %c0_11 = arith.constant 0 : index
      %12 = vector.load %arg5[%c0_10, %c0_11] : memref<1x384xf32, #tpu.memory_space<vmem>>, vector<1x384xf32>
      %13 = vector.shape_cast %12 : vector<1x384xf32> to vector<1x384xf32>
      %14 = vector.broadcast %13 : vector<1x384xf32> to vector<16x384xf32>
      %c0_12 = arith.constant 0 : index
      %c0_13 = arith.constant 0 : index
      %15 = vector.load %arg7[%c0_12, %c0_13] : memref<16x384xf32, #tpu.memory_space<vmem>>, vector<16x384xf32>
      tpu.vector_store %arg7[%c0_12, %c0_13], %14 {strides = array<i32>} : memref<16x384xf32, #tpu.memory_space<vmem>>, vector<16x384xf32>,
    } else {
    }
    %c0 = arith.constant 0 : index
    %c0_1 = arith.constant 0 : index
    %3 = vector.load %arg7[%c0, %c0_1] : memref<16x384xf32, #tpu.memory_space<vmem>>, vector<16x384xf32>
    %c0_2 = arith.constant 0 : index
    %c0_3 = arith.constant 0 : index
    %4 = vector.load %arg3[%c0_2, %c0_3] : memref<16x128xbf16, #tpu.memory_space<vmem>>, vector<16x128xbf16>
    %c0_4 = arith.constant 0 : index
    %c0_5 = arith.constant 0 : index
    %5 = vector.load %arg4[%c0_4, %c0_5] : memref<128x384xbf16, #tpu.memory_space<vmem>>, vector<128x384xbf16>
    %cst = arith.constant dense<0.000000e+00> : vector<16x384xf32>
    %6 = tpu.matmul %4, %5, %cst {dimension_numbers = #tpu.dot_dimension_numbers<[1], [0], [0], [1], [0, 0, 1, 1], [], []>} : vector<16x128xbf16>, vector<128x384xbf16>, vector<16x384xf32> -> vector<16x384xf32>
    %7 = arith.addf %3, %6 : vector<16x384xf32>
    %c0_6 = arith.constant 0 : index
    %c0_7 = arith.constant 0 : index
    %8 = vector.load %arg7[%c0_6, %c0_7] : memref<16x384xf32, #tpu.memory_space<vmem>>, vector<16x384xf32>
    tpu.vector_store %arg7[%c0_6, %c0_7], %7 {strides = array<i32>} : memref<16x384xf32, #tpu.memory_space<vmem>>, vector<16x384xf32>,
    %c0_i32_8 = arith.constant 0 : i32
    %9 = arith.cmpi eq, %arg2, %c0_i32_8 : i32
    %10 = arith.extui %9 : i1 to i32
    %c0_i32_9 = arith.constant 0 : i32
    %11 = arith.cmpi ne, %10, %c0_i32_9 : i32
    scf.if %11 {
      %c0_10 = arith.constant 0 : index
      %c0_11 = arith.constant 0 : index
      %12 = vector.load %arg7[%c0_10, %c0_11] : memref<16x384xf32, #tpu.memory_space<vmem>>, vector<16x384xf32>
      %13 = arith.truncf %12 : vector<16x384xf32> to vector<16x384xbf16>
      %c0_12 = arith.constant 0 : index
      %c0_13 = arith.constant 0 : index
      %14 = vector.load %arg6[%c0_12, %c0_13] : memref<16x384xbf16, #tpu.memory_space<vmem>>, vector<16x384xbf16>
      tpu.vector_store %arg6[%c0_12, %c0_13], %13 {strides = array<i32>} : memref<16x384xbf16, #tpu.memory_space<vmem>>, vector<16x384xbf16>,
    } else {
    }
    return
  }
  func.func @transform_0(%arg0: i32, %arg1: i32, %arg2: i32) -> (i32, i32) {
    %c0_i32 = arith.constant 0 : i32
    return %arg0, %arg2 : i32, i32
  }
  func.func @transform_1(%arg0: i32, %arg1: i32, %arg2: i32) -> (i32, i32) {
    %c0_i32 = arith.constant 0 : i32
    return %arg2, %arg1 : i32, i32
  }
  func.func @transform_2(%arg0: i32, %arg1: i32, %arg2: i32) -> (i32, i32) {
    %c0_i32 = arith.constant 0 : i32
    %c0_i32_0 = arith.constant 0 : i32
    return %c0_i32, %arg1 : i32, i32
  }
  func.func @transform_3(%arg0: i32, %arg1: i32, %arg2: i32) -> (i32, i32) {
    %c0_i32 = arith.constant 0 : i32
    return %arg0, %arg1 : i32, i32
  }
}

module attributes {stable_mosaic.version = 11 : i64} {
  func.func @_ln_kernel(%arg0: i32, %arg1: memref<16x128xf32, #tpu.memory_space<vmem>>, %arg2: memref<1x128xf32, #tpu.memory_space<vmem>>, %arg3: memref<1x128xf32, #tpu.memory_space<vmem>>, %arg4: memref<16x128xbf16, #tpu.memory_space<vmem>>) attributes {dimension_semantics = [#tpu.dimension_semantics<parallel>], iteration_bounds = array<i64: 1>, scalar_prefetch = 0 : i64, scratch_operands = 0 : i64, tpu.core_type = #tpu.core_type<tc>, window_params = [{transform_indices = @transform_0, window_bounds = array<i64: 16, 128>}, {pipeline_mode = #tpu.pipeline_mode<synchronous>, transform_indices = @transform_1, window_bounds = array<i64: 1, 128>}, {pipeline_mode = #tpu.pipeline_mode<synchronous>, transform_indices = @transform_2, window_bounds = array<i64: 1, 128>}, {transform_indices = @transform_3, window_bounds = array<i64: 16, 128>}]} {
    %c0 = arith.constant 0 : index
    %c0_0 = arith.constant 0 : index
    %0 = vector.load %arg1[%c0, %c0_0] : memref<16x128xf32, #tpu.memory_space<vmem>>, vector<16x128xf32>
    %cst = arith.constant dense<0.000000e+00> : vector<16xf32>
    %1 = vector.multi_reduction <add>, %0, %cst [1] : vector<16x128xf32> to vector<16xf32>
    %2 = vector.shape_cast %1 : vector<16xf32> to vector<16x1xf32>
    %cst_1 = arith.constant 1.280000e+02 : f32
    %3 = vector.broadcast %cst_1 : f32 to vector<16x1xf32>
    %4 = arith.divf %2, %3 : vector<16x1xf32>
    %5 = vector.broadcast %4 : vector<16x1xf32> to vector<16x128xf32>
    %6 = arith.subf %0, %5 : vector<16x128xf32>
    %7 = arith.mulf %6, %6 : vector<16x128xf32>
    %cst_2 = arith.constant dense<0.000000e+00> : vector<16xf32>
    %8 = vector.multi_reduction <add>, %7, %cst_2 [1] : vector<16x128xf32> to vector<16xf32>
    %9 = vector.shape_cast %8 : vector<16xf32> to vector<16x1xf32>
    %cst_3 = arith.constant 1.280000e+02 : f32
    %10 = vector.broadcast %cst_3 : f32 to vector<16x1xf32>
    %11 = arith.divf %9, %10 : vector<16x1xf32>
    %cst_4 = arith.constant 9.99999996E-13 : f32
    %12 = vector.broadcast %cst_4 : f32 to vector<16x1xf32>
    %13 = arith.addf %11, %12 : vector<16x1xf32>
    %14 = math.rsqrt %13 : vector<16x1xf32>
    %15 = vector.broadcast %14 : vector<16x1xf32> to vector<16x128xf32>
    %16 = arith.mulf %6, %15 : vector<16x128xf32>
    %c0_5 = arith.constant 0 : index
    %c0_6 = arith.constant 0 : index
    %17 = vector.load %arg2[%c0_5, %c0_6] : memref<1x128xf32, #tpu.memory_space<vmem>>, vector<1x128xf32>
    %18 = vector.broadcast %17 : vector<1x128xf32> to vector<16x128xf32>
    %19 = arith.mulf %16, %18 : vector<16x128xf32>
    %c0_7 = arith.constant 0 : index
    %c0_8 = arith.constant 0 : index
    %20 = vector.load %arg3[%c0_7, %c0_8] : memref<1x128xf32, #tpu.memory_space<vmem>>, vector<1x128xf32>
    %21 = vector.broadcast %20 : vector<1x128xf32> to vector<16x128xf32>
    %22 = arith.addf %19, %21 : vector<16x128xf32>
    %23 = arith.truncf %22 : vector<16x128xf32> to vector<16x128xbf16>
    %c0_9 = arith.constant 0 : index
    %c0_10 = arith.constant 0 : index
    %24 = vector.load %arg4[%c0_9, %c0_10] : memref<16x128xbf16, #tpu.memory_space<vmem>>, vector<16x128xbf16>
    tpu.vector_store %arg4[%c0_9, %c0_10], %23 {strides = array<i32>} : memref<16x128xbf16, #tpu.memory_space<vmem>>, vector<16x128xbf16>,
    return
  }
  func.func @transform_0(%arg0: i32) -> (i32, i32) {
    %c0_i32 = arith.constant 0 : i32
    %c0_i32_0 = arith.constant 0 : i32
    return %arg0, %c0_i32 : i32, i32
  }
  func.func @transform_1(%arg0: i32) -> (i32, i32) {
    %c0_i32 = arith.constant 0 : i32
    %c0_i32_0 = arith.constant 0 : i32
    %c0_i32_1 = arith.constant 0 : i32
    return %c0_i32, %c0_i32_0 : i32, i32
  }
  func.func @transform_2(%arg0: i32) -> (i32, i32) {
    %c0_i32 = arith.constant 0 : i32
    %c0_i32_0 = arith.constant 0 : i32
    %c0_i32_1 = arith.constant 0 : i32
    return %c0_i32, %c0_i32_0 : i32, i32
  }
  func.func @transform_3(%arg0: i32) -> (i32, i32) {
    %c0_i32 = arith.constant 0 : i32
    %c0_i32_0 = arith.constant 0 : i32
    return %arg0, %c0_i32 : i32, i32
  }
}

module attributes {stable_mosaic.version = 11 : i64} {
  func.func @_attn_kernel(%arg0: i32, %arg1: i32, %arg2: memref<1x8x128xbf16, #tpu.memory_space<vmem>>, %arg3: memref<1x8x128xbf16, #tpu.memory_space<vmem>>, %arg4: memref<1x8x128xbf16, #tpu.memory_space<vmem>>, %arg5: memref<1x8x128xbf16, #tpu.memory_space<vmem>>) attributes {dimension_semantics = [#tpu.dimension_semantics<parallel>, #tpu.dimension_semantics<parallel>], iteration_bounds = array<i64: 2, 1>, scalar_prefetch = 0 : i64, scratch_operands = 0 : i64, tpu.core_type = #tpu.core_type<tc>, window_params = [{transform_indices = @transform_0, window_bounds = array<i64: 1, 8, 128>}, {transform_indices = @transform_1, window_bounds = array<i64: 1, 8, 128>}, {transform_indices = @transform_2, window_bounds = array<i64: 1, 8, 128>}, {transform_indices = @transform_3, window_bounds = array<i64: 1, 8, 128>}]} {
    %c0 = arith.constant 0 : index
    %c0_0 = arith.constant 0 : index
    %c0_1 = arith.constant 0 : index
    %0 = vector.load %arg2[%c0, %c0_0, %c0_1] : memref<1x8x128xbf16, #tpu.memory_space<vmem>>, vector<1x8x128xbf16>
    %1 = vector.shape_cast %0 : vector<1x8x128xbf16> to vector<8x128xbf16>
    %c0_2 = arith.constant 0 : index
    %c0_3 = arith.constant 0 : index
    %c0_4 = arith.constant 0 : index
    %2 = vector.load %arg3[%c0_2, %c0_3, %c0_4] : memref<1x8x128xbf16, #tpu.memory_space<vmem>>, vector<1x8x128xbf16>
    %3 = vector.shape_cast %2 : vector<1x8x128xbf16> to vector<8x128xbf16>
    %c0_5 = arith.constant 0 : index
    %c0_6 = arith.constant 0 : index
    %c0_7 = arith.constant 0 : index
    %4 = vector.load %arg4[%c0_5, %c0_6, %c0_7] : memref<1x8x128xbf16, #tpu.memory_space<vmem>>, vector<1x8x128xbf16>
    %5 = vector.shape_cast %4 : vector<1x8x128xbf16> to vector<8x128xbf16>
    %6 = vector.extract_strided_slice %1 {offsets = [0, 0], sizes = [8, 32], strides = [1, 1]} : vector<8x128xbf16> to vector<8x32xbf16>
    %7 = vector.extract_strided_slice %3 {offsets = [0, 0], sizes = [8, 32], strides = [1, 1]} : vector<8x128xbf16> to vector<8x32xbf16>
    %8 = vector.extract_strided_slice %5 {offsets = [0, 0], sizes = [8, 32], strides = [1, 1]} : vector<8x128xbf16> to vector<8x32xbf16>
    %cst = arith.constant dense<0.000000e+00> : vector<8x8xf32>
    %9 = tpu.matmul %6, %7, %cst {dimension_numbers = #tpu.dot_dimension_numbers<[1], [1], [0], [0], [0, 0, 1, 0], [], []>} : vector<8x32xbf16>, vector<8x32xbf16>, vector<8x8xf32> -> vector<8x8xf32>
    %cst_8 = arith.constant 0.176776692 : f32
    %10 = vector.broadcast %cst_8 : f32 to vector<8x8xf32>
    %11 = arith.mulf %9, %10 : vector<8x8xf32>
    %cst_9 = arith.constant dense<0xFF800000> : vector<8xf32>
    %12 = vector.multi_reduction <maximumf>, %11, %cst_9 [1] : vector<8x8xf32> to vector<8xf32>
    %13 = vector.shape_cast %12 : vector<8xf32> to vector<8x1xf32>
    %14 = vector.broadcast %13 : vector<8x1xf32> to vector<8x8xf32>
    %15 = arith.subf %11, %14 : vector<8x8xf32>
    %16 = math.exp %15 : vector<8x8xf32>
    %cst_10 = arith.constant dense<0.000000e+00> : vector<8xf32>
    %17 = vector.multi_reduction <add>, %16, %cst_10 [1] : vector<8x8xf32> to vector<8xf32>
    %18 = vector.shape_cast %17 : vector<8xf32> to vector<8x1xf32>
    %19 = arith.truncf %16 : vector<8x8xf32> to vector<8x8xbf16>
    %cst_11 = arith.constant dense<0.000000e+00> : vector<8x32xf32>
    %20 = tpu.matmul %19, %8, %cst_11 {dimension_numbers = #tpu.dot_dimension_numbers<[1], [0], [0], [1], [0, 0, 1, 1], [], []>} : vector<8x8xbf16>, vector<8x32xbf16>, vector<8x32xf32> -> vector<8x32xf32>
    %21 = vector.broadcast %18 : vector<8x1xf32> to vector<8x32xf32>
    %22 = arith.divf %20, %21 : vector<8x32xf32>
    %23 = arith.truncf %22 : vector<8x32xf32> to vector<8x32xbf16>
    %24 = vector.extract_strided_slice %1 {offsets = [0, 32], sizes = [8, 32], strides = [1, 1]} : vector<8x128xbf16> to vector<8x32xbf16>
    %25 = vector.extract_strided_slice %3 {offsets = [0, 32], sizes = [8, 32], strides = [1, 1]} : vector<8x128xbf16> to vector<8x32xbf16>
    %26 = vector.extract_strided_slice %5 {offsets = [0, 32], sizes = [8, 32], strides = [1, 1]} : vector<8x128xbf16> to vector<8x32xbf16>
    %cst_12 = arith.constant dense<0.000000e+00> : vector<8x8xf32>
    %27 = tpu.matmul %24, %25, %cst_12 {dimension_numbers = #tpu.dot_dimension_numbers<[1], [1], [0], [0], [0, 0, 1, 0], [], []>} : vector<8x32xbf16>, vector<8x32xbf16>, vector<8x8xf32> -> vector<8x8xf32>
    %cst_13 = arith.constant 0.176776692 : f32
    %28 = vector.broadcast %cst_13 : f32 to vector<8x8xf32>
    %29 = arith.mulf %27, %28 : vector<8x8xf32>
    %cst_14 = arith.constant dense<0xFF800000> : vector<8xf32>
    %30 = vector.multi_reduction <maximumf>, %29, %cst_14 [1] : vector<8x8xf32> to vector<8xf32>
    %31 = vector.shape_cast %30 : vector<8xf32> to vector<8x1xf32>
    %32 = vector.broadcast %31 : vector<8x1xf32> to vector<8x8xf32>
    %33 = arith.subf %29, %32 : vector<8x8xf32>
    %34 = math.exp %33 : vector<8x8xf32>
    %cst_15 = arith.constant dense<0.000000e+00> : vector<8xf32>
    %35 = vector.multi_reduction <add>, %34, %cst_15 [1] : vector<8x8xf32> to vector<8xf32>
    %36 = vector.shape_cast %35 : vector<8xf32> to vector<8x1xf32>
    %37 = arith.truncf %34 : vector<8x8xf32> to vector<8x8xbf16>
    %cst_16 = arith.constant dense<0.000000e+00> : vector<8x32xf32>
    %38 = tpu.matmul %37, %26, %cst_16 {dimension_numbers = #tpu.dot_dimension_numbers<[1], [0], [0], [1], [0, 0, 1, 1], [], []>} : vector<8x8xbf16>, vector<8x32xbf16>, vector<8x32xf32> -> vector<8x32xf32>
    %39 = vector.broadcast %36 : vector<8x1xf32> to vector<8x32xf32>
    %40 = arith.divf %38, %39 : vector<8x32xf32>
    %41 = arith.truncf %40 : vector<8x32xf32> to vector<8x32xbf16>
    %42 = vector.extract_strided_slice %1 {offsets = [0, 64], sizes = [8, 32], strides = [1, 1]} : vector<8x128xbf16> to vector<8x32xbf16>
    %43 = vector.extract_strided_slice %3 {offsets = [0, 64], sizes = [8, 32], strides = [1, 1]} : vector<8x128xbf16> to vector<8x32xbf16>
    %44 = vector.extract_strided_slice %5 {offsets = [0, 64], sizes = [8, 32], strides = [1, 1]} : vector<8x128xbf16> to vector<8x32xbf16>
    %cst_17 = arith.constant dense<0.000000e+00> : vector<8x8xf32>
    %45 = tpu.matmul %42, %43, %cst_17 {dimension_numbers = #tpu.dot_dimension_numbers<[1], [1], [0], [0], [0, 0, 1, 0], [], []>} : vector<8x32xbf16>, vector<8x32xbf16>, vector<8x8xf32> -> vector<8x8xf32>
    %cst_18 = arith.constant 0.176776692 : f32
    %46 = vector.broadcast %cst_18 : f32 to vector<8x8xf32>
    %47 = arith.mulf %45, %46 : vector<8x8xf32>
    %cst_19 = arith.constant dense<0xFF800000> : vector<8xf32>
    %48 = vector.multi_reduction <maximumf>, %47, %cst_19 [1] : vector<8x8xf32> to vector<8xf32>
    %49 = vector.shape_cast %48 : vector<8xf32> to vector<8x1xf32>
    %50 = vector.broadcast %49 : vector<8x1xf32> to vector<8x8xf32>
    %51 = arith.subf %47, %50 : vector<8x8xf32>
    %52 = math.exp %51 : vector<8x8xf32>
    %cst_20 = arith.constant dense<0.000000e+00> : vector<8xf32>
    %53 = vector.multi_reduction <add>, %52, %cst_20 [1] : vector<8x8xf32> to vector<8xf32>
    %54 = vector.shape_cast %53 : vector<8xf32> to vector<8x1xf32>
    %55 = arith.truncf %52 : vector<8x8xf32> to vector<8x8xbf16>
    %cst_21 = arith.constant dense<0.000000e+00> : vector<8x32xf32>
    %56 = tpu.matmul %55, %44, %cst_21 {dimension_numbers = #tpu.dot_dimension_numbers<[1], [0], [0], [1], [0, 0, 1, 1], [], []>} : vector<8x8xbf16>, vector<8x32xbf16>, vector<8x32xf32> -> vector<8x32xf32>
    %57 = vector.broadcast %54 : vector<8x1xf32> to vector<8x32xf32>
    %58 = arith.divf %56, %57 : vector<8x32xf32>
    %59 = arith.truncf %58 : vector<8x32xf32> to vector<8x32xbf16>
    %60 = vector.extract_strided_slice %1 {offsets = [0, 96], sizes = [8, 32], strides = [1, 1]} : vector<8x128xbf16> to vector<8x32xbf16>
    %61 = vector.extract_strided_slice %3 {offsets = [0, 96], sizes = [8, 32], strides = [1, 1]} : vector<8x128xbf16> to vector<8x32xbf16>
    %62 = vector.extract_strided_slice %5 {offsets = [0, 96], sizes = [8, 32], strides = [1, 1]} : vector<8x128xbf16> to vector<8x32xbf16>
    %cst_22 = arith.constant dense<0.000000e+00> : vector<8x8xf32>
    %63 = tpu.matmul %60, %61, %cst_22 {dimension_numbers = #tpu.dot_dimension_numbers<[1], [1], [0], [0], [0, 0, 1, 0], [], []>} : vector<8x32xbf16>, vector<8x32xbf16>, vector<8x8xf32> -> vector<8x8xf32>
    %cst_23 = arith.constant 0.176776692 : f32
    %64 = vector.broadcast %cst_23 : f32 to vector<8x8xf32>
    %65 = arith.mulf %63, %64 : vector<8x8xf32>
    %cst_24 = arith.constant dense<0xFF800000> : vector<8xf32>
    %66 = vector.multi_reduction <maximumf>, %65, %cst_24 [1] : vector<8x8xf32> to vector<8xf32>
    %67 = vector.shape_cast %66 : vector<8xf32> to vector<8x1xf32>
    %68 = vector.broadcast %67 : vector<8x1xf32> to vector<8x8xf32>
    %69 = arith.subf %65, %68 : vector<8x8xf32>
    %70 = math.exp %69 : vector<8x8xf32>
    %cst_25 = arith.constant dense<0.000000e+00> : vector<8xf32>
    %71 = vector.multi_reduction <add>, %70, %cst_25 [1] : vector<8x8xf32> to vector<8xf32>
    %72 = vector.shape_cast %71 : vector<8xf32> to vector<8x1xf32>
    %73 = arith.truncf %70 : vector<8x8xf32> to vector<8x8xbf16>
    %cst_26 = arith.constant dense<0.000000e+00> : vector<8x32xf32>
    %74 = tpu.matmul %73, %62, %cst_26 {dimension_numbers = #tpu.dot_dimension_numbers<[1], [0], [0], [1], [0, 0, 1, 1], [], []>} : vector<8x8xbf16>, vector<8x32xbf16>, vector<8x32xf32> -> vector<8x32xf32>
    %75 = vector.broadcast %72 : vector<8x1xf32> to vector<8x32xf32>
    %76 = arith.divf %74, %75 : vector<8x32xf32>
    %77 = arith.truncf %76 : vector<8x32xf32> to vector<8x32xbf16>
    %78 = tpu.concatenate %23, %41, %59, %77 in 1 : vector<8x32xbf16>, vector<8x32xbf16>, vector<8x32xbf16>, vector<8x32xbf16> -> vector<8x128xbf16>
    %c0_27 = arith.constant 0 : index
    %c0_28 = arith.constant 0 : index
    %c0_29 = arith.constant 0 : index
    %79 = vector.load %arg5[%c0_27, %c0_28, %c0_29] : memref<1x8x128xbf16, #tpu.memory_space<vmem>>, vector<1x8x128xbf16>
    %80 = vector.shape_cast %79 : vector<1x8x128xbf16> to vector<8x128xbf16>
    %81 = vector.shape_cast %78 : vector<8x128xbf16> to vector<1x8x128xbf16>
    tpu.vector_store %arg5[%c0_27, %c0_28, %c0_29], %81 {strides = array<i32>} : memref<1x8x128xbf16, #tpu.memory_space<vmem>>, vector<1x8x128xbf16>,
    return
  }
  func.func @transform_0(%arg0: i32, %arg1: i32) -> (i32, i32, i32) {
    %c0_i32 = arith.constant 0 : i32
    %c0_i32_0 = arith.constant 0 : i32
    return %arg0, %c0_i32, %arg1 : i32, i32, i32
  }
  func.func @transform_1(%arg0: i32, %arg1: i32) -> (i32, i32, i32) {
    %c1_i32 = arith.constant 1 : i32
    %0 = arith.addi %c1_i32, %arg1 : i32
    %c0_i32 = arith.constant 0 : i32
    %c0_i32_0 = arith.constant 0 : i32
    return %arg0, %c0_i32, %0 : i32, i32, i32
  }
  func.func @transform_2(%arg0: i32, %arg1: i32) -> (i32, i32, i32) {
    %c2_i32 = arith.constant 2 : i32
    %0 = arith.addi %c2_i32, %arg1 : i32
    %c0_i32 = arith.constant 0 : i32
    %c0_i32_0 = arith.constant 0 : i32
    return %arg0, %c0_i32, %0 : i32, i32, i32
  }
  func.func @transform_3(%arg0: i32, %arg1: i32) -> (i32, i32, i32) {
    %c0_i32 = arith.constant 0 : i32
    %c0_i32_0 = arith.constant 0 : i32
    return %arg0, %c0_i32, %arg1 : i32, i32, i32
  }
}

module attributes {stable_mosaic.version = 11 : i64} {
  func.func @_dense_res_ln_kernel(%arg0: i32, %arg1: i32, %arg2: memref<16x128xbf16, #tpu.memory_space<vmem>>, %arg3: memref<128x128xbf16, #tpu.memory_space<vmem>>, %arg4: memref<1x128xf32, #tpu.memory_space<vmem>>, %arg5: memref<16x128xbf16, #tpu.memory_space<vmem>>, %arg6: memref<1x128xf32, #tpu.memory_space<vmem>>, %arg7: memref<1x128xf32, #tpu.memory_space<vmem>>, %arg8: memref<16x128xbf16, #tpu.memory_space<vmem>>, %arg9: memref<16x128xf32, #tpu.memory_space<vmem>>) attributes {dimension_semantics = [#tpu.dimension_semantics<parallel>, #tpu.dimension_semantics<arbitrary>], iteration_bounds = array<i64: 1, 1>, scalar_prefetch = 0 : i64, scratch_operands = 1 : i64, tpu.core_type = #tpu.core_type<tc>, window_params = [{transform_indices = @transform_0, window_bounds = array<i64: 16, 128>}, {transform_indices = @transform_1, window_bounds = array<i64: 128, 128>}, {pipeline_mode = #tpu.pipeline_mode<synchronous>, transform_indices = @transform_2, window_bounds = array<i64: 1, 128>}, {transform_indices = @transform_3, window_bounds = array<i64: 16, 128>}, {pipeline_mode = #tpu.pipeline_mode<synchronous>, transform_indices = @transform_4, window_bounds = array<i64: 1, 128>}, {pipeline_mode = #tpu.pipeline_mode<synchronous>, transform_indices = @transform_5, window_bounds = array<i64: 1, 128>}, {transform_indices = @transform_6, window_bounds = array<i64: 16, 128>}]} {
    %c0_i32 = arith.constant 0 : i32
    %0 = arith.cmpi eq, %arg1, %c0_i32 : i32
    %1 = arith.extui %0 : i1 to i32
    %c0_i32_0 = arith.constant 0 : i32
    %2 = arith.cmpi ne, %1, %c0_i32_0 : i32
    scf.if %2 {
      %c0_10 = arith.constant 0 : index
      %c0_11 = arith.constant 0 : index
      %12 = vector.load %arg4[%c0_10, %c0_11] : memref<1x128xf32, #tpu.memory_space<vmem>>, vector<1x128xf32>
      %13 = vector.shape_cast %12 : vector<1x128xf32> to vector<1x128xf32>
      %14 = vector.broadcast %13 : vector<1x128xf32> to vector<16x128xf32>
      %c0_12 = arith.constant 0 : index
      %c0_13 = arith.constant 0 : index
      %15 = vector.load %arg9[%c0_12, %c0_13] : memref<16x128xf32, #tpu.memory_space<vmem>>, vector<16x128xf32>
      tpu.vector_store %arg9[%c0_12, %c0_13], %14 {strides = array<i32>} : memref<16x128xf32, #tpu.memory_space<vmem>>, vector<16x128xf32>,
    } else {
    }
    %c0 = arith.constant 0 : index
    %c0_1 = arith.constant 0 : index
    %3 = vector.load %arg9[%c0, %c0_1] : memref<16x128xf32, #tpu.memory_space<vmem>>, vector<16x128xf32>
    %c0_2 = arith.constant 0 : index
    %c0_3 = arith.constant 0 : index
    %4 = vector.load %arg2[%c0_2, %c0_3] : memref<16x128xbf16, #tpu.memory_space<vmem>>, vector<16x128xbf16>
    %c0_4 = arith.constant 0 : index
    %c0_5 = arith.constant 0 : index
    %5 = vector.load %arg3[%c0_4, %c0_5] : memref<128x128xbf16, #tpu.memory_space<vmem>>, vector<128x128xbf16>
    %cst = arith.constant dense<0.000000e+00> : vector<16x128xf32>
    %6 = tpu.matmul %4, %5, %cst {dimension_numbers = #tpu.dot_dimension_numbers<[1], [0], [0], [1], [0, 0, 1, 1], [], []>} : vector<16x128xbf16>, vector<128x128xbf16>, vector<16x128xf32> -> vector<16x128xf32>
    %7 = arith.addf %3, %6 : vector<16x128xf32>
    %c0_6 = arith.constant 0 : index
    %c0_7 = arith.constant 0 : index
    %8 = vector.load %arg9[%c0_6, %c0_7] : memref<16x128xf32, #tpu.memory_space<vmem>>, vector<16x128xf32>
    tpu.vector_store %arg9[%c0_6, %c0_7], %7 {strides = array<i32>} : memref<16x128xf32, #tpu.memory_space<vmem>>, vector<16x128xf32>,
    %c0_i32_8 = arith.constant 0 : i32
    %9 = arith.cmpi eq, %arg1, %c0_i32_8 : i32
    %10 = arith.extui %9 : i1 to i32
    %c0_i32_9 = arith.constant 0 : i32
    %11 = arith.cmpi ne, %10, %c0_i32_9 : i32
    scf.if %11 {
      %c0_10 = arith.constant 0 : index
      %c0_11 = arith.constant 0 : index
      %12 = vector.load %arg9[%c0_10, %c0_11] : memref<16x128xf32, #tpu.memory_space<vmem>>, vector<16x128xf32>
      %c0_12 = arith.constant 0 : index
      %c0_13 = arith.constant 0 : index
      %13 = vector.load %arg5[%c0_12, %c0_13] : memref<16x128xbf16, #tpu.memory_space<vmem>>, vector<16x128xbf16>
      %14 = arith.extf %13 : vector<16x128xbf16> to vector<16x128xf32>
      %15 = arith.addf %12, %14 : vector<16x128xf32>
      %cst_14 = arith.constant dense<0.000000e+00> : vector<16xf32>
      %16 = vector.multi_reduction <add>, %15, %cst_14 [1] : vector<16x128xf32> to vector<16xf32>
      %17 = vector.shape_cast %16 : vector<16xf32> to vector<16x1xf32>
      %cst_15 = arith.constant 1.280000e+02 : f32
      %18 = vector.broadcast %cst_15 : f32 to vector<16x1xf32>
      %19 = arith.divf %17, %18 : vector<16x1xf32>
      %20 = vector.broadcast %19 : vector<16x1xf32> to vector<16x128xf32>
      %21 = arith.subf %15, %20 : vector<16x128xf32>
      %22 = arith.mulf %21, %21 : vector<16x128xf32>
      %cst_16 = arith.constant dense<0.000000e+00> : vector<16xf32>
      %23 = vector.multi_reduction <add>, %22, %cst_16 [1] : vector<16x128xf32> to vector<16xf32>
      %24 = vector.shape_cast %23 : vector<16xf32> to vector<16x1xf32>
      %cst_17 = arith.constant 1.280000e+02 : f32
      %25 = vector.broadcast %cst_17 : f32 to vector<16x1xf32>
      %26 = arith.divf %24, %25 : vector<16x1xf32>
      %cst_18 = arith.constant 9.99999996E-13 : f32
      %27 = vector.broadcast %cst_18 : f32 to vector<16x1xf32>
      %28 = arith.addf %26, %27 : vector<16x1xf32>
      %29 = math.rsqrt %28 : vector<16x1xf32>
      %30 = vector.broadcast %29 : vector<16x1xf32> to vector<16x128xf32>
      %31 = arith.mulf %21, %30 : vector<16x128xf32>
      %c0_19 = arith.constant 0 : index
      %c0_20 = arith.constant 0 : index
      %32 = vector.load %arg6[%c0_19, %c0_20] : memref<1x128xf32, #tpu.memory_space<vmem>>, vector<1x128xf32>
      %33 = vector.broadcast %32 : vector<1x128xf32> to vector<16x128xf32>
      %34 = arith.mulf %31, %33 : vector<16x128xf32>
      %c0_21 = arith.constant 0 : index
      %c0_22 = arith.constant 0 : index
      %35 = vector.load %arg7[%c0_21, %c0_22] : memref<1x128xf32, #tpu.memory_space<vmem>>, vector<1x128xf32>
      %36 = vector.broadcast %35 : vector<1x128xf32> to vector<16x128xf32>
      %37 = arith.addf %34, %36 : vector<16x128xf32>
      %38 = arith.truncf %37 : vector<16x128xf32> to vector<16x128xbf16>
      %c0_23 = arith.constant 0 : index
      %c0_24 = arith.constant 0 : index
      %39 = vector.load %arg8[%c0_23, %c0_24] : memref<16x128xbf16, #tpu.memory_space<vmem>>, vector<16x128xbf16>
      tpu.vector_store %arg8[%c0_23, %c0_24], %38 {strides = array<i32>} : memref<16x128xbf16, #tpu.memory_space<vmem>>, vector<16x128xbf16>,
    } else {
    }
    return
  }
  func.func @transform_0(%arg0: i32, %arg1: i32) -> (i32, i32) {
    %c0_i32 = arith.constant 0 : i32
    return %arg0, %arg1 : i32, i32
  }
  func.func @transform_1(%arg0: i32, %arg1: i32) -> (i32, i32) {
    %c0_i32 = arith.constant 0 : i32
    %c0_i32_0 = arith.constant 0 : i32
    return %arg1, %c0_i32 : i32, i32
  }
  func.func @transform_2(%arg0: i32, %arg1: i32) -> (i32, i32) {
    %c0_i32 = arith.constant 0 : i32
    %c0_i32_0 = arith.constant 0 : i32
    %c0_i32_1 = arith.constant 0 : i32
    return %c0_i32, %c0_i32_0 : i32, i32
  }
  func.func @transform_3(%arg0: i32, %arg1: i32) -> (i32, i32) {
    %c0_i32 = arith.constant 0 : i32
    %c0_i32_0 = arith.constant 0 : i32
    return %arg0, %c0_i32 : i32, i32
  }
  func.func @transform_4(%arg0: i32, %arg1: i32) -> (i32, i32) {
    %c0_i32 = arith.constant 0 : i32
    %c0_i32_0 = arith.constant 0 : i32
    %c0_i32_1 = arith.constant 0 : i32
    return %c0_i32, %c0_i32_0 : i32, i32
  }
  func.func @transform_5(%arg0: i32, %arg1: i32) -> (i32, i32) {
    %c0_i32 = arith.constant 0 : i32
    %c0_i32_0 = arith.constant 0 : i32
    %c0_i32_1 = arith.constant 0 : i32
    return %c0_i32, %c0_i32_0 : i32, i32
  }
  func.func @transform_6(%arg0: i32, %arg1: i32) -> (i32, i32) {
    %c0_i32 = arith.constant 0 : i32
    %c0_i32_0 = arith.constant 0 : i32
    return %arg0, %c0_i32 : i32, i32
  }
}

module attributes {stable_mosaic.version = 11 : i64} {
  func.func @_ffn_kernel(%arg0: i32, %arg1: memref<16x128xbf16, #tpu.memory_space<vmem>>, %arg2: memref<128x512xbf16, #tpu.memory_space<vmem>>, %arg3: memref<1x512xf32, #tpu.memory_space<vmem>>, %arg4: memref<512x128xbf16, #tpu.memory_space<vmem>>, %arg5: memref<1x128xf32, #tpu.memory_space<vmem>>, %arg6: memref<1x128xf32, #tpu.memory_space<vmem>>, %arg7: memref<1x128xf32, #tpu.memory_space<vmem>>, %arg8: memref<16x128xbf16, #tpu.memory_space<vmem>>) attributes {dimension_semantics = [#tpu.dimension_semantics<parallel>], iteration_bounds = array<i64: 1>, scalar_prefetch = 0 : i64, scratch_operands = 0 : i64, tpu.core_type = #tpu.core_type<tc>, window_params = [{transform_indices = @transform_0, window_bounds = array<i64: 16, 128>}, {pipeline_mode = #tpu.pipeline_mode<synchronous>, transform_indices = @transform_1, window_bounds = array<i64: 128, 512>}, {pipeline_mode = #tpu.pipeline_mode<synchronous>, transform_indices = @transform_2, window_bounds = array<i64: 1, 512>}, {pipeline_mode = #tpu.pipeline_mode<synchronous>, transform_indices = @transform_3, window_bounds = array<i64: 512, 128>}, {pipeline_mode = #tpu.pipeline_mode<synchronous>, transform_indices = @transform_4, window_bounds = array<i64: 1, 128>}, {pipeline_mode = #tpu.pipeline_mode<synchronous>, transform_indices = @transform_5, window_bounds = array<i64: 1, 128>}, {pipeline_mode = #tpu.pipeline_mode<synchronous>, transform_indices = @transform_6, window_bounds = array<i64: 1, 128>}, {transform_indices = @transform_7, window_bounds = array<i64: 16, 128>}]} {
    %c0 = arith.constant 0 : index
    %c0_0 = arith.constant 0 : index
    %0 = vector.load %arg1[%c0, %c0_0] : memref<16x128xbf16, #tpu.memory_space<vmem>>, vector<16x128xbf16>
    %c0_1 = arith.constant 0 : index
    %c0_2 = arith.constant 0 : index
    %1 = vector.load %arg2[%c0_1, %c0_2] : memref<128x512xbf16, #tpu.memory_space<vmem>>, vector<128x512xbf16>
    %cst = arith.constant dense<0.000000e+00> : vector<16x512xf32>
    %2 = tpu.matmul %0, %1, %cst {dimension_numbers = #tpu.dot_dimension_numbers<[1], [0], [0], [1], [0, 0, 1, 1], [], []>} : vector<16x128xbf16>, vector<128x512xbf16>, vector<16x512xf32> -> vector<16x512xf32>
    %c0_3 = arith.constant 0 : index
    %c0_4 = arith.constant 0 : index
    %3 = vector.load %arg3[%c0_3, %c0_4] : memref<1x512xf32, #tpu.memory_space<vmem>>, vector<1x512xf32>
    %4 = vector.broadcast %3 : vector<1x512xf32> to vector<16x512xf32>
    %5 = arith.addf %2, %4 : vector<16x512xf32>
    %cst_5 = arith.constant 5.000000e-01 : f32
    %6 = vector.broadcast %cst_5 : f32 to vector<16x512xf32>
    %7 = arith.mulf %6, %5 : vector<16x512xf32>
    %cst_6 = arith.constant 4.471500e-02 : f32
    %8 = vector.broadcast %cst_6 : f32 to vector<16x512xf32>
    %9 = arith.mulf %8, %5 : vector<16x512xf32>
    %10 = arith.mulf %9, %5 : vector<16x512xf32>
    %11 = arith.mulf %10, %5 : vector<16x512xf32>
    %12 = arith.addf %5, %11 : vector<16x512xf32>
    %cst_7 = arith.constant 0.797884583 : f32
    %13 = vector.broadcast %cst_7 : f32 to vector<16x512xf32>
    %14 = arith.mulf %13, %12 : vector<16x512xf32>
    %15 = math.tanh %14 : vector<16x512xf32>
    %cst_8 = arith.constant 1.000000e+00 : f32
    %16 = vector.broadcast %cst_8 : f32 to vector<16x512xf32>
    %17 = arith.addf %16, %15 : vector<16x512xf32>
    %18 = arith.mulf %7, %17 : vector<16x512xf32>
    %19 = arith.truncf %18 : vector<16x512xf32> to vector<16x512xbf16>
    %c0_9 = arith.constant 0 : index
    %c0_10 = arith.constant 0 : index
    %20 = vector.load %arg4[%c0_9, %c0_10] : memref<512x128xbf16, #tpu.memory_space<vmem>>, vector<512x128xbf16>
    %cst_11 = arith.constant dense<0.000000e+00> : vector<16x128xf32>
    %21 = tpu.matmul %19, %20, %cst_11 {dimension_numbers = #tpu.dot_dimension_numbers<[1], [0], [0], [1], [0, 0, 1, 1], [], []>} : vector<16x512xbf16>, vector<512x128xbf16>, vector<16x128xf32> -> vector<16x128xf32>
    %c0_12 = arith.constant 0 : index
    %c0_13 = arith.constant 0 : index
    %22 = vector.load %arg5[%c0_12, %c0_13] : memref<1x128xf32, #tpu.memory_space<vmem>>, vector<1x128xf32>
    %23 = vector.broadcast %22 : vector<1x128xf32> to vector<16x128xf32>
    %24 = arith.addf %21, %23 : vector<16x128xf32>
    %25 = arith.extf %0 : vector<16x128xbf16> to vector<16x128xf32>
    %26 = arith.addf %24, %25 : vector<16x128xf32>
    %cst_14 = arith.constant dense<0.000000e+00> : vector<16xf32>
    %27 = vector.multi_reduction <add>, %26, %cst_14 [1] : vector<16x128xf32> to vector<16xf32>
    %28 = vector.shape_cast %27 : vector<16xf32> to vector<16x1xf32>
    %cst_15 = arith.constant 1.280000e+02 : f32
    %29 = vector.broadcast %cst_15 : f32 to vector<16x1xf32>
    %30 = arith.divf %28, %29 : vector<16x1xf32>
    %31 = vector.broadcast %30 : vector<16x1xf32> to vector<16x128xf32>
    %32 = arith.subf %26, %31 : vector<16x128xf32>
    %33 = arith.mulf %32, %32 : vector<16x128xf32>
    %cst_16 = arith.constant dense<0.000000e+00> : vector<16xf32>
    %34 = vector.multi_reduction <add>, %33, %cst_16 [1] : vector<16x128xf32> to vector<16xf32>
    %35 = vector.shape_cast %34 : vector<16xf32> to vector<16x1xf32>
    %cst_17 = arith.constant 1.280000e+02 : f32
    %36 = vector.broadcast %cst_17 : f32 to vector<16x1xf32>
    %37 = arith.divf %35, %36 : vector<16x1xf32>
    %cst_18 = arith.constant 9.99999996E-13 : f32
    %38 = vector.broadcast %cst_18 : f32 to vector<16x1xf32>
    %39 = arith.addf %37, %38 : vector<16x1xf32>
    %40 = math.rsqrt %39 : vector<16x1xf32>
    %41 = vector.broadcast %40 : vector<16x1xf32> to vector<16x128xf32>
    %42 = arith.mulf %32, %41 : vector<16x128xf32>
    %c0_19 = arith.constant 0 : index
    %c0_20 = arith.constant 0 : index
    %43 = vector.load %arg6[%c0_19, %c0_20] : memref<1x128xf32, #tpu.memory_space<vmem>>, vector<1x128xf32>
    %44 = vector.broadcast %43 : vector<1x128xf32> to vector<16x128xf32>
    %45 = arith.mulf %42, %44 : vector<16x128xf32>
    %c0_21 = arith.constant 0 : index
    %c0_22 = arith.constant 0 : index
    %46 = vector.load %arg7[%c0_21, %c0_22] : memref<1x128xf32, #tpu.memory_space<vmem>>, vector<1x128xf32>
    %47 = vector.broadcast %46 : vector<1x128xf32> to vector<16x128xf32>
    %48 = arith.addf %45, %47 : vector<16x128xf32>
    %49 = arith.truncf %48 : vector<16x128xf32> to vector<16x128xbf16>
    %c0_23 = arith.constant 0 : index
    %c0_24 = arith.constant 0 : index
    %50 = vector.load %arg8[%c0_23, %c0_24] : memref<16x128xbf16, #tpu.memory_space<vmem>>, vector<16x128xbf16>
    tpu.vector_store %arg8[%c0_23, %c0_24], %49 {strides = array<i32>} : memref<16x128xbf16, #tpu.memory_space<vmem>>, vector<16x128xbf16>,
    return
  }
  func.func @transform_0(%arg0: i32) -> (i32, i32) {
    %c0_i32 = arith.constant 0 : i32
    %c0_i32_0 = arith.constant 0 : i32
    return %arg0, %c0_i32 : i32, i32
  }
  func.func @transform_1(%arg0: i32) -> (i32, i32) {
    %c0_i32 = arith.constant 0 : i32
    %c0_i32_0 = arith.constant 0 : i32
    %c0_i32_1 = arith.constant 0 : i32
    return %c0_i32, %c0_i32_0 : i32, i32
  }
  func.func @transform_2(%arg0: i32) -> (i32, i32) {
    %c0_i32 = arith.constant 0 : i32
    %c0_i32_0 = arith.constant 0 : i32
    %c0_i32_1 = arith.constant 0 : i32
    return %c0_i32, %c0_i32_0 : i32, i32
  }
  func.func @transform_3(%arg0: i32) -> (i32, i32) {
    %c0_i32 = arith.constant 0 : i32
    %c0_i32_0 = arith.constant 0 : i32
    %c0_i32_1 = arith.constant 0 : i32
    return %c0_i32, %c0_i32_0 : i32, i32
  }
  func.func @transform_4(%arg0: i32) -> (i32, i32) {
    %c0_i32 = arith.constant 0 : i32
    %c0_i32_0 = arith.constant 0 : i32
    %c0_i32_1 = arith.constant 0 : i32
    return %c0_i32, %c0_i32_0 : i32, i32
  }
  func.func @transform_5(%arg0: i32) -> (i32, i32) {
    %c0_i32 = arith.constant 0 : i32
    %c0_i32_0 = arith.constant 0 : i32
    %c0_i32_1 = arith.constant 0 : i32
    return %c0_i32, %c0_i32_0 : i32, i32
  }
  func.func @transform_6(%arg0: i32) -> (i32, i32) {
    %c0_i32 = arith.constant 0 : i32
    %c0_i32_0 = arith.constant 0 : i32
    %c0_i32_1 = arith.constant 0 : i32
    return %c0_i32, %c0_i32_0 : i32, i32
  }
  func.func @transform_7(%arg0: i32) -> (i32, i32) {
    %c0_i32 = arith.constant 0 : i32
    %c0_i32_0 = arith.constant 0 : i32
    return %arg0, %c0_i32 : i32, i32
  }
}

module attributes {stable_mosaic.version = 11 : i64} {
  func.func @_dense_res_ln_kernel(%arg0: i32, %arg1: i32, %arg2: memref<16x128xbf16, #tpu.memory_space<vmem>>, %arg3: memref<128x128xbf16, #tpu.memory_space<vmem>>, %arg4: memref<1x128xf32, #tpu.memory_space<vmem>>, %arg5: memref<16x128xbf16, #tpu.memory_space<vmem>>, %arg6: memref<1x128xf32, #tpu.memory_space<vmem>>, %arg7: memref<1x128xf32, #tpu.memory_space<vmem>>, %arg8: memref<16x128xbf16, #tpu.memory_space<vmem>>, %arg9: memref<16x128xf32, #tpu.memory_space<vmem>>) attributes {dimension_semantics = [#tpu.dimension_semantics<parallel>, #tpu.dimension_semantics<arbitrary>], iteration_bounds = array<i64: 1, 1>, scalar_prefetch = 0 : i64, scratch_operands = 1 : i64, tpu.core_type = #tpu.core_type<tc>, window_params = [{transform_indices = @transform_0, window_bounds = array<i64: 16, 128>}, {transform_indices = @transform_1, window_bounds = array<i64: 128, 128>}, {pipeline_mode = #tpu.pipeline_mode<synchronous>, transform_indices = @transform_2, window_bounds = array<i64: 1, 128>}, {transform_indices = @transform_3, window_bounds = array<i64: 16, 128>}, {pipeline_mode = #tpu.pipeline_mode<synchronous>, transform_indices = @transform_4, window_bounds = array<i64: 1, 128>}, {pipeline_mode = #tpu.pipeline_mode<synchronous>, transform_indices = @transform_5, window_bounds = array<i64: 1, 128>}, {transform_indices = @transform_6, window_bounds = array<i64: 16, 128>}]} {
    %c0_i32 = arith.constant 0 : i32
    %0 = arith.cmpi eq, %arg1, %c0_i32 : i32
    %1 = arith.extui %0 : i1 to i32
    %c0_i32_0 = arith.constant 0 : i32
    %2 = arith.cmpi ne, %1, %c0_i32_0 : i32
    scf.if %2 {
      %c0_10 = arith.constant 0 : index
      %c0_11 = arith.constant 0 : index
      %12 = vector.load %arg4[%c0_10, %c0_11] : memref<1x128xf32, #tpu.memory_space<vmem>>, vector<1x128xf32>
      %13 = vector.shape_cast %12 : vector<1x128xf32> to vector<1x128xf32>
      %14 = vector.broadcast %13 : vector<1x128xf32> to vector<16x128xf32>
      %c0_12 = arith.constant 0 : index
      %c0_13 = arith.constant 0 : index
      %15 = vector.load %arg9[%c0_12, %c0_13] : memref<16x128xf32, #tpu.memory_space<vmem>>, vector<16x128xf32>
      tpu.vector_store %arg9[%c0_12, %c0_13], %14 {strides = array<i32>} : memref<16x128xf32, #tpu.memory_space<vmem>>, vector<16x128xf32>,
    } else {
    }
    %c0 = arith.constant 0 : index
    %c0_1 = arith.constant 0 : index
    %3 = vector.load %arg9[%c0, %c0_1] : memref<16x128xf32, #tpu.memory_space<vmem>>, vector<16x128xf32>
    %c0_2 = arith.constant 0 : index
    %c0_3 = arith.constant 0 : index
    %4 = vector.load %arg2[%c0_2, %c0_3] : memref<16x128xbf16, #tpu.memory_space<vmem>>, vector<16x128xbf16>
    %c0_4 = arith.constant 0 : index
    %c0_5 = arith.constant 0 : index
    %5 = vector.load %arg3[%c0_4, %c0_5] : memref<128x128xbf16, #tpu.memory_space<vmem>>, vector<128x128xbf16>
    %cst = arith.constant dense<0.000000e+00> : vector<16x128xf32>
    %6 = tpu.matmul %4, %5, %cst {dimension_numbers = #tpu.dot_dimension_numbers<[1], [0], [0], [1], [0, 0, 1, 1], [], []>} : vector<16x128xbf16>, vector<128x128xbf16>, vector<16x128xf32> -> vector<16x128xf32>
    %7 = arith.addf %3, %6 : vector<16x128xf32>
    %c0_6 = arith.constant 0 : index
    %c0_7 = arith.constant 0 : index
    %8 = vector.load %arg9[%c0_6, %c0_7] : memref<16x128xf32, #tpu.memory_space<vmem>>, vector<16x128xf32>
    tpu.vector_store %arg9[%c0_6, %c0_7], %7 {strides = array<i32>} : memref<16x128xf32, #tpu.memory_space<vmem>>, vector<16x128xf32>,
    %c0_i32_8 = arith.constant 0 : i32
    %9 = arith.cmpi eq, %arg1, %c0_i32_8 : i32
    %10 = arith.extui %9 : i1 to i32
    %c0_i32_9 = arith.constant 0 : i32
    %11 = arith.cmpi ne, %10, %c0_i32_9 : i32
    scf.if %11 {
      %c0_10 = arith.constant 0 : index
      %c0_11 = arith.constant 0 : index
      %12 = vector.load %arg9[%c0_10, %c0_11] : memref<16x128xf32, #tpu.memory_space<vmem>>, vector<16x128xf32>
      %c0_12 = arith.constant 0 : index
      %c0_13 = arith.constant 0 : index
      %13 = vector.load %arg5[%c0_12, %c0_13] : memref<16x128xbf16, #tpu.memory_space<vmem>>, vector<16x128xbf16>
      %14 = arith.extf %13 : vector<16x128xbf16> to vector<16x128xf32>
      %15 = arith.addf %12, %14 : vector<16x128xf32>
      %cst_14 = arith.constant dense<0.000000e+00> : vector<16xf32>
      %16 = vector.multi_reduction <add>, %15, %cst_14 [1] : vector<16x128xf32> to vector<16xf32>
      %17 = vector.shape_cast %16 : vector<16xf32> to vector<16x1xf32>
      %cst_15 = arith.constant 1.280000e+02 : f32
      %18 = vector.broadcast %cst_15 : f32 to vector<16x1xf32>
      %19 = arith.divf %17, %18 : vector<16x1xf32>
      %20 = vector.broadcast %19 : vector<16x1xf32> to vector<16x128xf32>
      %21 = arith.subf %15, %20 : vector<16x128xf32>
      %22 = arith.mulf %21, %21 : vector<16x128xf32>
      %cst_16 = arith.constant dense<0.000000e+00> : vector<16xf32>
      %23 = vector.multi_reduction <add>, %22, %cst_16 [1] : vector<16x128xf32> to vector<16xf32>
      %24 = vector.shape_cast %23 : vector<16xf32> to vector<16x1xf32>
      %cst_17 = arith.constant 1.280000e+02 : f32
      %25 = vector.broadcast %cst_17 : f32 to vector<16x1xf32>
      %26 = arith.divf %24, %25 : vector<16x1xf32>
      %cst_18 = arith.constant 9.99999996E-13 : f32
      %27 = vector.broadcast %cst_18 : f32 to vector<16x1xf32>
      %28 = arith.addf %26, %27 : vector<16x1xf32>
      %29 = math.rsqrt %28 : vector<16x1xf32>
      %30 = vector.broadcast %29 : vector<16x1xf32> to vector<16x128xf32>
      %31 = arith.mulf %21, %30 : vector<16x128xf32>
      %c0_19 = arith.constant 0 : index
      %c0_20 = arith.constant 0 : index
      %32 = vector.load %arg6[%c0_19, %c0_20] : memref<1x128xf32, #tpu.memory_space<vmem>>, vector<1x128xf32>
      %33 = vector.broadcast %32 : vector<1x128xf32> to vector<16x128xf32>
      %34 = arith.mulf %31, %33 : vector<16x128xf32>
      %c0_21 = arith.constant 0 : index
      %c0_22 = arith.constant 0 : index
      %35 = vector.load %arg7[%c0_21, %c0_22] : memref<1x128xf32, #tpu.memory_space<vmem>>, vector<1x128xf32>
      %36 = vector.broadcast %35 : vector<1x128xf32> to vector<16x128xf32>
      %37 = arith.addf %34, %36 : vector<16x128xf32>
      %38 = arith.truncf %37 : vector<16x128xf32> to vector<16x128xbf16>
      %c0_23 = arith.constant 0 : index
      %c0_24 = arith.constant 0 : index
      %39 = vector.load %arg8[%c0_23, %c0_24] : memref<16x128xbf16, #tpu.memory_space<vmem>>, vector<16x128xbf16>
      tpu.vector_store %arg8[%c0_23, %c0_24], %38 {strides = array<i32>} : memref<16x128xbf16, #tpu.memory_space<vmem>>, vector<16x128xbf16>,
    } else {
    }
    return
  }
  func.func @transform_0(%arg0: i32, %arg1: i32) -> (i32, i32) {
    %c0_i32 = arith.constant 0 : i32
    return %arg0, %arg1 : i32, i32
  }
  func.func @transform_1(%arg0: i32, %arg1: i32) -> (i32, i32) {
    %c0_i32 = arith.constant 0 : i32
    %c0_i32_0 = arith.constant 0 : i32
    return %arg1, %c0_i32 : i32, i32
  }
  func.func @transform_2(%arg0: i32, %arg1: i32) -> (i32, i32) {
    %c0_i32 = arith.constant 0 : i32
    %c0_i32_0 = arith.constant 0 : i32
    %c0_i32_1 = arith.constant 0 : i32
    return %c0_i32, %c0_i32_0 : i32, i32
  }
  func.func @transform_3(%arg0: i32, %arg1: i32) -> (i32, i32) {
    %c0_i32 = arith.constant 0 : i32
    %c0_i32_0 = arith.constant 0 : i32
    return %arg0, %c0_i32 : i32, i32
  }
  func.func @transform_4(%arg0: i32, %arg1: i32) -> (i32, i32) {
    %c0_i32 = arith.constant 0 : i32
    %c0_i32_0 = arith.constant 0 : i32
    %c0_i32_1 = arith.constant 0 : i32
    return %c0_i32, %c0_i32_0 : i32, i32
  }
  func.func @transform_5(%arg0: i32, %arg1: i32) -> (i32, i32) {
    %c0_i32 = arith.constant 0 : i32
    %c0_i32_0 = arith.constant 0 : i32
    %c0_i32_1 = arith.constant 0 : i32
    return %c0_i32, %c0_i32_0 : i32, i32
  }
  func.func @transform_6(%arg0: i32, %arg1: i32) -> (i32, i32) {
    %c0_i32 = arith.constant 0 : i32
    %c0_i32_0 = arith.constant 0 : i32
    return %arg0, %c0_i32 : i32, i32
  }
}

module attributes {stable_mosaic.version = 11 : i64} {
  func.func @_ffn_kernel(%arg0: i32, %arg1: memref<16x128xbf16, #tpu.memory_space<vmem>>, %arg2: memref<128x512xbf16, #tpu.memory_space<vmem>>, %arg3: memref<1x512xf32, #tpu.memory_space<vmem>>, %arg4: memref<512x128xbf16, #tpu.memory_space<vmem>>, %arg5: memref<1x128xf32, #tpu.memory_space<vmem>>, %arg6: memref<1x128xf32, #tpu.memory_space<vmem>>, %arg7: memref<1x128xf32, #tpu.memory_space<vmem>>, %arg8: memref<16x128xbf16, #tpu.memory_space<vmem>>) attributes {dimension_semantics = [#tpu.dimension_semantics<parallel>], iteration_bounds = array<i64: 1>, scalar_prefetch = 0 : i64, scratch_operands = 0 : i64, tpu.core_type = #tpu.core_type<tc>, window_params = [{transform_indices = @transform_0, window_bounds = array<i64: 16, 128>}, {pipeline_mode = #tpu.pipeline_mode<synchronous>, transform_indices = @transform_1, window_bounds = array<i64: 128, 512>}, {pipeline_mode = #tpu.pipeline_mode<synchronous>, transform_indices = @transform_2, window_bounds = array<i64: 1, 512>}, {pipeline_mode = #tpu.pipeline_mode<synchronous>, transform_indices = @transform_3, window_bounds = array<i64: 512, 128>}, {pipeline_mode = #tpu.pipeline_mode<synchronous>, transform_indices = @transform_4, window_bounds = array<i64: 1, 128>}, {pipeline_mode = #tpu.pipeline_mode<synchronous>, transform_indices = @transform_5, window_bounds = array<i64: 1, 128>}, {pipeline_mode = #tpu.pipeline_mode<synchronous>, transform_indices = @transform_6, window_bounds = array<i64: 1, 128>}, {transform_indices = @transform_7, window_bounds = array<i64: 16, 128>}]} {
    %c0 = arith.constant 0 : index
    %c0_0 = arith.constant 0 : index
    %0 = vector.load %arg1[%c0, %c0_0] : memref<16x128xbf16, #tpu.memory_space<vmem>>, vector<16x128xbf16>
    %c0_1 = arith.constant 0 : index
    %c0_2 = arith.constant 0 : index
    %1 = vector.load %arg2[%c0_1, %c0_2] : memref<128x512xbf16, #tpu.memory_space<vmem>>, vector<128x512xbf16>
    %cst = arith.constant dense<0.000000e+00> : vector<16x512xf32>
    %2 = tpu.matmul %0, %1, %cst {dimension_numbers = #tpu.dot_dimension_numbers<[1], [0], [0], [1], [0, 0, 1, 1], [], []>} : vector<16x128xbf16>, vector<128x512xbf16>, vector<16x512xf32> -> vector<16x512xf32>
    %c0_3 = arith.constant 0 : index
    %c0_4 = arith.constant 0 : index
    %3 = vector.load %arg3[%c0_3, %c0_4] : memref<1x512xf32, #tpu.memory_space<vmem>>, vector<1x512xf32>
    %4 = vector.broadcast %3 : vector<1x512xf32> to vector<16x512xf32>
    %5 = arith.addf %2, %4 : vector<16x512xf32>
    %cst_5 = arith.constant 5.000000e-01 : f32
    %6 = vector.broadcast %cst_5 : f32 to vector<16x512xf32>
    %7 = arith.mulf %6, %5 : vector<16x512xf32>
    %cst_6 = arith.constant 4.471500e-02 : f32
    %8 = vector.broadcast %cst_6 : f32 to vector<16x512xf32>
    %9 = arith.mulf %8, %5 : vector<16x512xf32>
    %10 = arith.mulf %9, %5 : vector<16x512xf32>
    %11 = arith.mulf %10, %5 : vector<16x512xf32>
    %12 = arith.addf %5, %11 : vector<16x512xf32>
    %cst_7 = arith.constant 0.797884583 : f32
    %13 = vector.broadcast %cst_7 : f32 to vector<16x512xf32>
    %14 = arith.mulf %13, %12 : vector<16x512xf32>
    %15 = math.tanh %14 : vector<16x512xf32>
    %cst_8 = arith.constant 1.000000e+00 : f32
    %16 = vector.broadcast %cst_8 : f32 to vector<16x512xf32>
    %17 = arith.addf %16, %15 : vector<16x512xf32>
    %18 = arith.mulf %7, %17 : vector<16x512xf32>
    %19 = arith.truncf %18 : vector<16x512xf32> to vector<16x512xbf16>
    %c0_9 = arith.constant 0 : index
    %c0_10 = arith.constant 0 : index
    %20 = vector.load %arg4[%c0_9, %c0_10] : memref<512x128xbf16, #tpu.memory_space<vmem>>, vector<512x128xbf16>
    %cst_11 = arith.constant dense<0.000000e+00> : vector<16x128xf32>
    %21 = tpu.matmul %19, %20, %cst_11 {dimension_numbers = #tpu.dot_dimension_numbers<[1], [0], [0], [1], [0, 0, 1, 1], [], []>} : vector<16x512xbf16>, vector<512x128xbf16>, vector<16x128xf32> -> vector<16x128xf32>
    %c0_12 = arith.constant 0 : index
    %c0_13 = arith.constant 0 : index
    %22 = vector.load %arg5[%c0_12, %c0_13] : memref<1x128xf32, #tpu.memory_space<vmem>>, vector<1x128xf32>
    %23 = vector.broadcast %22 : vector<1x128xf32> to vector<16x128xf32>
    %24 = arith.addf %21, %23 : vector<16x128xf32>
    %25 = arith.extf %0 : vector<16x128xbf16> to vector<16x128xf32>
    %26 = arith.addf %24, %25 : vector<16x128xf32>
    %cst_14 = arith.constant dense<0.000000e+00> : vector<16xf32>
    %27 = vector.multi_reduction <add>, %26, %cst_14 [1] : vector<16x128xf32> to vector<16xf32>
    %28 = vector.shape_cast %27 : vector<16xf32> to vector<16x1xf32>
    %cst_15 = arith.constant 1.280000e+02 : f32
    %29 = vector.broadcast %cst_15 : f32 to vector<16x1xf32>
    %30 = arith.divf %28, %29 : vector<16x1xf32>
    %31 = vector.broadcast %30 : vector<16x1xf32> to vector<16x128xf32>
    %32 = arith.subf %26, %31 : vector<16x128xf32>
    %33 = arith.mulf %32, %32 : vector<16x128xf32>
    %cst_16 = arith.constant dense<0.000000e+00> : vector<16xf32>
    %34 = vector.multi_reduction <add>, %33, %cst_16 [1] : vector<16x128xf32> to vector<16xf32>
    %35 = vector.shape_cast %34 : vector<16xf32> to vector<16x1xf32>
    %cst_17 = arith.constant 1.280000e+02 : f32
    %36 = vector.broadcast %cst_17 : f32 to vector<16x1xf32>
    %37 = arith.divf %35, %36 : vector<16x1xf32>
    %cst_18 = arith.constant 9.99999996E-13 : f32
    %38 = vector.broadcast %cst_18 : f32 to vector<16x1xf32>
    %39 = arith.addf %37, %38 : vector<16x1xf32>
    %40 = math.rsqrt %39 : vector<16x1xf32>
    %41 = vector.broadcast %40 : vector<16x1xf32> to vector<16x128xf32>
    %42 = arith.mulf %32, %41 : vector<16x128xf32>
    %c0_19 = arith.constant 0 : index
    %c0_20 = arith.constant 0 : index
    %43 = vector.load %arg6[%c0_19, %c0_20] : memref<1x128xf32, #tpu.memory_space<vmem>>, vector<1x128xf32>
    %44 = vector.broadcast %43 : vector<1x128xf32> to vector<16x128xf32>
    %45 = arith.mulf %42, %44 : vector<16x128xf32>
    %c0_21 = arith.constant 0 : index
    %c0_22 = arith.constant 0 : index
    %46 = vector.load %arg7[%c0_21, %c0_22] : memref<1x128xf32, #tpu.memory_space<vmem>>, vector<1x128xf32>
    %47 = vector.broadcast %46 : vector<1x128xf32> to vector<16x128xf32>
    %48 = arith.addf %45, %47 : vector<16x128xf32>
    %49 = arith.truncf %48 : vector<16x128xf32> to vector<16x128xbf16>
    %c0_23 = arith.constant 0 : index
    %c0_24 = arith.constant 0 : index
    %50 = vector.load %arg8[%c0_23, %c0_24] : memref<16x128xbf16, #tpu.memory_space<vmem>>, vector<16x128xbf16>
    tpu.vector_store %arg8[%c0_23, %c0_24], %49 {strides = array<i32>} : memref<16x128xbf16, #tpu.memory_space<vmem>>, vector<16x128xbf16>,
    return
  }
  func.func @transform_0(%arg0: i32) -> (i32, i32) {
    %c0_i32 = arith.constant 0 : i32
    %c0_i32_0 = arith.constant 0 : i32
    return %arg0, %c0_i32 : i32, i32
  }
  func.func @transform_1(%arg0: i32) -> (i32, i32) {
    %c0_i32 = arith.constant 0 : i32
    %c0_i32_0 = arith.constant 0 : i32
    %c0_i32_1 = arith.constant 0 : i32
    return %c0_i32, %c0_i32_0 : i32, i32
  }
  func.func @transform_2(%arg0: i32) -> (i32, i32) {
    %c0_i32 = arith.constant 0 : i32
    %c0_i32_0 = arith.constant 0 : i32
    %c0_i32_1 = arith.constant 0 : i32
    return %c0_i32, %c0_i32_0 : i32, i32
  }
  func.func @transform_3(%arg0: i32) -> (i32, i32) {
    %c0_i32 = arith.constant 0 : i32
    %c0_i32_0 = arith.constant 0 : i32
    %c0_i32_1 = arith.constant 0 : i32
    return %c0_i32, %c0_i32_0 : i32, i32
  }
  func.func @transform_4(%arg0: i32) -> (i32, i32) {
    %c0_i32 = arith.constant 0 : i32
    %c0_i32_0 = arith.constant 0 : i32
    %c0_i32_1 = arith.constant 0 : i32
    return %c0_i32, %c0_i32_0 : i32, i32
  }
  func.func @transform_5(%arg0: i32) -> (i32, i32) {
    %c0_i32 = arith.constant 0 : i32
    %c0_i32_0 = arith.constant 0 : i32
    %c0_i32_1 = arith.constant 0 : i32
    return %c0_i32, %c0_i32_0 : i32, i32
  }
  func.func @transform_6(%arg0: i32) -> (i32, i32) {
    %c0_i32 = arith.constant 0 : i32
    %c0_i32_0 = arith.constant 0 : i32
    %c0_i32_1 = arith.constant 0 : i32
    return %c0_i32, %c0_i32_0 : i32, i32
  }
  func.func @transform_7(%arg0: i32) -> (i32, i32) {
    %c0_i32 = arith.constant 0 : i32
    %c0_i32_0 = arith.constant 0 : i32
    return %arg0, %c0_i32 : i32, i32
  }
}

module attributes {stable_mosaic.version = 11 : i64} {
  func.func @_pooler_cls_kernel(%arg0: memref<2x128xbf16, #tpu.memory_space<vmem>>, %arg1: memref<128x128xbf16, #tpu.memory_space<vmem>>, %arg2: memref<1x128xf32, #tpu.memory_space<vmem>>, %arg3: memref<128x3xbf16, #tpu.memory_space<vmem>>, %arg4: memref<1x3xf32, #tpu.memory_space<vmem>>, %arg5: memref<2x3xf32, #tpu.memory_space<vmem>>) attributes {dimension_semantics = [], scalar_prefetch = 0 : i64, scratch_operands = 0 : i64, tpu.core_type = #tpu.core_type<tc>} {
    %c0 = arith.constant 0 : index
    %c0_0 = arith.constant 0 : index
    %0 = vector.load %arg0[%c0, %c0_0] : memref<2x128xbf16, #tpu.memory_space<vmem>>, vector<2x128xbf16>
    %c0_1 = arith.constant 0 : index
    %c0_2 = arith.constant 0 : index
    %1 = vector.load %arg1[%c0_1, %c0_2] : memref<128x128xbf16, #tpu.memory_space<vmem>>, vector<128x128xbf16>
    %cst = arith.constant dense<0.000000e+00> : vector<2x128xf32>
    %2 = tpu.matmul %0, %1, %cst {dimension_numbers = #tpu.dot_dimension_numbers<[1], [0], [0], [1], [0, 0, 1, 1], [], []>} : vector<2x128xbf16>, vector<128x128xbf16>, vector<2x128xf32> -> vector<2x128xf32>
    %c0_3 = arith.constant 0 : index
    %c0_4 = arith.constant 0 : index
    %3 = vector.load %arg2[%c0_3, %c0_4] : memref<1x128xf32, #tpu.memory_space<vmem>>, vector<1x128xf32>
    %4 = vector.broadcast %3 : vector<1x128xf32> to vector<2x128xf32>
    %5 = arith.addf %2, %4 : vector<2x128xf32>
    %6 = math.tanh %5 : vector<2x128xf32>
    %7 = arith.truncf %6 : vector<2x128xf32> to vector<2x128xbf16>
    %c0_5 = arith.constant 0 : index
    %c0_6 = arith.constant 0 : index
    %8 = vector.load %arg3[%c0_5, %c0_6] : memref<128x3xbf16, #tpu.memory_space<vmem>>, vector<128x3xbf16>
    %cst_7 = arith.constant dense<0.000000e+00> : vector<2x3xf32>
    %9 = tpu.matmul %7, %8, %cst_7 {dimension_numbers = #tpu.dot_dimension_numbers<[1], [0], [0], [1], [0, 0, 1, 1], [], []>} : vector<2x128xbf16>, vector<128x3xbf16>, vector<2x3xf32> -> vector<2x3xf32>
    %c0_8 = arith.constant 0 : index
    %c0_9 = arith.constant 0 : index
    %10 = vector.load %arg4[%c0_8, %c0_9] : memref<1x3xf32, #tpu.memory_space<vmem>>, vector<1x3xf32>
    %11 = vector.broadcast %10 : vector<1x3xf32> to vector<2x3xf32>
    %12 = arith.addf %9, %11 : vector<2x3xf32>
    %c0_10 = arith.constant 0 : index
    %c0_11 = arith.constant 0 : index
    %13 = vector.load %arg5[%c0_10, %c0_11] : memref<2x3xf32, #tpu.memory_space<vmem>>, vector<2x3xf32>
    tpu.vector_store %arg5[%c0_10, %c0_11], %12 {strides = array<i32>} : memref<2x3xf32, #tpu.memory_space<vmem>>, vector<2x3xf32>,
    return
  }
}

</mosaic_0001>

<llo_original>
// kernel: bert_seq_noft_forward.10
$region0: #{bert_seq_noft_forward.10}
  #allocation0 [shape = 'u32[]', space=smem, size = 0x4, offset = 0x4, fixed_abs, tag = 'smem constant byte address 0x4 - core index']
  #allocation1 [shape = 'u32[144,128]{1,0:T(1,128)}', space=vmem, size = 0x12000, scoped, tag = 'internal scratch']
  %s0 = inlined_call_operand.vmem [shape: f32[16,128], index: 0, kind: input, shape index: {}]
  %s1 = inlined_call_operand.vmem [shape: f32[1,128], index: 1, kind: input, shape index: {}]
  %s2 = inlined_call_operand.vmem [shape: f32[1,128], index: 2, kind: input, shape index: {}]
  %s3 = inlined_call_operand.vmem [shape: bf16[16,128], index: 3, kind: output, shape index: {}]
  %s4 = sld [smem:[#allocation0]]
  $region22: #{bert_seq_noft_forward.10} parent=0
    _
  %s6 = ssub.s32 1, %s4
  %s7 = scalar_select 0, %s6, %s4
  // Predicated region
  $region2: #{bert_seq_noft_forward.10} parent=0 // pred_check
    _
  $region3: #{bert_seq_noft_forward.10} parent=0 // pred_check_branch
    %9 = sbr.rel (0) target = $region5
  $region4: #{bert_seq_noft_forward.10} parent=0 // pred_region
    _
  $region5: #{bert_seq_noft_forward.10} parent=0 // pred_fallthru
    _
  // Predicated region
  $region6: #{bert_seq_noft_forward.10} parent=0 // pred_check
    _
  $region7: #{bert_seq_noft_forward.10} parent=0 // pred_check_branch
    %11 = sbr.rel (0) target = $region9
  $region8: #{bert_seq_noft_forward.10} parent=0 // pred_region
    _
  $region9: #{bert_seq_noft_forward.10} parent=0 // pred_fallthru
    _
  // Predicated region
  $region10: #{bert_seq_noft_forward.10} parent=0 // pred_check
    _
  $region11: #{bert_seq_noft_forward.10} parent=0 // pred_check_branch
    %13 = sbr.rel (0) target = $region13
  $region12: #{bert_seq_noft_forward.10} parent=0 // pred_region
    _
  $region13: #{bert_seq_noft_forward.10} parent=0 // pred_fallthru
    _
  %v14 = vld [vmem:[%s0] sm:$0xff]
  %v15 = vld [vmem:[%s0 + $0x8] sm:$0xff]
  %16 = vadd.xlane.f32.xlu0 %v14
  %v17 = vpop.xlane.xlu0 %16
  %18 = vadd.xlane.f32.xlu0 %v15
  %v19 = vpop.xlane.xlu0 %18
  %v20 = vrcp.pop 128.0
  %v21 = vmul.f32 %v17, %v20
  %v22 = vmul.f32 %v19, %v20
  %v23 = vsub.f32 %v14, %v21
  %v24 = vsub.f32 %v15, %v22
  %v25 = vmul.f32 %v23, %v23
  %v26 = vmul.f32 %v24, %v24
  %27 = vadd.xlane.f32.xlu0 %v25
  %v28 = vpop.xlane.xlu0 %27
  %29 = vadd.xlane.f32.xlu0 %v26
  %v30 = vpop.xlane.xlu0 %29
  %v31 = vmul.f32 %v28, %v20
  %v32 = vmul.f32 %v30, %v20
  %v33 = vadd.f32 %v31, 1e-12
  %v34 = vadd.f32 %v32, 1e-12
  %v35 = vrsqrt.pop %v33
  %v36 = vrsqrt.pop %v34
  %v37 = vmul.f32 %v23, %v35
  %v38 = vmul.f32 %v24, %v36
  %v39 = vld [vmem:[%s1] sm:$0x1]
  %v41 = vlaneseq
  %v42 = vshrl.u32 %v41, 7
  %v43 = vsub.s32 0, %v42
  %v44 = vrot.slane %v39, %v43
  %v46 = vmul.f32 %v37, %v44
  %v47 = vmul.f32 %v38, %v44
  %v48 = vld [vmem:[%s2] sm:$0x1]
  %v50 = vlaneseq
  %v51 = vshrl.u32 %v50, 7
  %v52 = vsub.s32 0, %v51
  %v53 = vrot.slane %v48, %v52
  %v55 = vadd.f32 %v46, %v53
  %v56 = vadd.f32 %v47, %v53
  %v57 = vpack.c.bf16 %v56, %v55
  %v59 = vunpack.c.l.b16 %v57
  %v60 = vunpack.c.h.b16 %v57
  %v61 = vpack.c.b16 %v59, %v59
  %v62 = vpack.c.b16 %v60, %v60
  %65 = vst [vmem:[%s3] sm:$0xf] %v61
  %66 = vst [vmem:[%s3 + $0x4] sm:$0xf] %v62
  // Predicated region
  $region14: #{bert_seq_noft_forward.10} parent=0 // pred_check
    _
  $region15: #{bert_seq_noft_forward.10} parent=0 // pred_check_branch
    %68 = sbr.rel (0) target = $region17
  $region16: #{bert_seq_noft_forward.10} parent=0 // pred_region
    _
  $region17: #{bert_seq_noft_forward.10} parent=0 // pred_fallthru
    _
  // Predicated region
  $region18: #{bert_seq_noft_forward.10} parent=0 // pred_check
    _
  $region19: #{bert_seq_noft_forward.10} parent=0 // pred_check_branch
    %70 = sbr.rel (0) target = $region21
  $region20: #{bert_seq_noft_forward.10} parent=0 // pred_region
    _
  $region21: #{bert_seq_noft_forward.10} parent=0 // pred_fallthru
    _

// kernel: bert_seq_noft_forward.11
$region0: #{bert_seq_noft_forward.11}
  #allocation0 [shape = 'u32[]', space=smem, size = 0x4, offset = 0x4, fixed_abs, tag = 'smem constant byte address 0x4 - core index']
  #allocation1 [shape = 'u32[144,128]{1,0:T(1,128)}', space=vmem, size = 0x12000, scoped, tag = 'internal scratch']
  #allocation2 [shape = 'f32[16,384]{1,0:T(8,128)}', space=vmem, size = 0x6000, scoped, tag = 'scratch operand']
  %s0 = inlined_call_operand.vmem [shape: bf16[16,128], index: 0, kind: input, shape index: {}]
  %s1 = inlined_call_operand.vmem [shape: bf16[128,384], index: 1, kind: input, shape index: {}]
  %s2 = inlined_call_operand.vmem [shape: f32[1,384], index: 2, kind: input, shape index: {}]
  %s3 = inlined_call_operand.vmem [shape: bf16[16,384], index: 3, kind: output, shape index: {}]
  %s4 = sld [smem:[#allocation0]]
  $region30: #{bert_seq_noft_forward.11} parent=0
    _
  %s6 = ssub.s32 1, %s4
  %s7 = scalar_select 0, %s6, %s4
  // Predicated region
  $region2: #{bert_seq_noft_forward.11} parent=0 // pred_check
    _
  $region3: #{bert_seq_noft_forward.11} parent=0 // pred_check_branch
    %9 = sbr.rel (0) target = $region5
  $region4: #{bert_seq_noft_forward.11} parent=0 // pred_region
    _
  $region5: #{bert_seq_noft_forward.11} parent=0 // pred_fallthru
    _
  // Predicated region
  $region6: #{bert_seq_noft_forward.11} parent=0 // pred_check
    _
  $region7: #{bert_seq_noft_forward.11} parent=0 // pred_check_branch
    %11 = sbr.rel (0) target = $region9
  $region8: #{bert_seq_noft_forward.11} parent=0 // pred_region
    _
  $region9: #{bert_seq_noft_forward.11} parent=0 // pred_fallthru
    _
  // Predicated region
  $region10: #{bert_seq_noft_forward.11} parent=0 // pred_check
    _
  $region11: #{bert_seq_noft_forward.11} parent=0 // pred_check_branch
    %13 = sbr.rel (0) target = $region13
  $region12: #{bert_seq_noft_forward.11} parent=0 // pred_region
    _
  $region13: #{bert_seq_noft_forward.11} parent=0 // pred_fallthru
    _
  %p15 = scmp.eq.s32.totalorder 0, 0
  // Predicated region
  $region14: #{bert_seq_noft_forward.11} parent=0 // pred_check
    %p16 = pneg %p15
  $region15: #{bert_seq_noft_forward.11} parent=0 // pred_check_branch
    %18 = sbr.rel (%p16) target = $region17
  $region16: #{bert_seq_noft_forward.11} parent=0 // pred_region
    %v19 = vld [vmem:[%s2] sm:$0x7]
    %v21 = vlaneseq
    %v22 = vshrl.u32 %v21, 7
    %v23 = vsub.s32 0, %v22
    %v24 = vrot.slane %v19, %v23
    %v25 = vlaneseq
    %v26 = vshrl.u32 %v25, 7
    %v27 = vsub.s32 1, %v26
    %v28 = vrot.slane %v19, %v27
    %v29 = vlaneseq
    %v30 = vshrl.u32 %v29, 7
    %v31 = vsub.s32 2, %v30
    %v32 = vrot.slane %v19, %v31
    %36 = vst [vmem:[#allocation2] sm:$0xff] %v24
    %37 = vst [vmem:[#allocation2 + $0x8] sm:$0xff] %v28
    %38 = vst [vmem:[#allocation2 + $0x10] sm:$0xff] %v32
    %39 = vst [vmem:[#allocation2 + $0x18] sm:$0xff] %v24
    %40 = vst [vmem:[#allocation2 + $0x20] sm:$0xff] %v28
    %41 = vst [vmem:[#allocation2 + $0x28] sm:$0xff] %v32
  $region17: #{bert_seq_noft_forward.11} parent=0 // pred_fallthru
    _
  %v42 = vld [vmem:[#allocation2] sm:$0xff]
  %v43 = vld [vmem:[#allocation2 + $0x8] sm:$0xff]
  %v44 = vld [vmem:[#allocation2 + $0x10] sm:$0xff]
  %v45 = vld [vmem:[#allocation2 + $0x18] sm:$0xff]
  %v46 = vld [vmem:[#allocation2 + $0x20] sm:$0xff]
  %v47 = vld [vmem:[#allocation2 + $0x28] sm:$0xff]
  %v48 = vld [vmem:[%s0] sm:$0xf]
  %v49 = vld [vmem:[%s0 + $0x4] sm:$0xf]
  %v50 = vld [vmem:[%s1] sm:$0xff]
  %v51 = vld [vmem:[%s1 + $0x8] sm:$0xf]
  %v52 = vld [vmem:[%s1 + $0xc] sm:$0xff]
  %v53 = vld [vmem:[%s1 + $0x14] sm:$0xf]
  %v54 = vld [vmem:[%s1 + $0x18] sm:$0xff]
  %v55 = vld [vmem:[%s1 + $0x20] sm:$0xf]
  %v56 = vld [vmem:[%s1 + $0x24] sm:$0xff]
  %v57 = vld [vmem:[%s1 + $0x2c] sm:$0xf]
  %v58 = vld [vmem:[%s1 + $0x30] sm:$0xff]
  %v59 = vld [vmem:[%s1 + $0x38] sm:$0xf]
  %v60 = vld [vmem:[%s1 + $0x3c] sm:$0xff]
  %v61 = vld [vmem:[%s1 + $0x44] sm:$0xf]
  %v62 = vld [vmem:[%s1 + $0x48] sm:$0xff]
  %v63 = vld [vmem:[%s1 + $0x50] sm:$0xf]
  %v64 = vld [vmem:[%s1 + $0x54] sm:$0xff]
  %v65 = vld [vmem:[%s1 + $0x5c] sm:$0xf]
  %v66 = vld [vmem:[%s1 + $0x60] sm:$0xff]
  %v67 = vld [vmem:[%s1 + $0x68] sm:$0xf]
  %v68 = vld [vmem:[%s1 + $0x6c] sm:$0xff]
  %v69 = vld [vmem:[%s1 + $0x74] sm:$0xf]
  %v70 = vld [vmem:[%s1 + $0x78] sm:$0xff]
  %v71 = vld [vmem:[%s1 + $0x80] sm:$0xf]
  %v72 = vld [vmem:[%s1 + $0x84] sm:$0xff]
  %v73 = vld [vmem:[%s1 + $0x8c] sm:$0xf]
  %v74 = vld [vmem:[%s1 + $0x90] sm:$0xff]
  %v75 = vld [vmem:[%s1 + $0x98] sm:$0xf]
  %v76 = vld [vmem:[%s1 + $0x9c] sm:$0xff]
  %v77 = vld [vmem:[%s1 + $0xa4] sm:$0xf]
  %v78 = vld [vmem:[%s1 + $0xa8] sm:$0xff]
  %v79 = vld [vmem:[%s1 + $0xb0] sm:$0xf]
  %v80 = vld [vmem:[%s1 + $0xb4] sm:$0xff]
  %v81 = vld [vmem:[%s1 + $0xbc] sm:$0xf]
  %v84 = vunpack.c.l.b16 %v48
  %v85 = vunpack.c.l.b16 %v49
  %v86 = vpack.c.b16 %v85, %v84
  %v120 = vunpack.c.l.b16 %v50
  %v121 = vunpack.c.h.b16 %v50
  %v122 = vunpack.c.l.b16 %v51
  %v123 = vunpack.c.l.b16 %v52
  %v124 = vunpack.c.h.b16 %v52
  %v125 = vunpack.c.l.b16 %v53
  %v126 = vunpack.c.l.b16 %v54
  %v127 = vunpack.c.h.b16 %v54
  %v128 = vunpack.c.l.b16 %v55
  %v129 = vunpack.c.l.b16 %v56
  %v130 = vunpack.c.h.b16 %v56
  %v131 = vunpack.c.l.b16 %v57
  %v132 = vunpack.c.l.b16 %v58
  %v133 = vunpack.c.h.b16 %v58
  %v134 = vunpack.c.l.b16 %v59
  %v135 = vunpack.c.l.b16 %v60
  %v136 = vunpack.c.h.b16 %v60
  %v137 = vunpack.c.l.b16 %v61
  %v138 = vunpack.c.l.b16 %v62
  %v139 = vunpack.c.h.b16 %v62
  %v140 = vunpack.c.l.b16 %v63
  %v141 = vunpack.c.l.b16 %v64
  %v142 = vunpack.c.h.b16 %v64
  %v143 = vunpack.c.l.b16 %v65
  %v144 = vunpack.c.l.b16 %v66
  %v145 = vunpack.c.h.b16 %v66
  %v146 = vunpack.c.l.b16 %v67
  %v147 = vunpack.c.l.b16 %v68
  %v148 = vunpack.c.h.b16 %v68
  %v149 = vunpack.c.l.b16 %v69
  %v150 = vunpack.c.l.b16 %v70
  %v151 = vunpack.c.h.b16 %v70
  %v152 = vunpack.c.l.b16 %v71
  %v153 = vunpack.c.l.b16 %v72
  %v154 = vunpack.c.h.b16 %v72
  %v155 = vunpack.c.l.b16 %v73
  %v156 = vunpack.c.l.b16 %v74
  %v157 = vunpack.c.h.b16 %v74
  %v158 = vunpack.c.l.b16 %v75
  %v159 = vunpack.c.l.b16 %v76
  %v160 = vunpack.c.h.b16 %v76
  %v161 = vunpack.c.l.b16 %v77
  %v162 = vunpack.c.l.b16 %v78
  %v163 = vunpack.c.h.b16 %v78
  %v164 = vunpack.c.l.b16 %v79
  %v165 = vunpack.c.l.b16 %v80
  %v166 = vunpack.c.h.b16 %v80
  %v167 = vunpack.c.l.b16 %v81
  %v168 = vpack.c.b16 %v123, %v120
  %v169 = vpack.c.b16 %v124, %v121
  %v170 = vpack.c.b16 %v125, %v122
  %v171 = vpack.c.b16 %v129, %v126
  %v172 = vpack.c.b16 %v130, %v127
  %v173 = vpack.c.b16 %v131, %v128
  %v174 = vpack.c.b16 %v135, %v132
  %v175 = vpack.c.b16 %v136, %v133
  %v176 = vpack.c.b16 %v137, %v134
  %v177 = vpack.c.b16 %v141, %v138
  %v178 = vpack.c.b16 %v142, %v139
  %v179 = vpack.c.b16 %v143, %v140
  %v180 = vpack.c.b16 %v147, %v144
  %v181 = vpack.c.b16 %v148, %v145
  %v182 = vpack.c.b16 %v149, %v146
  %v183 = vpack.c.b16 %v153, %v150
  %v184 = vpack.c.b16 %v154, %v151
  %v185 = vpack.c.b16 %v155, %v152
  %v186 = vpack.c.b16 %v159, %v156
  %v187 = vpack.c.b16 %v160, %v157
  %v188 = vpack.c.b16 %v161, %v158
  %v189 = vpack.c.b16 %v165, %v162
  %v190 = vpack.c.b16 %v166, %v163
  %v191 = vpack.c.b16 %v167, %v164
  %216 = vmatprep.subr.bf16.mxu0 %v190
  %217 = vmatpush1.bf16.msra.mxu0 %v189
  %218 = vmatprep.subr.bf16.mxu0 %v187
  %219 = vmatpush1.bf16.msra.mxu0 %v186
  %220 = vmatprep.subr.bf16.mxu0 %v184
  %221 = vmatpush1.bf16.msra.mxu0 %v183
  %222 = vmatprep.subr.bf16.mxu0 %v181
  %223 = vmatpush1.bf16.msra.mxu0 %v180
  %224 = vmatprep.subr.bf16.mxu0 %v178
  %225 = vmatpush1.bf16.msra.mxu0 %v177
  %226 = vmatprep.subr.bf16.mxu0 %v175
  %227 = vmatpush1.bf16.msra.mxu0 %v174
  %228 = vmatprep.subr.bf16.mxu0 %v172
  %229 = vmatpush1.bf16.msra.mxu0 %v171
  %230 = vmatprep.subr.bf16.mxu0 %v169
  %231 = vmatpush1.bf16.msra.mxu0 %v168
  %232 = vmatprep.subr.bf16.mxu0 0
  %233 = vmatpush2.bf16.msra.mxu0 0
  %234 = vmatprep.subr.bf16.mxu0 0
  %235 = vmatpush2.bf16.msra.mxu0 0
  %236 = vmatprep.subr.bf16.mxu0 0
  %237 = vmatpush2.bf16.msra.mxu0 0
  %238 = vmatprep.subr.bf16.mxu0 0
  %239 = vmatpush2.bf16.msra.mxu0 0
  %240 = vmatprep.subr.bf16.mxu0 0
  %241 = vmatpush2.bf16.msra.mxu0 0
  %242 = vmatprep.subr.bf16.mxu0 0
  %243 = vmatpush2.bf16.msra.mxu0 0
  %244 = vmatprep.subr.bf16.mxu0 0
  %245 = vmatpush2.bf16.msra.mxu0 0
  %246 = vmatprep.subr.bf16.mxu0 0
  %247 = vmatpush2.bf16.msra.mxu0 0
  %248 = vmatprep.mubr.bf16.mxu0 0
  %249 = vmatmul.mubr.bf16.gmra.mxu0 %v86
  %v250 = vpop.f32.mrf.mxu0
  %v251 = vadd.f32 0.0, %v250
  %v252 = vpop.f32.mrf.mxu0
  %v253 = vadd.f32 0.0, %v252
  %v254 = vpop.f32.mrf.mxu0
  %v255 = vadd.f32 0.0, %v254
  %v256 = vpop.f32.mrf.mxu0
  %v257 = vadd.f32 0.0, %v256
  %258 = vdwg.mxu0
  %259 = vmatprep.subr.bf16.mxu0 0
  %260 = vmatpush1.bf16.msra.mxu0 %v191
  %261 = vmatprep.subr.bf16.mxu0 0
  %262 = vmatpush1.bf16.msra.mxu0 %v188
  %263 = vmatprep.subr.bf16.mxu0 0
  %264 = vmatpush1.bf16.msra.mxu0 %v185
  %265 = vmatprep.subr.bf16.mxu0 0
  %266 = vmatpush1.bf16.msra.mxu0 %v182
  %267 = vmatprep.subr.bf16.mxu0 0
  %268 = vmatpush1.bf16.msra.mxu0 %v179
  %269 = vmatprep.subr.bf16.mxu0 0
  %270 = vmatpush1.bf16.msra.mxu0 %v176
  %271 = vmatprep.subr.bf16.mxu0 0
  %272 = vmatpush1.bf16.msra.mxu0 %v173
  %273 = vmatprep.subr.bf16.mxu0 0
  %274 = vmatpush1.bf16.msra.mxu0 %v170
  %275 = vmatprep.subr.bf16.mxu0 0
  %276 = vmatpush2.bf16.msra.mxu0 0
  %277 = vmatprep.subr.bf16.mxu0 0
  %278 = vmatpush2.bf16.msra.mxu0 0
  %279 = vmatprep.subr.bf16.mxu0 0
  %280 = vmatpush2.bf16.msra.mxu0 0
  %281 = vmatprep.subr.bf16.mxu0 0
  %282 = vmatpush2.bf16.msra.mxu0 0
  %283 = vmatprep.subr.bf16.mxu0 0
  %284 = vmatpush2.bf16.msra.mxu0 0
  %285 = vmatprep.subr.bf16.mxu0 0
  %286 = vmatpush2.bf16.msra.mxu0 0
  %287 = vmatprep.subr.bf16.mxu0 0
  %288 = vmatpush2.bf16.msra.mxu0 0
  %289 = vmatprep.subr.bf16.mxu0 0
  %290 = vmatpush2.bf16.msra.mxu0 0
  %291 = vmatprep.mubr.bf16.mxu0 0
  %292 = vmatmul.mubr.bf16.gmra.mxu0 %v86
  %v293 = vpop.f32.mrf.mxu0
  %v294 = vadd.f32 0.0, %v293
  %v295 = vpop.f32.mrf.mxu0
  %v296 = vpop.f32.mrf.mxu0
  %v297 = vadd.f32 0.0, %v296
  %v298 = vpop.f32.mrf.mxu0
  %299 = vdwg.mxu0
  %v300 = vadd.f32 %v42, %v251
  %v301 = vadd.f32 %v43, %v253
  %v302 = vadd.f32 %v44, %v294
  %v303 = vadd.f32 %v45, %v255
  %v304 = vadd.f32 %v46, %v257
  %v305 = vadd.f32 %v47, %v297
  %306 = vst [vmem:[#allocation2] sm:$0xff] %v300
  %307 = vst [vmem:[#allocation2 + $0x8] sm:$0xff] %v301
  %308 = vst [vmem:[#allocation2 + $0x10] sm:$0xff] %v302
  %309 = vst [vmem:[#allocation2 + $0x18] sm:$0xff] %v303
  %310 = vst [vmem:[#allocation2 + $0x20] sm:$0xff] %v304
  %311 = vst [vmem:[#allocation2 + $0x28] sm:$0xff] %v305
  // Predicated region
  $region18: #{bert_seq_noft_forward.11} parent=0 // pred_check
    %p312 = pneg %p15
  $region19: #{bert_seq_noft_forward.11} parent=0 // pred_check_branch
    %314 = sbr.rel (%p312) target = $region21
  $region20: #{bert_seq_noft_forward.11} parent=0 // pred_region
    %v315 = vld [vmem:[#allocation2] sm:$0xff]
    %v316 = vld [vmem:[#allocation2 + $0x8] sm:$0xff]
    %v317 = vld [vmem:[#allocation2 + $0x10] sm:$0xff]
    %v318 = vld [vmem:[#allocation2 + $0x18] sm:$0xff]
    %v319 = vld [vmem:[#allocation2 + $0x20] sm:$0xff]
    %v320 = vld [vmem:[#allocation2 + $0x28] sm:$0xff]
    %v321 = vpack.c.bf16 %v318, %v315
    %v322 = vpack.c.bf16 %v319, %v316
    %v323 = vpack.c.bf16 %v320, %v317
    %v327 = vunpack.c.l.b16 %v321
    %v328 = vunpack.c.l.b16 %v322
    %v329 = vunpack.c.l.b16 %v323
    %v330 = vunpack.c.h.b16 %v321
    %v331 = vunpack.c.h.b16 %v322
    %v332 = vunpack.c.h.b16 %v323
    %v333 = vpack.c.b16 %v328, %v327
    %v334 = vpack.c.b16 %v329, %v329
    %v335 = vpack.c.b16 %v331, %v330
    %v336 = vpack.c.b16 %v332, %v332
    %341 = vst [vmem:[%s3] sm:$0xff] %v333
    %342 = vst [vmem:[%s3 + $0x8] sm:$0xf] %v334
    %343 = vst [vmem:[%s3 + $0xc] sm:$0xff] %v335
    %344 = vst [vmem:[%s3 + $0x14] sm:$0xf] %v336
  $region21: #{bert_seq_noft_forward.11} parent=0 // pred_fallthru
    _
  // Predicated region
  $region22: #{bert_seq_noft_forward.11} parent=0 // pred_check
    _
  $region23: #{bert_seq_noft_forward.11} parent=0 // pred_check_branch
    %346 = sbr.rel (0) target = $region25
  $region24: #{bert_seq_noft_forward.11} parent=0 // pred_region
    _
  $region25: #{bert_seq_noft_forward.11} parent=0 // pred_fallthru
    _
  // Predicated region
  $region26: #{bert_seq_noft_forward.11} parent=0 // pred_check
    _
  $region27: #{bert_seq_noft_forward.11} parent=0 // pred_check_branch
    %348 = sbr.rel (0) target = $region29
  $region28: #{bert_seq_noft_forward.11} parent=0 // pred_region
    _
  $region29: #{bert_seq_noft_forward.11} parent=0 // pred_fallthru
    _

// kernel: bert_seq_noft_forward.12
$region0: #{bert_seq_noft_forward.12}
  #allocation0 [shape = 'u32[]', space=smem, size = 0x4, offset = 0x4, fixed_abs, tag = 'smem constant byte address 0x4 - core index']
  #allocation1 [shape = 'u32[144,128]{1,0:T(1,128)}', space=vmem, size = 0x12000, scoped, tag = 'internal scratch']
  %s0 = inlined_call_operand.vmem [shape: bf16[2,8,384], index: 0, kind: input, shape index: {}, may-alias: {0,1,2}]
  %s1 = inlined_call_operand.vmem [shape: bf16[2,8,384], index: 1, kind: input, shape index: {}, may-alias: {0,1,2}]
  %s2 = inlined_call_operand.vmem [shape: bf16[2,8,384], index: 2, kind: input, shape index: {}, may-alias: {0,1,2}]
  %s3 = inlined_call_operand.vmem [shape: bf16[2,8,128], index: 3, kind: output, shape index: {}]
  %s4 = sld [smem:[#allocation0]]
  $region45: #{bert_seq_noft_forward.12} parent=0
    _
  %s6 = ssub.s32 1, %s4
  %s7 = scalar_select 0, %s6, %s4
  loop: start=0, step=1, limit=4
  $region2: #{bert_seq_noft_forward.12} parent=0 // loop_pre_header
    _
  $region3: #{bert_seq_noft_forward.12} parent=0 // loop_header
    %s9 = sphi 0, %s13
    %p10 = scmp.ge.s32.totalorder %s9, 4
    %s16 = sphi 0, %s28
    %s17 = sphi 0, %s24
    %s18 = sphi 0, %s16
    %s19 = sphi 0, %s17
    %s20 = sphi 0, %s18
    %s21 = sphi 0, %s19
    %s33 = sphi 0, %s35
    %s36 = sphi 0, %s33
    %s37 = sphi 0, %s36
    %s53 = sphi 0, %s37
    %s63 = sphi 0, %s65
    %s66 = sphi 0, %s63
    %s67 = sphi 0, %s66
    %s83 = sphi 0, %s67
    %s93 = sphi 0, %s95
    %s96 = sphi 0, %s93
    %s97 = sphi 0, %s96
    %s113 = sphi 0, %s97
    %s121 = sphi 0, %s123
    %s124 = sphi 0, %s121
    %s125 = sphi 0, %s124
    %s141 = sphi 0, %s125
  $region4: #{bert_seq_noft_forward.12} parent=0 // loop_header_branch
    %12 = sbr.rel (%p10) target = $region8
  $region5: #{bert_seq_noft_forward.12} parent=0 // loop_body
    %s14 = ssub.s32 %s9, 1
    %s15 = ssub.s32 %s9, 2
    %s22 = sadd.s32 1, %s17
    %p23 = scmp.ge.s32.totalorder %s22, 1
    %s24 = scalar_select %p23, 0, %s22
    %s25 = sadd.s32 1, %s16
    %s26 = scalar_select %p23, %s25, %s16
    %p27 = scmp.ge.s32.totalorder %s26, 2
    %s28 = scalar_select %p27, 0, %s26
    %s29 = ssub.s32 %s16, %s28
    %s30 = ssub.s32 %s17, %s24
    %s31 = sor.u32 %s29, %s30
    %p32 = scmp.eq.s32.totalorder %s31, 0
    %s34 = sadd.s32 %s33, 1
    %s35 = scalar_select %p32, %s33, %s34
    %p38 = pneg %p32
    %p39 = scmp.eq.s32.totalorder %s9, 1
    %p40 = por %p38, %p39
    %p41 = scmp.ne.s32.totalorder %s33, %s36
    %p42 = scmp.eq.s32.totalorder %s9, 0
    %p43 = por %p41, %p42
    %p44 = scmp.ne.s32.totalorder %s33, %s36
    %p45 = scmp.eq.s32.totalorder %s14, 1
    %p46 = por %p44, %p45
    %p47 = scmp.ne.s32.totalorder %s36, %s37
    %p48 = scmp.eq.s32.totalorder %s14, 0
    %p49 = por %p47, %p48
    %p50 = scmp.ne.s32.totalorder %s36, %s37
    %p51 = scmp.eq.s32.totalorder %s15, 1
    %p52 = por %p50, %p51
    %p54 = scmp.ne.s32.totalorder %s37, %s53
    %p55 = scmp.eq.s32.totalorder %s15, 0
    %p56 = por %p54, %p55
    %s57 = sadd.s32 %s17, 1
    %s58 = sadd.s32 %s24, 1
    %s59 = ssub.s32 %s16, %s28
    %s60 = ssub.s32 %s57, %s58
    %s61 = sor.u32 %s59, %s60
    %p62 = scmp.eq.s32.totalorder %s61, 0
    %s64 = sadd.s32 %s63, 1
    %s65 = scalar_select %p62, %s63, %s64
    %p68 = pneg %p62
    %p69 = scmp.eq.s32.totalorder %s9, 1
    %p70 = por %p68, %p69
    %p71 = scmp.ne.s32.totalorder %s63, %s66
    %p72 = scmp.eq.s32.totalorder %s9, 0
    %p73 = por %p71, %p72
    %p74 = scmp.ne.s32.totalorder %s63, %s66
    %p75 = scmp.eq.s32.totalorder %s14, 1
    %p76 = por %p74, %p75
    %p77 = scmp.ne.s32.totalorder %s66, %s67
    %p78 = scmp.eq.s32.totalorder %s14, 0
    %p79 = por %p77, %p78
    %p80 = scmp.ne.s32.totalorder %s66, %s67
    %p81 = scmp.eq.s32.totalorder %s15, 1
    %p82 = por %p80, %p81
    %p84 = scmp.ne.s32.totalorder %s67, %s83
    %p85 = scmp.eq.s32.totalorder %s15, 0
    %p86 = por %p84, %p85
    %s87 = sadd.s32 %s17, 2
    %s88 = sadd.s32 %s24, 2
    %s89 = ssub.s32 %s16, %s28
    %s90 = ssub.s32 %s87, %s88
    %s91 = sor.u32 %s89, %s90
    %p92 = scmp.eq.s32.totalorder %s91, 0
    %s94 = sadd.s32 %s93, 1
    %s95 = scalar_select %p92, %s93, %s94
    %p98 = pneg %p92
    %p99 = scmp.eq.s32.totalorder %s9, 1
    %p100 = por %p98, %p99
    %p101 = scmp.ne.s32.totalorder %s93, %s96
    %p102 = scmp.eq.s32.totalorder %s9, 0
    %p103 = por %p101, %p102
    %p104 = scmp.ne.s32.totalorder %s93, %s96
    %p105 = scmp.eq.s32.totalorder %s14, 1
    %p106 = por %p104, %p105
    %p107 = scmp.ne.s32.totalorder %s96, %s97
    %p108 = scmp.eq.s32.totalorder %s14, 0
    %p109 = por %p107, %p108
    %p110 = scmp.ne.s32.totalorder %s96, %s97
    %p111 = scmp.eq.s32.totalorder %s15, 1
    %p112 = por %p110, %p111
    %p114 = scmp.ne.s32.totalorder %s97, %s113
    %p115 = scmp.eq.s32.totalorder %s15, 0
    %p116 = por %p114, %p115
    %s117 = ssub.s32 %s16, %s28
    %s118 = ssub.s32 %s17, %s24
    %s119 = sor.u32 %s117, %s118
    %p120 = scmp.eq.s32.totalorder %s119, 0
    %s122 = sadd.s32 %s121, 1
    %s123 = scalar_select %p120, %s121, %s122
    %p126 = pneg %p120
    %p127 = scmp.eq.s32.totalorder %s9, 1
    %p128 = por %p126, %p127
    %p129 = scmp.ne.s32.totalorder %s121, %s124
    %p130 = scmp.eq.s32.totalorder %s9, 0
    %p131 = por %p129, %p130
    %p132 = scmp.ne.s32.totalorder %s121, %s124
    %p133 = scmp.eq.s32.totalorder %s14, 1
    %p134 = por %p132, %p133
    %p135 = scmp.ne.s32.totalorder %s124, %s125
    %p136 = scmp.eq.s32.totalorder %s14, 0
    %p137 = por %p135, %p136
    %p138 = scmp.ne.s32.totalorder %s124, %s125
    %p139 = scmp.eq.s32.totalorder %s15, 1
    %p140 = por %p138, %p139
    %p142 = scmp.ne.s32.totalorder %s125, %s141
    %p143 = scmp.eq.s32.totalorder %s15, 0
    %p144 = por %p142, %p143
    %p145 = scmp.le.s32.totalorder 1, %s9
    %p146 = scmp.lt.s32.totalorder %s9, 3
    %p147 = pnand %p145, %p146
    %p148 = pneg %p147
    // Predicated region
    $region9: #{bert_seq_noft_forward.12} parent=5 // pred_check
      _
    $region10: #{bert_seq_noft_forward.12} parent=5 // pred_check_branch
      %150 = sbr.rel (%p147) target = $region12
    $region11: #{bert_seq_noft_forward.12} parent=5 // pred_region
      %s151 = ssub.s32 %s9, 1
    $region12: #{bert_seq_noft_forward.12} parent=5 // pred_fallthru
      _
    %p152 = scmp.lt.s32.totalorder %s9, 2
    // Predicated region
    $region13: #{bert_seq_noft_forward.12} parent=5 // pred_check
      %p153 = pneg %p152
    $region14: #{bert_seq_noft_forward.12} parent=5 // pred_check_branch
      %155 = sbr.rel (%p153) target = $region16
    $region15: #{bert_seq_noft_forward.12} parent=5 // pred_region
      // Predicated region
      $region17: #{bert_seq_noft_forward.12} parent=15 // pred_check
        %p156 = pneg %p43
      $region18: #{bert_seq_noft_forward.12} parent=15 // pred_check_branch
        %158 = sbr.rel (%p156) target = $region20
      $region19: #{bert_seq_noft_forward.12} parent=15 // pred_region
        %p159 = scmp.lt.s32.totalorder %s16, 1
        %s160 = scalar_select %p159, %s16, 1
        %p161 = scmp.lt.s32.totalorder %s17, 2
        %s162 = scalar_select %p161, %s17, 2
        %s163 = smul.addr %s160, 3
        %s164 = sadd.s32 %s162, %s163
        %s165 = smul.addr %s164, 4
        %s166 = scalar_lea.vmem %s0, %s165
      $region20: #{bert_seq_noft_forward.12} parent=15 // pred_fallthru
        _
      // Predicated region
      $region21: #{bert_seq_noft_forward.12} parent=15 // pred_check
        %p167 = pneg %p73
      $region22: #{bert_seq_noft_forward.12} parent=15 // pred_check_branch
        %169 = sbr.rel (%p167) target = $region24
      $region23: #{bert_seq_noft_forward.12} parent=15 // pred_region
        %s170 = sadd.s32 %s17, 1
        %p171 = scmp.lt.s32.totalorder %s16, 1
        %s172 = scalar_select %p171, %s16, 1
        %p173 = scmp.lt.s32.totalorder %s170, 2
        %s174 = scalar_select %p173, %s170, 2
        %s175 = smul.addr %s172, 3
        %s176 = sadd.s32 %s174, %s175
        %s177 = smul.addr %s176, 4
        %s178 = scalar_lea.vmem %s1, %s177
        %s179 = sadd.s32 %s17, 1
      $region24: #{bert_seq_noft_forward.12} parent=15 // pred_fallthru
        _
      // Predicated region
      $region25: #{bert_seq_noft_forward.12} parent=15 // pred_check
        %p180 = pneg %p103
      $region26: #{bert_seq_noft_forward.12} parent=15 // pred_check_branch
        %182 = sbr.rel (%p180) target = $region28
      $region27: #{bert_seq_noft_forward.12} parent=15 // pred_region
        %s183 = sadd.s32 %s17, 2
        %p184 = scmp.lt.s32.totalorder %s16, 1
        %s185 = scalar_select %p184, %s16, 1
        %p186 = scmp.lt.s32.totalorder %s183, 2
        %s187 = scalar_select %p186, %s183, 2
        %s188 = smul.addr %s185, 3
        %s189 = sadd.s32 %s187, %s188
        %s190 = smul.addr %s189, 4
        %s191 = scalar_lea.vmem %s2, %s190
        %s192 = sadd.s32 %s17, 2
      $region28: #{bert_seq_noft_forward.12} parent=15 // pred_fallthru
        _
    $region16: #{bert_seq_noft_forward.12} parent=5 // pred_fallthru
      _
    %p193 = scmp.le.s32.totalorder 1, %s9
    %p194 = scmp.lt.s32.totalorder %s9, 3
    %p195 = pnand %p193, %p194
    %p196 = pneg %p195
    // Predicated region
    $region29: #{bert_seq_noft_forward.12} parent=5 // pred_check
      _
    $region30: #{bert_seq_noft_forward.12} parent=5 // pred_check_branch
      %198 = sbr.rel (%p195) target = $region32
    $region31: #{bert_seq_noft_forward.12} parent=5 // pred_region
      %s199 = ssub.s32 %s9, 1
      %p200 = scmp.lt.s32.totalorder %s18, 1
      %s201 = scalar_select %p200, %s18, 1
      %p202 = scmp.lt.s32.totalorder %s19, 2
      %s203 = scalar_select %p202, %s19, 2
      %s204 = smul.addr %s201, 3
      %s205 = sadd.s32 %s203, %s204
      %s206 = smul.addr %s205, 4
      %s207 = scalar_lea.vmem %s0, %s206
      %p208 = pneg %p49
      %p209 = pneg %p46
      %s210 = sadd.s32 %s19, 1
      %p211 = scmp.lt.s32.totalorder %s18, 1
      %s212 = scalar_select %p211, %s18, 1
      %p213 = scmp.lt.s32.totalorder %s210, 2
      %s214 = scalar_select %p213, %s210, 2
      %s215 = smul.addr %s212, 3
      %s216 = sadd.s32 %s214, %s215
      %s217 = smul.addr %s216, 4
      %s218 = scalar_lea.vmem %s1, %s217
      %p219 = pneg %p79
      %p220 = pneg %p76
      %s221 = sadd.s32 %s19, 2
      %p222 = scmp.lt.s32.totalorder %s18, 1
      %s223 = scalar_select %p222, %s18, 1
      %p224 = scmp.lt.s32.totalorder %s221, 2
      %s225 = scalar_select %p224, %s221, 2
      %s226 = smul.addr %s223, 3
      %s227 = sadd.s32 %s225, %s226
      %s228 = smul.addr %s227, 4
      %s229 = scalar_lea.vmem %s2, %s228
      %p230 = pneg %p109
      %p231 = pneg %p106
      %p232 = pneg %p137
      %p233 = pneg %p134
      %p234 = scmp.lt.s32.totalorder %s18, 1
      %s235 = scalar_select %p234, %s18, 1
      %p236 = scmp.lt.s32.totalorder %s19, 0
      %s237 = scalar_select %p236, %s19, 0
      %s238 = sadd.s32 %s237, %s235
      %s239 = smul.addr %s238, 4
      %s240 = scalar_lea.vmem %s3, %s239
      %p241 = scmp.lt.s32.totalorder %s18, 1
      %s242 = scalar_select %p241, %s18, 1
      %p243 = scmp.lt.s32.totalorder %s19, 2
      %s244 = scalar_select %p243, %s19, 2
      %s245 = smul.addr %s242, 3
      %s246 = sadd.s32 %s244, %s245
      %s247 = smul.addr %s246, 4
      %s248 = scalar_lea.vmem %s0, %s247
      %s249 = sadd.s32 %s19, 1
      %p250 = scmp.lt.s32.totalorder %s18, 1
      %s251 = scalar_select %p250, %s18, 1
      %p252 = scmp.lt.s32.totalorder %s249, 2
      %s253 = scalar_select %p252, %s249, 2
      %s254 = smul.addr %s251, 3
      %s255 = sadd.s32 %s253, %s254
      %s256 = smul.addr %s255, 4
      %s257 = scalar_lea.vmem %s1, %s256
      %s258 = sadd.s32 %s19, 1
      %s259 = sadd.s32 %s19, 2
      %p260 = scmp.lt.s32.totalorder %s18, 1
      %s261 = scalar_select %p260, %s18, 1
      %p262 = scmp.lt.s32.totalorder %s259, 2
      %s263 = scalar_select %p262, %s259, 2
      %s264 = smul.addr %s261, 3
      %s265 = sadd.s32 %s263, %s264
      %s266 = smul.addr %s265, 4
      %s267 = scalar_lea.vmem %s2, %s266
      %s268 = sadd.s32 %s19, 2
      %p269 = scmp.lt.s32.totalorder %s18, 1
      %s270 = scalar_select %p269, %s18, 1
      %p271 = scmp.lt.s32.totalorder %s19, 0
      %s272 = scalar_select %p271, %s19, 0
      %s273 = sadd.s32 %s272, %s270
      %s274 = smul.addr %s273, 4
      %s275 = scalar_lea.vmem %s3, %s274
      %v277 = vld [vmem:[%s248] sm:$0xf]
      %v278 = vld [vmem:[%s257] sm:$0xf]
      %v279 = vld [vmem:[%s267] sm:$0xf]
      %vm280 = vcmask 261120
      %v282 = vsel %vm280, %v277, 0
      %v285 = vsel %vm280, %v278, 0
      %287 = vmatprep.subr.bf16.mxu0 0
      %288 = vmatpush1.bf16.xpose.msra.mxu0 0
      %289 = vmatprep.subr.bf16.mxu0 0
      %290 = vmatpush1.bf16.xpose.msra.mxu0 0
      %291 = vmatprep.subr.bf16.mxu0 0
      %292 = vmatpush1.bf16.xpose.msra.mxu0 0
      %293 = vmatprep.subr.bf16.mxu0 0
      %294 = vmatpush1.bf16.xpose.msra.mxu0 0
      %295 = vmatprep.subr.bf16.mxu0 0
      %296 = vmatpush1.bf16.xpose.msra.mxu0 0
      %297 = vmatprep.subr.bf16.mxu0 0
      %298 = vmatpush1.bf16.xpose.msra.mxu0 0
      %299 = vmatprep.subr.bf16.mxu0 0
      %300 = vmatpush1.bf16.xpose.msra.mxu0 0
      %301 = vmatprep.subr.bf16.mxu0 0
      %302 = vmatpush1.bf16.xpose.msra.mxu0 %v285
      %303 = vmatprep.subr.bf16.mxu0 0
      %304 = vmatpush2.bf16.xpose.msra.mxu0 0
      %305 = vmatprep.subr.bf16.mxu0 0
      %306 = vmatpush2.bf16.xpose.msra.mxu0 0
      %307 = vmatprep.subr.bf16.mxu0 0
      %308 = vmatpush2.bf16.xpose.msra.mxu0 0
      %309 = vmatprep.subr.bf16.mxu0 0
      %310 = vmatpush2.bf16.xpose.msra.mxu0 0
      %311 = vmatprep.subr.bf16.mxu0 0
      %312 = vmatpush2.bf16.xpose.msra.mxu0 0
      %313 = vmatprep.subr.bf16.mxu0 0
      %314 = vmatpush2.bf16.xpose.msra.mxu0 0
      %315 = vmatprep.subr.bf16.mxu0 0
      %316 = vmatpush2.bf16.xpose.msra.mxu0 0
      %317 = vmatprep.subr.bf16.mxu0 0
      %318 = vmatpush2.bf16.xpose.msra.mxu0 0
      %319 = vmatprep.mubr.bf16.mxu0 0
      %320 = vmatmul.mubr.bf16.gmra.mxu0 %v282
      %v321 = vpop.f32.mrf.mxu0
      %v322 = vadd.f32 0.0, %v321
      %v323 = vpop.f32.mrf.mxu0
      %v324 = vpop.f32.mrf.mxu0
      %v325 = vpop.f32.mrf.mxu0
      %326 = vdwg.mxu0
      %v327 = vmul.f32 %v322, 0.17677669
      %vm328 = vcmask 64512
      %v329 = vsel %vm328, %v327, -inf
      %330 = vmax.xlane.f32.xlu0 %v329
      %v331 = vpop.xlane.xlu0 %330
      %v332 = vsub.f32 %v327, %v331
      %v333 = vmul.f32 %v332, 1.442695
      %v334 = vpow.pop %v333
      %v335 = vsel %vm328, %v334, 0.0
      %336 = vadd.xlane.f32.xlu0 %v335
      %v337 = vpop.xlane.xlu0 %336
      %v338 = vpack.c.bf16 %v334, %v334
      %v340 = vsel %vm328, %v338, 0
      %vm342 = vcmask 1043456
      %v344 = vsel %vm342, %v279, 0
      %346 = vmatprep.subr.bf16.mxu0 0
      %347 = vmatpush1.bf16.msra.mxu0 0
      %348 = vmatprep.subr.bf16.mxu0 0
      %349 = vmatpush1.bf16.msra.mxu0 0
      %350 = vmatprep.subr.bf16.mxu0 0
      %351 = vmatpush1.bf16.msra.mxu0 0
      %352 = vmatprep.subr.bf16.mxu0 0
      %353 = vmatpush1.bf16.msra.mxu0 0
      %354 = vmatprep.subr.bf16.mxu0 0
      %355 = vmatpush1.bf16.msra.mxu0 0
      %356 = vmatprep.subr.bf16.mxu0 0
      %357 = vmatpush1.bf16.msra.mxu0 0
      %358 = vmatprep.subr.bf16.mxu0 0
      %359 = vmatpush1.bf16.msra.mxu0 0
      %360 = vmatprep.subr.bf16.mxu0 0
      %361 = vmatpush1.bf16.msra.mxu0 %v344
      %362 = vmatprep.subr.bf16.mxu0 0
      %363 = vmatpush2.bf16.msra.mxu0 0
      %364 = vmatprep.subr.bf16.mxu0 0
      %365 = vmatpush2.bf16.msra.mxu0 0
      %366 = vmatprep.subr.bf16.mxu0 0
      %367 = vmatpush2.bf16.msra.mxu0 0
      %368 = vmatprep.subr.bf16.mxu0 0
      %369 = vmatpush2.bf16.msra.mxu0 0
      %370 = vmatprep.subr.bf16.mxu0 0
      %371 = vmatpush2.bf16.msra.mxu0 0
      %372 = vmatprep.subr.bf16.mxu0 0
      %373 = vmatpush2.bf16.msra.mxu0 0
      %374 = vmatprep.subr.bf16.mxu0 0
      %375 = vmatpush2.bf16.msra.mxu0 0
      %376 = vmatprep.subr.bf16.mxu0 0
      %377 = vmatpush2.bf16.msra.mxu0 0
      %378 = vmatprep.mubr.bf16.mxu0 0
      %379 = vmatmul.mubr.bf16.gmra.mxu0 %v340
      %v380 = vpop.f32.mrf.mxu0
      %v381 = vadd.f32 0.0, %v380
      %v382 = vpop.f32.mrf.mxu0
      %v383 = vpop.f32.mrf.mxu0
      %v384 = vpop.f32.mrf.mxu0
      %385 = vdwg.mxu0
      %v386 = vrcp.pop %v337
      %v387 = vmul.f32 %v381, %v386
      %v388 = vpack.c.bf16 %v387, %v387
      %v390 = vunpack.c.l.b16 %v277
      %v391 = vpack.c.b16 %v390, %v390
      %392 = vrot.lane.b32.xlu0 %v391, 96
      %v393 = vpop.permute.xlu0 %392
      %v395 = vunpack.c.l.b16 %v278
      %v396 = vpack.c.b16 %v395, %v395
      %397 = vrot.lane.b32.xlu0 %v396, 96
      %v398 = vpop.permute.xlu0 %397
      %v400 = vsel %vm280, %v393, 0
      %v403 = vsel %vm280, %v398, 0
      %405 = vmatprep.subr.bf16.mxu0 0
      %406 = vmatpush1.bf16.xpose.msra.mxu0 0
      %407 = vmatprep.subr.bf16.mxu0 0
      %408 = vmatpush1.bf16.xpose.msra.mxu0 0
      %409 = vmatprep.subr.bf16.mxu0 0
      %410 = vmatpush1.bf16.xpose.msra.mxu0 0
      %411 = vmatprep.subr.bf16.mxu0 0
      %412 = vmatpush1.bf16.xpose.msra.mxu0 0
      %413 = vmatprep.subr.bf16.mxu0 0
      %414 = vmatpush1.bf16.xpose.msra.mxu0 0
      %415 = vmatprep.subr.bf16.mxu0 0
      %416 = vmatpush1.bf16.xpose.msra.mxu0 0
      %417 = vmatprep.subr.bf16.mxu0 0
      %418 = vmatpush1.bf16.xpose.msra.mxu0 0
      %419 = vmatprep.subr.bf16.mxu0 0
      %420 = vmatpush1.bf16.xpose.msra.mxu0 %v403
      %421 = vmatprep.subr.bf16.mxu0 0
      %422 = vmatpush2.bf16.xpose.msra.mxu0 0
      %423 = vmatprep.subr.bf16.mxu0 0
      %424 = vmatpush2.bf16.xpose.msra.mxu0 0
      %425 = vmatprep.subr.bf16.mxu0 0
      %426 = vmatpush2.bf16.xpose.msra.mxu0 0
      %427 = vmatprep.subr.bf16.mxu0 0
      %428 = vmatpush2.bf16.xpose.msra.mxu0 0
      %429 = vmatprep.subr.bf16.mxu0 0
      %430 = vmatpush2.bf16.xpose.msra.mxu0 0
      %431 = vmatprep.subr.bf16.mxu0 0
      %432 = vmatpush2.bf16.xpose.msra.mxu0 0
      %433 = vmatprep.subr.bf16.mxu0 0
      %434 = vmatpush2.bf16.xpose.msra.mxu0 0
      %435 = vmatprep.subr.bf16.mxu0 0
      %436 = vmatpush2.bf16.xpose.msra.mxu0 0
      %437 = vmatprep.mubr.bf16.mxu0 0
      %438 = vmatmul.mubr.bf16.gmra.mxu0 %v400
      %v439 = vpop.f32.mrf.mxu0
      %v440 = vadd.f32 0.0, %v439
      %v441 = vpop.f32.mrf.mxu0
      %v442 = vpop.f32.mrf.mxu0
      %v443 = vpop.f32.mrf.mxu0
      %444 = vdwg.mxu0
      %v445 = vmul.f32 %v440, 0.17677669
      %v446 = vsel %vm328, %v445, -inf
      %447 = vmax.xlane.f32.xlu0 %v446
      %v448 = vpop.xlane.xlu0 %447
      %v449 = vsub.f32 %v445, %v448
      %v450 = vmul.f32 %v449, 1.442695
      %v451 = vpow.pop %v450
      %v452 = vsel %vm328, %v451, 0.0
      %453 = vadd.xlane.f32.xlu0 %v452
      %v454 = vpop.xlane.xlu0 %453
      %v455 = vpack.c.bf16 %v451, %v451
      %v457 = vunpack.c.l.b16 %v279
      %v458 = vpack.c.b16 %v457, %v457
      %459 = vrot.lane.b32.xlu0 %v458, 96
      %v460 = vpop.permute.xlu0 %459
      %v462 = vsel %vm328, %v455, 0
      %v465 = vsel %vm342, %v460, 0
      %467 = vmatprep.subr.bf16.mxu0 0
      %468 = vmatpush1.bf16.msra.mxu0 0
      %469 = vmatprep.subr.bf16.mxu0 0
      %470 = vmatpush1.bf16.msra.mxu0 0
      %471 = vmatprep.subr.bf16.mxu0 0
      %472 = vmatpush1.bf16.msra.mxu0 0
      %473 = vmatprep.subr.bf16.mxu0 0
      %474 = vmatpush1.bf16.msra.mxu0 0
      %475 = vmatprep.subr.bf16.mxu0 0
      %476 = vmatpush1.bf16.msra.mxu0 0
      %477 = vmatprep.subr.bf16.mxu0 0
      %478 = vmatpush1.bf16.msra.mxu0 0
      %479 = vmatprep.subr.bf16.mxu0 0
      %480 = vmatpush1.bf16.msra.mxu0 0
      %481 = vmatprep.subr.bf16.mxu0 0
      %482 = vmatpush1.bf16.msra.mxu0 %v465
      %483 = vmatprep.subr.bf16.mxu0 0
      %484 = vmatpush2.bf16.msra.mxu0 0
      %485 = vmatprep.subr.bf16.mxu0 0
      %486 = vmatpush2.bf16.msra.mxu0 0
      %487 = vmatprep.subr.bf16.mxu0 0
      %488 = vmatpush2.bf16.msra.mxu0 0
      %489 = vmatprep.subr.bf16.mxu0 0
      %490 = vmatpush2.bf16.msra.mxu0 0
      %491 = vmatprep.subr.bf16.mxu0 0
      %492 = vmatpush2.bf16.msra.mxu0 0
      %493 = vmatprep.subr.bf16.mxu0 0
      %494 = vmatpush2.bf16.msra.mxu0 0
      %495 = vmatprep.subr.bf16.mxu0 0
      %496 = vmatpush2.bf16.msra.mxu0 0
      %497 = vmatprep.subr.bf16.mxu0 0
      %498 = vmatpush2.bf16.msra.mxu0 0
      %499 = vmatprep.mubr.bf16.mxu0 0
      %500 = vmatmul.mubr.bf16.gmra.mxu0 %v462
      %v501 = vpop.f32.mrf.mxu0
      %v502 = vadd.f32 0.0, %v501
      %v503 = vpop.f32.mrf.mxu0
      %v504 = vpop.f32.mrf.mxu0
      %v505 = vpop.f32.mrf.mxu0
      %506 = vdwg.mxu0
      %v507 = vrcp.pop %v454
      %v508 = vmul.f32 %v502, %v507
      %v509 = vpack.c.bf16 %v508, %v508
      %510 = vrot.lane.b32.xlu0 %v391, 64
      %v511 = vpop.permute.xlu0 %510
      %512 = vrot.lane.b32.xlu0 %v396, 64
      %v513 = vpop.permute.xlu0 %512
      %v515 = vsel %vm280, %v511, 0
      %v518 = vsel %vm280, %v513, 0
      %520 = vmatprep.subr.bf16.mxu0 0
      %521 = vmatpush1.bf16.xpose.msra.mxu0 0
      %522 = vmatprep.subr.bf16.mxu0 0
      %523 = vmatpush1.bf16.xpose.msra.mxu0 0
      %524 = vmatprep.subr.bf16.mxu0 0
      %525 = vmatpush1.bf16.xpose.msra.mxu0 0
      %526 = vmatprep.subr.bf16.mxu0 0
      %527 = vmatpush1.bf16.xpose.msra.mxu0 0
      %528 = vmatprep.subr.bf16.mxu0 0
      %529 = vmatpush1.bf16.xpose.msra.mxu0 0
      %530 = vmatprep.subr.bf16.mxu0 0
      %531 = vmatpush1.bf16.xpose.msra.mxu0 0
      %532 = vmatprep.subr.bf16.mxu0 0
      %533 = vmatpush1.bf16.xpose.msra.mxu0 0
      %534 = vmatprep.subr.bf16.mxu0 0
      %535 = vmatpush1.bf16.xpose.msra.mxu0 %v518
      %536 = vmatprep.subr.bf16.mxu0 0
      %537 = vmatpush2.bf16.xpose.msra.mxu0 0
      %538 = vmatprep.subr.bf16.mxu0 0
      %539 = vmatpush2.bf16.xpose.msra.mxu0 0
      %540 = vmatprep.subr.bf16.mxu0 0
      %541 = vmatpush2.bf16.xpose.msra.mxu0 0
      %542 = vmatprep.subr.bf16.mxu0 0
      %543 = vmatpush2.bf16.xpose.msra.mxu0 0
      %544 = vmatprep.subr.bf16.mxu0 0
      %545 = vmatpush2.bf16.xpose.msra.mxu0 0
      %546 = vmatprep.subr.bf16.mxu0 0
      %547 = vmatpush2.bf16.xpose.msra.mxu0 0
      %548 = vmatprep.subr.bf16.mxu0 0
      %549 = vmatpush2.bf16.xpose.msra.mxu0 0
      %550 = vmatprep.subr.bf16.mxu0 0
      %551 = vmatpush2.bf16.xpose.msra.mxu0 0
      %552 = vmatprep.mubr.bf16.mxu0 0
      %553 = vmatmul.mubr.bf16.gmra.mxu0 %v515
      %v554 = vpop.f32.mrf.mxu0
      %v555 = vadd.f32 0.0, %v554
      %v556 = vpop.f32.mrf.mxu0
      %v557 = vpop.f32.mrf.mxu0
      %v558 = vpop.f32.mrf.mxu0
      %559 = vdwg.mxu0
      %v560 = vmul.f32 %v555, 0.17677669
      %v561 = vsel %vm328, %v560, -inf
      %562 = vmax.xlane.f32.xlu0 %v561
      %v563 = vpop.xlane.xlu0 %562
      %v564 = vsub.f32 %v560, %v563
      %v565 = vmul.f32 %v564, 1.442695
      %v566 = vpow.pop %v565
      %v567 = vsel %vm328, %v566, 0.0
      %568 = vadd.xlane.f32.xlu0 %v567
      %v569 = vpop.xlane.xlu0 %568
      %v570 = vpack.c.bf16 %v566, %v566
      %571 = vrot.lane.b32.xlu0 %v458, 64
      %v572 = vpop.permute.xlu0 %571
      %v574 = vsel %vm328, %v570, 0
      %v577 = vsel %vm342, %v572, 0
      %579 = vmatprep.subr.bf16.mxu0 0
      %580 = vmatpush1.bf16.msra.mxu0 0
      %581 = vmatprep.subr.bf16.mxu0 0
      %582 = vmatpush1.bf16.msra.mxu0 0
      %583 = vmatprep.subr.bf16.mxu0 0
      %584 = vmatpush1.bf16.msra.mxu0 0
      %585 = vmatprep.subr.bf16.mxu0 0
      %586 = vmatpush1.bf16.msra.mxu0 0
      %587 = vmatprep.subr.bf16.mxu0 0
      %588 = vmatpush1.bf16.msra.mxu0 0
      %589 = vmatprep.subr.bf16.mxu0 0
      %590 = vmatpush1.bf16.msra.mxu0 0
      %591 = vmatprep.subr.bf16.mxu0 0
      %592 = vmatpush1.bf16.msra.mxu0 0
      %593 = vmatprep.subr.bf16.mxu0 0
      %594 = vmatpush1.bf16.msra.mxu0 %v577
      %595 = vmatprep.subr.bf16.mxu0 0
      %596 = vmatpush2.bf16.msra.mxu0 0
      %597 = vmatprep.subr.bf16.mxu0 0
      %598 = vmatpush2.bf16.msra.mxu0 0
      %599 = vmatprep.subr.bf16.mxu0 0
      %600 = vmatpush2.bf16.msra.mxu0 0
      %601 = vmatprep.subr.bf16.mxu0 0
      %602 = vmatpush2.bf16.msra.mxu0 0
      %603 = vmatprep.subr.bf16.mxu0 0
      %604 = vmatpush2.bf16.msra.mxu0 0
      %605 = vmatprep.subr.bf16.mxu0 0
      %606 = vmatpush2.bf16.msra.mxu0 0
      %607 = vmatprep.subr.bf16.mxu0 0
      %608 = vmatpush2.bf16.msra.mxu0 0
      %609 = vmatprep.subr.bf16.mxu0 0
      %610 = vmatpush2.bf16.msra.mxu0 0
      %611 = vmatprep.mubr.bf16.mxu0 0
      %612 = vmatmul.mubr.bf16.gmra.mxu0 %v574
      %v613 = vpop.f32.mrf.mxu0
      %v614 = vadd.f32 0.0, %v613
      %v615 = vpop.f32.mrf.mxu0
      %v616 = vpop.f32.mrf.mxu0
      %v617 = vpop.f32.mrf.mxu0
      %618 = vdwg.mxu0
      %v619 = vrcp.pop %v569
      %v620 = vmul.f32 %v614, %v619
      %v621 = vpack.c.bf16 %v620, %v620
      %622 = vrot.lane.b32.xlu0 %v391, 32
      %v623 = vpop.permute.xlu0 %622
      %624 = vrot.lane.b32.xlu0 %v396, 32
      %v625 = vpop.permute.xlu0 %624
      %v627 = vsel %vm280, %v623, 0
      %v630 = vsel %vm280, %v625, 0
      %632 = vmatprep.subr.bf16.mxu0 0
      %633 = vmatpush1.bf16.xpose.msra.mxu0 0
      %634 = vmatprep.subr.bf16.mxu0 0
      %635 = vmatpush1.bf16.xpose.msra.mxu0 0
      %636 = vmatprep.subr.bf16.mxu0 0
      %637 = vmatpush1.bf16.xpose.msra.mxu0 0
      %638 = vmatprep.subr.bf16.mxu0 0
      %639 = vmatpush1.bf16.xpose.msra.mxu0 0
      %640 = vmatprep.subr.bf16.mxu0 0
      %641 = vmatpush1.bf16.xpose.msra.mxu0 0
      %642 = vmatprep.subr.bf16.mxu0 0
      %643 = vmatpush1.bf16.xpose.msra.mxu0 0
      %644 = vmatprep.subr.bf16.mxu0 0
      %645 = vmatpush1.bf16.xpose.msra.mxu0 0
      %646 = vmatprep.subr.bf16.mxu0 0
      %647 = vmatpush1.bf16.xpose.msra.mxu0 %v630
      %648 = vmatprep.subr.bf16.mxu0 0
      %649 = vmatpush2.bf16.xpose.msra.mxu0 0
      %650 = vmatprep.subr.bf16.mxu0 0
      %651 = vmatpush2.bf16.xpose.msra.mxu0 0
      %652 = vmatprep.subr.bf16.mxu0 0
      %653 = vmatpush2.bf16.xpose.msra.mxu0 0
      %654 = vmatprep.subr.bf16.mxu0 0
      %655 = vmatpush2.bf16.xpose.msra.mxu0 0
      %656 = vmatprep.subr.bf16.mxu0 0
      %657 = vmatpush2.bf16.xpose.msra.mxu0 0
      %658 = vmatprep.subr.bf16.mxu0 0
      %659 = vmatpush2.bf16.xpose.msra.mxu0 0
      %660 = vmatprep.subr.bf16.mxu0 0
      %661 = vmatpush2.bf16.xpose.msra.mxu0 0
      %662 = vmatprep.subr.bf16.mxu0 0
      %663 = vmatpush2.bf16.xpose.msra.mxu0 0
      %664 = vmatprep.mubr.bf16.mxu0 0
      %665 = vmatmul.mubr.bf16.gmra.mxu0 %v627
      %v666 = vpop.f32.mrf.mxu0
      %v667 = vadd.f32 0.0, %v666
      %v668 = vpop.f32.mrf.mxu0
      %v669 = vpop.f32.mrf.mxu0
      %v670 = vpop.f32.mrf.mxu0
      %671 = vdwg.mxu0
      %v672 = vmul.f32 %v667, 0.17677669
      %v673 = vsel %vm328, %v672, -inf
      %674 = vmax.xlane.f32.xlu0 %v673
      %v675 = vpop.xlane.xlu0 %674
      %v676 = vsub.f32 %v672, %v675
      %v677 = vmul.f32 %v676, 1.442695
      %v678 = vpow.pop %v677
      %v679 = vsel %vm328, %v678, 0.0
      %680 = vadd.xlane.f32.xlu0 %v679
      %v681 = vpop.xlane.xlu0 %680
      %v682 = vpack.c.bf16 %v678, %v678
      %683 = vrot.lane.b32.xlu0 %v458, 32
      %v684 = vpop.permute.xlu0 %683
      %v686 = vsel %vm328, %v682, 0
      %v689 = vsel %vm342, %v684, 0
      %691 = vmatprep.subr.bf16.mxu0 0
      %692 = vmatpush1.bf16.msra.mxu0 0
      %693 = vmatprep.subr.bf16.mxu0 0
      %694 = vmatpush1.bf16.msra.mxu0 0
      %695 = vmatprep.subr.bf16.mxu0 0
      %696 = vmatpush1.bf16.msra.mxu0 0
      %697 = vmatprep.subr.bf16.mxu0 0
      %698 = vmatpush1.bf16.msra.mxu0 0
      %699 = vmatprep.subr.bf16.mxu0 0
      %700 = vmatpush1.bf16.msra.mxu0 0
      %701 = vmatprep.subr.bf16.mxu0 0
      %702 = vmatpush1.bf16.msra.mxu0 0
      %703 = vmatprep.subr.bf16.mxu0 0
      %704 = vmatpush1.bf16.msra.mxu0 0
      %705 = vmatprep.subr.bf16.mxu0 0
      %706 = vmatpush1.bf16.msra.mxu0 %v689
      %707 = vmatprep.subr.bf16.mxu0 0
      %708 = vmatpush2.bf16.msra.mxu0 0
      %709 = vmatprep.subr.bf16.mxu0 0
      %710 = vmatpush2.bf16.msra.mxu0 0
      %711 = vmatprep.subr.bf16.mxu0 0
      %712 = vmatpush2.bf16.msra.mxu0 0
      %713 = vmatprep.subr.bf16.mxu0 0
      %714 = vmatpush2.bf16.msra.mxu0 0
      %715 = vmatprep.subr.bf16.mxu0 0
      %716 = vmatpush2.bf16.msra.mxu0 0
      %717 = vmatprep.subr.bf16.mxu0 0
      %718 = vmatpush2.bf16.msra.mxu0 0
      %719 = vmatprep.subr.bf16.mxu0 0
      %720 = vmatpush2.bf16.msra.mxu0 0
      %721 = vmatprep.subr.bf16.mxu0 0
      %722 = vmatpush2.bf16.msra.mxu0 0
      %723 = vmatprep.mubr.bf16.mxu0 0
      %724 = vmatmul.mubr.bf16.gmra.mxu0 %v686
      %v725 = vpop.f32.mrf.mxu0
      %v726 = vadd.f32 0.0, %v725
      %v727 = vpop.f32.mrf.mxu0
      %v728 = vpop.f32.mrf.mxu0
      %v729 = vpop.f32.mrf.mxu0
      %730 = vdwg.mxu0
      %v731 = vrcp.pop %v681
      %v732 = vmul.f32 %v726, %v731
      %v733 = vpack.c.bf16 %v732, %v732
      %735 = vrot.lane.b32.xlu0 %v509, 32
      %v736 = vpop.permute.xlu0 %735
      %738 = vrot.lane.b32.xlu0 %v621, 64
      %v739 = vpop.permute.xlu0 %738
      %741 = vrot.lane.b32.xlu0 %v733, 96
      %v742 = vpop.permute.xlu0 %741
      %v745 = vsel %vm280, %v388, %v736
      %vm746 = vcmask 523264
      %v748 = vsel %vm746, %v745, %v739
      %vm749 = vcmask 785408
      %v751 = vsel %vm749, %v748, %v742
      %753 = vst [vmem:[%s275] sm:$0xf] %v751
      %p754 = scmp.lt.s32.totalorder %s18, 1
      %s755 = scalar_select %p754, %s18, 1
      %p756 = scmp.lt.s32.totalorder %s19, 0
      %s757 = scalar_select %p756, %s19, 0
      %s758 = sadd.s32 %s757, %s755
      %s759 = smul.addr %s758, 4
      %s760 = scalar_lea.vmem %s3, %s759
      // Predicated region
      $region33: #{bert_seq_noft_forward.12} parent=31 // pred_check
        %p761 = pneg %p134
      $region34: #{bert_seq_noft_forward.12} parent=31 // pred_check_branch
        %763 = sbr.rel (%p761) target = $region36
      $region35: #{bert_seq_noft_forward.12} parent=31 // pred_region
        _
      $region36: #{bert_seq_noft_forward.12} parent=31 // pred_fallthru
        _
    $region32: #{bert_seq_noft_forward.12} parent=5 // pred_fallthru
      _
    %p764 = scmp.le.s32.totalorder 2, %s9
    // Predicated region
    $region37: #{bert_seq_noft_forward.12} parent=5 // pred_check
      %p765 = pneg %p764
    $region38: #{bert_seq_noft_forward.12} parent=5 // pred_check_branch
      %767 = sbr.rel (%p765) target = $region40
    $region39: #{bert_seq_noft_forward.12} parent=5 // pred_region
      %s768 = ssub.s32 %s9, 2
      // Predicated region
      $region41: #{bert_seq_noft_forward.12} parent=39 // pred_check
        %p769 = pneg %p140
      $region42: #{bert_seq_noft_forward.12} parent=39 // pred_check_branch
        %771 = sbr.rel (%p769) target = $region44
      $region43: #{bert_seq_noft_forward.12} parent=39 // pred_region
        %p772 = scmp.lt.s32.totalorder %s20, 1
        %s773 = scalar_select %p772, %s20, 1
        %p774 = scmp.lt.s32.totalorder %s21, 0
        %s775 = scalar_select %p774, %s21, 0
        %s776 = sadd.s32 %s775, %s773
        %s777 = smul.addr %s776, 4
        %s778 = scalar_lea.vmem %s3, %s777
      $region44: #{bert_seq_noft_forward.12} parent=39 // pred_fallthru
        _
    $region40: #{bert_seq_noft_forward.12} parent=5 // pred_fallthru
      _
  $region6: #{bert_seq_noft_forward.12} parent=0 // loop_footer
    %s13 = sadd.s32 1, %s9
  $region7: #{bert_seq_noft_forward.12} parent=0 // loop_footer_branch
    %8 = sbr.rel target = $region3
  $region8: #{bert_seq_noft_forward.12} parent=0 // loop_exit
    _

// kernel: bert_seq_noft_forward.13
$region0: #{bert_seq_noft_forward.13}
  #allocation0 [shape = 'u32[]', space=smem, size = 0x4, offset = 0x4, fixed_abs, tag = 'smem constant byte address 0x4 - core index']
  #allocation1 [shape = 'u32[144,128]{1,0:T(1,128)}', space=vmem, size = 0x12000, scoped, tag = 'internal scratch']
  #allocation2 [shape = 'f32[16,128]{1,0:T(8,128)}', space=vmem, size = 0x2000, scoped, tag = 'scratch operand']
  %s0 = inlined_call_operand.vmem [shape: bf16[16,128], index: 0, kind: input, shape index: {}]
  %s1 = inlined_call_operand.hbm [shape: bf16[128,128], index: 1, kind: input, shape index: {}]
  %s2 = inlined_call_operand.vmem [shape: f32[1,128], index: 2, kind: input, shape index: {}]
  %s3 = inlined_call_operand.vmem [shape: bf16[16,128], index: 3, kind: input, shape index: {}]
  %s4 = inlined_call_operand.hbm [shape: f32[1,128], index: 4, kind: input, shape index: {}]
  %s5 = inlined_call_operand.hbm [shape: f32[1,128], index: 5, kind: input, shape index: {}]
  %s6 = inlined_call_operand.vmem [shape: bf16[16,128], index: 6, kind: output, shape index: {}]
  %s7 = sld [smem:[#allocation0]]
  $region54: #{bert_seq_noft_forward.13} parent=0
    _
  %s9 = ssub.s32 1, %s7
  %s10 = scalar_select 0, %s9, %s7
  $region1: #{bert_seq_noft_forward.13} parent=0
    #allocation3 [shape = 'u8[32768]{0}', space=vmem, size = 0x8000, scoped, tag = 'input window, operand 1, single buffered']
    #allocation4 [shape = 's32[1]{0}', space=sflag, size = 0x4, scoped, tag = 'scoped memory for bert_seq_noft_forward.13']
    #allocation5 [shape = 'u8[512]{0}', space=vmem, size = 0x400, scoped, tag = 'input window, operand 4, single buffered']
    #allocation6 [shape = 's32[1]{0}', space=sflag, size = 0x4, scoped, tag = 'scoped memory for bert_seq_noft_forward.13']
    #allocation7 [shape = 'u8[512]{0}', space=vmem, size = 0x400, scoped, tag = 'input window, operand 5, single buffered']
    %11 = vsyncpa [#allocation4], 0
    %12 = vsyncpa [#allocation6], 0
    // Predicated region
    $region2: #{bert_seq_noft_forward.13} parent=1 // pred_check
      _
    $region3: #{bert_seq_noft_forward.13} parent=1 // pred_check_branch
      %14 = sbr.rel (0) target = $region5
    $region4: #{bert_seq_noft_forward.13} parent=1 // pred_region
      _
    $region5: #{bert_seq_noft_forward.13} parent=1 // pred_fallthru
      _
    // Predicated region
    $region6: #{bert_seq_noft_forward.13} parent=1 // pred_check
      _
    $region7: #{bert_seq_noft_forward.13} parent=1 // pred_check_branch
      %16 = sbr.rel (0) target = $region9
    $region8: #{bert_seq_noft_forward.13} parent=1 // pred_region
      %s18 = ssub.s32 1024, 1024
      %19 = vsyncadd [#allocation4], %s18
      %s20 = sshll.u32 [#allocation3], 4
      %s21 = int_to_ptr.vmem [resolvable:$true] %s20
      %26 = dma.hbm_to_vmem [thread:$0]  %s1, 1024, %s21, [#allocation4], 64, 64, 4
    $region9: #{bert_seq_noft_forward.13} parent=1 // pred_fallthru
      _
    // Predicated region
    $region10: #{bert_seq_noft_forward.13} parent=1 // pred_check
      _
    $region11: #{bert_seq_noft_forward.13} parent=1 // pred_check_branch
      %28 = sbr.rel (0) target = $region13
    $region12: #{bert_seq_noft_forward.13} parent=1 // pred_region
      _
    $region13: #{bert_seq_noft_forward.13} parent=1 // pred_fallthru
      _
    // Predicated region
    $region14: #{bert_seq_noft_forward.13} parent=1 // pred_check
      _
    $region15: #{bert_seq_noft_forward.13} parent=1 // pred_check_branch
      %30 = sbr.rel (0) target = $region17
    $region16: #{bert_seq_noft_forward.13} parent=1 // pred_region
      _
    $region17: #{bert_seq_noft_forward.13} parent=1 // pred_fallthru
      _
    // Predicated region
    $region18: #{bert_seq_noft_forward.13} parent=1 // pred_check
      _
    $region19: #{bert_seq_noft_forward.13} parent=1 // pred_check_branch
      %32 = sbr.rel (0) target = $region21
    $region20: #{bert_seq_noft_forward.13} parent=1 // pred_region
      %s34 = ssub.s32 16, 16
      %35 = vsyncadd [#allocation6], %s34
      %s37 = sshll.u32 [#allocation5], 4
      %s38 = int_to_ptr.vmem [resolvable:$true] %s37
      %40 = dma.hbm_to_vmem [thread:$0]  %s4, 16, %s38, [#allocation6]
    $region21: #{bert_seq_noft_forward.13} parent=1 // pred_fallthru
      _
    // Predicated region
    $region22: #{bert_seq_noft_forward.13} parent=1 // pred_check
      _
    $region23: #{bert_seq_noft_forward.13} parent=1 // pred_check_branch
      %42 = sbr.rel (0) target = $region25
    $region24: #{bert_seq_noft_forward.13} parent=1 // pred_region
      %s44 = ssub.s32 16, 16
      %45 = vsyncadd [#allocation6], %s44
      %s47 = sshll.u32 [#allocation7], 4
      %s48 = int_to_ptr.vmem [resolvable:$true] %s47
      %50 = dma.hbm_to_vmem [thread:$0]  %s5, 16, %s48, [#allocation6]
    $region25: #{bert_seq_noft_forward.13} parent=1 // pred_fallthru
      _
    // Predicated region
    $region26: #{bert_seq_noft_forward.13} parent=1 // pred_check
      _
    $region27: #{bert_seq_noft_forward.13} parent=1 // pred_check_branch
      %52 = sbr.rel (0) target = $region29
    $region28: #{bert_seq_noft_forward.13} parent=1 // pred_region
      %53 = dma.done [#allocation4], 1024
    $region29: #{bert_seq_noft_forward.13} parent=1 // pred_fallthru
      _
    // Predicated region
    $region30: #{bert_seq_noft_forward.13} parent=1 // pred_check
      _
    $region31: #{bert_seq_noft_forward.13} parent=1 // pred_check_branch
      %55 = sbr.rel (0) target = $region33
    $region32: #{bert_seq_noft_forward.13} parent=1 // pred_region
      %56 = dma.done [#allocation6], 16
    $region33: #{bert_seq_noft_forward.13} parent=1 // pred_fallthru
      _
    // Predicated region
    $region34: #{bert_seq_noft_forward.13} parent=1 // pred_check
      _
    $region35: #{bert_seq_noft_forward.13} parent=1 // pred_check_branch
      %58 = sbr.rel (0) target = $region37
    $region36: #{bert_seq_noft_forward.13} parent=1 // pred_region
      %59 = dma.done [#allocation6], 16
    $region37: #{bert_seq_noft_forward.13} parent=1 // pred_fallthru
      _
    %p61 = scmp.eq.s32.totalorder 0, 0
    // Predicated region
    $region38: #{bert_seq_noft_forward.13} parent=1 // pred_check
      %p62 = pneg %p61
    $region39: #{bert_seq_noft_forward.13} parent=1 // pred_check_branch
      %64 = sbr.rel (%p62) target = $region41
    $region40: #{bert_seq_noft_forward.13} parent=1 // pred_region
      %v65 = vld [vmem:[%s2] sm:$0x1]
      %v67 = vlaneseq
      %v68 = vshrl.u32 %v67, 7
      %v69 = vsub.s32 0, %v68
      %v70 = vrot.slane %v65, %v69
      %72 = vst [vmem:[#allocation2] sm:$0xff] %v70
      %73 = vst [vmem:[#allocation2 + $0x8] sm:$0xff] %v70
    $region41: #{bert_seq_noft_forward.13} parent=1 // pred_fallthru
      _
    %v74 = vld [vmem:[#allocation2] sm:$0xff]
    %v75 = vld [vmem:[#allocation2 + $0x8] sm:$0xff]
    %v76 = vld [vmem:[%s0] sm:$0xf]
    %v77 = vld [vmem:[%s0 + $0x4] sm:$0xf]
    %v78 = vld [vmem:[#allocation3] sm:$0xf]
    %v79 = vld [vmem:[#allocation3 + $0x4] sm:$0xf]
    %v80 = vld [vmem:[#allocation3 + $0x8] sm:$0xf]
    %v81 = vld [vmem:[#allocation3 + $0xc] sm:$0xf]
    %v82 = vld [vmem:[#allocation3 + $0x10] sm:$0xf]
    %v83 = vld [vmem:[#allocation3 + $0x14] sm:$0xf]
    %v84 = vld [vmem:[#allocation3 + $0x18] sm:$0xf]
    %v85 = vld [vmem:[#allocation3 + $0x1c] sm:$0xf]
    %v86 = vld [vmem:[#allocation3 + $0x20] sm:$0xf]
    %v87 = vld [vmem:[#allocation3 + $0x24] sm:$0xf]
    %v88 = vld [vmem:[#allocation3 + $0x28] sm:$0xf]
    %v89 = vld [vmem:[#allocation3 + $0x2c] sm:$0xf]
    %v90 = vld [vmem:[#allocation3 + $0x30] sm:$0xf]
    %v91 = vld [vmem:[#allocation3 + $0x34] sm:$0xf]
    %v92 = vld [vmem:[#allocation3 + $0x38] sm:$0xf]
    %v93 = vld [vmem:[#allocation3 + $0x3c] sm:$0xf]
    %v96 = vunpack.c.l.b16 %v76
    %v97 = vunpack.c.l.b16 %v77
    %v98 = vpack.c.b16 %v97, %v96
    %v116 = vunpack.c.l.b16 %v78
    %v117 = vunpack.c.l.b16 %v79
    %v118 = vunpack.c.l.b16 %v80
    %v119 = vunpack.c.l.b16 %v81
    %v120 = vunpack.c.l.b16 %v82
    %v121 = vunpack.c.l.b16 %v83
    %v122 = vunpack.c.l.b16 %v84
    %v123 = vunpack.c.l.b16 %v85
    %v124 = vunpack.c.l.b16 %v86
    %v125 = vunpack.c.l.b16 %v87
    %v126 = vunpack.c.l.b16 %v88
    %v127 = vunpack.c.l.b16 %v89
    %v128 = vunpack.c.l.b16 %v90
    %v129 = vunpack.c.l.b16 %v91
    %v130 = vunpack.c.l.b16 %v92
    %v131 = vunpack.c.l.b16 %v93
    %v132 = vpack.c.b16 %v117, %v116
    %v133 = vpack.c.b16 %v119, %v118
    %v134 = vpack.c.b16 %v121, %v120
    %v135 = vpack.c.b16 %v123, %v122
    %v136 = vpack.c.b16 %v125, %v124
    %v137 = vpack.c.b16 %v127, %v126
    %v138 = vpack.c.b16 %v129, %v128
    %v139 = vpack.c.b16 %v131, %v130
    %148 = vmatprep.subr.bf16.mxu0 0
    %149 = vmatpush1.bf16.msra.mxu0 %v139
    %150 = vmatprep.subr.bf16.mxu0 0
    %151 = vmatpush1.bf16.msra.mxu0 %v138
    %152 = vmatprep.subr.bf16.mxu0 0
    %153 = vmatpush1.bf16.msra.mxu0 %v137
    %154 = vmatprep.subr.bf16.mxu0 0
    %155 = vmatpush1.bf16.msra.mxu0 %v136
    %156 = vmatprep.subr.bf16.mxu0 0
    %157 = vmatpush1.bf16.msra.mxu0 %v135
    %158 = vmatprep.subr.bf16.mxu0 0
    %159 = vmatpush1.bf16.msra.mxu0 %v134
    %160 = vmatprep.subr.bf16.mxu0 0
    %161 = vmatpush1.bf16.msra.mxu0 %v133
    %162 = vmatprep.subr.bf16.mxu0 0
    %163 = vmatpush1.bf16.msra.mxu0 %v132
    %164 = vmatprep.subr.bf16.mxu0 0
    %165 = vmatpush2.bf16.msra.mxu0 0
    %166 = vmatprep.subr.bf16.mxu0 0
    %167 = vmatpush2.bf16.msra.mxu0 0
    %168 = vmatprep.subr.bf16.mxu0 0
    %169 = vmatpush2.bf16.msra.mxu0 0
    %170 = vmatprep.subr.bf16.mxu0 0
    %171 = vmatpush2.bf16.msra.mxu0 0
    %172 = vmatprep.subr.bf16.mxu0 0
    %173 = vmatpush2.bf16.msra.mxu0 0
    %174 = vmatprep.subr.bf16.mxu0 0
    %175 = vmatpush2.bf16.msra.mxu0 0
    %176 = vmatprep.subr.bf16.mxu0 0
    %177 = vmatpush2.bf16.msra.mxu0 0
    %178 = vmatprep.subr.bf16.mxu0 0
    %179 = vmatpush2.bf16.msra.mxu0 0
    %180 = vmatprep.mubr.bf16.mxu0 0
    %181 = vmatmul.mubr.bf16.gmra.mxu0 %v98
    %v182 = vpop.f32.mrf.mxu0
    %v183 = vadd.f32 0.0, %v182
    %v184 = vpop.f32.mrf.mxu0
    %v185 = vpop.f32.mrf.mxu0
    %v186 = vadd.f32 0.0, %v185
    %v187 = vpop.f32.mrf.mxu0
    %188 = vdwg.mxu0
    %v189 = vadd.f32 %v74, %v183
    %v190 = vadd.f32 %v75, %v186
    %191 = vst [vmem:[#allocation2] sm:$0xff] %v189
    %192 = vst [vmem:[#allocation2 + $0x8] sm:$0xff] %v190
    // Predicated region
    $region42: #{bert_seq_noft_forward.13} parent=1 // pred_check
      %p193 = pneg %p61
    $region43: #{bert_seq_noft_forward.13} parent=1 // pred_check_branch
      %195 = sbr.rel (%p193) target = $region45
    $region44: #{bert_seq_noft_forward.13} parent=1 // pred_region
      %v196 = vld [vmem:[#allocation2] sm:$0xff]
      %v197 = vld [vmem:[#allocation2 + $0x8] sm:$0xff]
      %v198 = vld [vmem:[%s3] sm:$0xf]
      %v199 = vld [vmem:[%s3 + $0x4] sm:$0xf]
      %v200 = vunpack.c.l.bf16 %v198
      %v201 = vunpack.c.l.bf16 %v199
      %v202 = vadd.f32 %v196, %v200
      %v203 = vadd.f32 %v197, %v201
      %204 = vadd.xlane.f32.xlu0 %v202
      %v205 = vpop.xlane.xlu0 %204
      %206 = vadd.xlane.f32.xlu0 %v203
      %v207 = vpop.xlane.xlu0 %206
      %v208 = vrcp.pop 128.0
      %v209 = vmul.f32 %v205, %v208
      %v210 = vmul.f32 %v207, %v208
      %v211 = vsub.f32 %v202, %v209
      %v212 = vsub.f32 %v203, %v210
      %v213 = vmul.f32 %v211, %v211
      %v214 = vmul.f32 %v212, %v212
      %215 = vadd.xlane.f32.xlu0 %v213
      %v216 = vpop.xlane.xlu0 %215
      %217 = vadd.xlane.f32.xlu0 %v214
      %v218 = vpop.xlane.xlu0 %217
      %v219 = vmul.f32 %v216, %v208
      %v220 = vmul.f32 %v218, %v208
      %v221 = vadd.f32 %v219, 1e-12
      %v222 = vadd.f32 %v220, 1e-12
      %v223 = vrsqrt.pop %v221
      %v224 = vrsqrt.pop %v222
      %v225 = vmul.f32 %v211, %v223
      %v226 = vmul.f32 %v212, %v224
      %v227 = vld [vmem:[#allocation5] sm:$0x1]
      %v229 = vlaneseq
      %v230 = vshrl.u32 %v229, 7
      %v231 = vsub.s32 0, %v230
      %v232 = vrot.slane %v227, %v231
      %v234 = vmul.f32 %v225, %v232
      %v235 = vmul.f32 %v226, %v232
      %v236 = vld [vmem:[#allocation7] sm:$0x1]
      %v238 = vlaneseq
      %v239 = vshrl.u32 %v238, 7
      %v240 = vsub.s32 0, %v239
      %v241 = vrot.slane %v236, %v240
      %v243 = vadd.f32 %v234, %v241
      %v244 = vadd.f32 %v235, %v241
      %v245 = vpack.c.bf16 %v244, %v243
      %v247 = vunpack.c.l.b16 %v245
      %v248 = vunpack.c.h.b16 %v245
      %v249 = vpack.c.b16 %v247, %v247
      %v250 = vpack.c.b16 %v248, %v248
      %253 = vst [vmem:[%s6] sm:$0xf] %v249
      %254 = vst [vmem:[%s6 + $0x4] sm:$0xf] %v250
    $region45: #{bert_seq_noft_forward.13} parent=1 // pred_fallthru
      _
    // Predicated region
    $region46: #{bert_seq_noft_forward.13} parent=1 // pred_check
      _
    $region47: #{bert_seq_noft_forward.13} parent=1 // pred_check_branch
      %256 = sbr.rel (0) target = $region49
    $region48: #{bert_seq_noft_forward.13} parent=1 // pred_region
      _
    $region49: #{bert_seq_noft_forward.13} parent=1 // pred_fallthru
      _
    // Predicated region
    $region50: #{bert_seq_noft_forward.13} parent=1 // pred_check
      _
    $region51: #{bert_seq_noft_forward.13} parent=1 // pred_check_branch
      %258 = sbr.rel (0) target = $region53
    $region52: #{bert_seq_noft_forward.13} parent=1 // pred_region
      _
    $region53: #{bert_seq_noft_forward.13} parent=1 // pred_fallthru
      _
    %259 = vsyncpa [#allocation4], 1
    %260 = vsyncpa [#allocation6], 1

// kernel: bert_seq_noft_forward.17
$region0: #{bert_seq_noft_forward.17}
  #allocation0 [shape = 'u32[]', space=smem, size = 0x4, offset = 0x4, fixed_abs, tag = 'smem constant byte address 0x4 - core index']
  #allocation1 [shape = 'u32[144,128]{1,0:T(1,128)}', space=vmem, size = 0x12000, scoped, tag = 'internal scratch']
  #allocation2 [shape = 'f32[16,128]{1,0:T(8,128)}', space=vmem, size = 0x2000, scoped, tag = 'scratch operand']
  %s0 = inlined_call_operand.vmem [shape: bf16[16,128], index: 0, kind: input, shape index: {}]
  %s1 = inlined_call_operand.vmem [shape: bf16[128,128], index: 1, kind: input, shape index: {}]
  %s2 = inlined_call_operand.vmem [shape: f32[1,128], index: 2, kind: input, shape index: {}]
  %s3 = inlined_call_operand.vmem [shape: bf16[16,128], index: 3, kind: input, shape index: {}]
  %s4 = inlined_call_operand.vmem [shape: f32[1,128], index: 4, kind: input, shape index: {}]
  %s5 = inlined_call_operand.vmem [shape: f32[1,128], index: 5, kind: input, shape index: {}]
  %s6 = inlined_call_operand.vmem [shape: bf16[16,128], index: 6, kind: output, shape index: {}]
  %s7 = sld [smem:[#allocation0]]
  $region42: #{bert_seq_noft_forward.17} parent=0
    _
  %s9 = ssub.s32 1, %s7
  %s10 = scalar_select 0, %s9, %s7
  // Predicated region
  $region2: #{bert_seq_noft_forward.17} parent=0 // pred_check
    _
  $region3: #{bert_seq_noft_forward.17} parent=0 // pred_check_branch
    %12 = sbr.rel (0) target = $region5
  $region4: #{bert_seq_noft_forward.17} parent=0 // pred_region
    _
  $region5: #{bert_seq_noft_forward.17} parent=0 // pred_fallthru
    _
  // Predicated region
  $region6: #{bert_seq_noft_forward.17} parent=0 // pred_check
    _
  $region7: #{bert_seq_noft_forward.17} parent=0 // pred_check_branch
    %14 = sbr.rel (0) target = $region9
  $region8: #{bert_seq_noft_forward.17} parent=0 // pred_region
    _
  $region9: #{bert_seq_noft_forward.17} parent=0 // pred_fallthru
    _
  // Predicated region
  $region10: #{bert_seq_noft_forward.17} parent=0 // pred_check
    _
  $region11: #{bert_seq_noft_forward.17} parent=0 // pred_check_branch
    %16 = sbr.rel (0) target = $region13
  $region12: #{bert_seq_noft_forward.17} parent=0 // pred_region
    _
  $region13: #{bert_seq_noft_forward.17} parent=0 // pred_fallthru
    _
  // Predicated region
  $region14: #{bert_seq_noft_forward.17} parent=0 // pred_check
    _
  $region15: #{bert_seq_noft_forward.17} parent=0 // pred_check_branch
    %18 = sbr.rel (0) target = $region17
  $region16: #{bert_seq_noft_forward.17} parent=0 // pred_region
    _
  $region17: #{bert_seq_noft_forward.17} parent=0 // pred_fallthru
    _
  // Predicated region
  $region18: #{bert_seq_noft_forward.17} parent=0 // pred_check
    _
  $region19: #{bert_seq_noft_forward.17} parent=0 // pred_check_branch
    %20 = sbr.rel (0) target = $region21
  $region20: #{bert_seq_noft_forward.17} parent=0 // pred_region
    _
  $region21: #{bert_seq_noft_forward.17} parent=0 // pred_fallthru
    _
  // Predicated region
  $region22: #{bert_seq_noft_forward.17} parent=0 // pred_check
    _
  $region23: #{bert_seq_noft_forward.17} parent=0 // pred_check_branch
    %22 = sbr.rel (0) target = $region25
  $region24: #{bert_seq_noft_forward.17} parent=0 // pred_region
    _
  $region25: #{bert_seq_noft_forward.17} parent=0 // pred_fallthru
    _
  %p24 = scmp.eq.s32.totalorder 0, 0
  // Predicated region
  $region26: #{bert_seq_noft_forward.17} parent=0 // pred_check
    %p25 = pneg %p24
  $region27: #{bert_seq_noft_forward.17} parent=0 // pred_check_branch
    %27 = sbr.rel (%p25) target = $region29
  $region28: #{bert_seq_noft_forward.17} parent=0 // pred_region
    %v28 = vld [vmem:[%s2] sm:$0x1]
    %v30 = vlaneseq
    %v31 = vshrl.u32 %v30, 7
    %v32 = vsub.s32 0, %v31
    %v33 = vrot.slane %v28, %v32
    %35 = vst [vmem:[#allocation2] sm:$0xff] %v33
    %36 = vst [vmem:[#allocation2 + $0x8] sm:$0xff] %v33
  $region29: #{bert_seq_noft_forward.17} parent=0 // pred_fallthru
    _
  %v37 = vld [vmem:[#allocation2] sm:$0xff]
  %v38 = vld [vmem:[#allocation2 + $0x8] sm:$0xff]
  %v39 = vld [vmem:[%s0] sm:$0xf]
  %v40 = vld [vmem:[%s0 + $0x4] sm:$0xf]
  %v41 = vld [vmem:[%s1] sm:$0xf]
  %v42 = vld [vmem:[%s1 + $0x4] sm:$0xf]
  %v43 = vld [vmem:[%s1 + $0x8] sm:$0xf]
  %v44 = vld [vmem:[%s1 + $0xc] sm:$0xf]
  %v45 = vld [vmem:[%s1 + $0x10] sm:$0xf]
  %v46 = vld [vmem:[%s1 + $0x14] sm:$0xf]
  %v47 = vld [vmem:[%s1 + $0x18] sm:$0xf]
  %v48 = vld [vmem:[%s1 + $0x1c] sm:$0xf]
  %v49 = vld [vmem:[%s1 + $0x20] sm:$0xf]
  %v50 = vld [vmem:[%s1 + $0x24] sm:$0xf]
  %v51 = vld [vmem:[%s1 + $0x28] sm:$0xf]
  %v52 = vld [vmem:[%s1 + $0x2c] sm:$0xf]
  %v53 = vld [vmem:[%s1 + $0x30] sm:$0xf]
  %v54 = vld [vmem:[%s1 + $0x34] sm:$0xf]
  %v55 = vld [vmem:[%s1 + $0x38] sm:$0xf]
  %v56 = vld [vmem:[%s1 + $0x3c] sm:$0xf]
  %v59 = vunpack.c.l.b16 %v39
  %v60 = vunpack.c.l.b16 %v40
  %v61 = vpack.c.b16 %v60, %v59
  %v79 = vunpack.c.l.b16 %v41
  %v80 = vunpack.c.l.b16 %v42
  %v81 = vunpack.c.l.b16 %v43
  %v82 = vunpack.c.l.b16 %v44
  %v83 = vunpack.c.l.b16 %v45
  %v84 = vunpack.c.l.b16 %v46
  %v85 = vunpack.c.l.b16 %v47
  %v86 = vunpack.c.l.b16 %v48
  %v87 = vunpack.c.l.b16 %v49
  %v88 = vunpack.c.l.b16 %v50
  %v89 = vunpack.c.l.b16 %v51
  %v90 = vunpack.c.l.b16 %v52
  %v91 = vunpack.c.l.b16 %v53
  %v92 = vunpack.c.l.b16 %v54
  %v93 = vunpack.c.l.b16 %v55
  %v94 = vunpack.c.l.b16 %v56
  %v95 = vpack.c.b16 %v80, %v79
  %v96 = vpack.c.b16 %v82, %v81
  %v97 = vpack.c.b16 %v84, %v83
  %v98 = vpack.c.b16 %v86, %v85
  %v99 = vpack.c.b16 %v88, %v87
  %v100 = vpack.c.b16 %v90, %v89
  %v101 = vpack.c.b16 %v92, %v91
  %v102 = vpack.c.b16 %v94, %v93
  %111 = vmatprep.subr.bf16.mxu0 0
  %112 = vmatpush1.bf16.msra.mxu0 %v102
  %113 = vmatprep.subr.bf16.mxu0 0
  %114 = vmatpush1.bf16.msra.mxu0 %v101
  %115 = vmatprep.subr.bf16.mxu0 0
  %116 = vmatpush1.bf16.msra.mxu0 %v100
  %117 = vmatprep.subr.bf16.mxu0 0
  %118 = vmatpush1.bf16.msra.mxu0 %v99
  %119 = vmatprep.subr.bf16.mxu0 0
  %120 = vmatpush1.bf16.msra.mxu0 %v98
  %121 = vmatprep.subr.bf16.mxu0 0
  %122 = vmatpush1.bf16.msra.mxu0 %v97
  %123 = vmatprep.subr.bf16.mxu0 0
  %124 = vmatpush1.bf16.msra.mxu0 %v96
  %125 = vmatprep.subr.bf16.mxu0 0
  %126 = vmatpush1.bf16.msra.mxu0 %v95
  %127 = vmatprep.subr.bf16.mxu0 0
  %128 = vmatpush2.bf16.msra.mxu0 0
  %129 = vmatprep.subr.bf16.mxu0 0
  %130 = vmatpush2.bf16.msra.mxu0 0
  %131 = vmatprep.subr.bf16.mxu0 0
  %132 = vmatpush2.bf16.msra.mxu0 0
  %133 = vmatprep.subr.bf16.mxu0 0
  %134 = vmatpush2.bf16.msra.mxu0 0
  %135 = vmatprep.subr.bf16.mxu0 0
  %136 = vmatpush2.bf16.msra.mxu0 0
  %137 = vmatprep.subr.bf16.mxu0 0
  %138 = vmatpush2.bf16.msra.mxu0 0
  %139 = vmatprep.subr.bf16.mxu0 0
  %140 = vmatpush2.bf16.msra.mxu0 0
  %141 = vmatprep.subr.bf16.mxu0 0
  %142 = vmatpush2.bf16.msra.mxu0 0
  %143 = vmatprep.mubr.bf16.mxu0 0
  %144 = vmatmul.mubr.bf16.gmra.mxu0 %v61
  %v145 = vpop.f32.mrf.mxu0
  %v146 = vadd.f32 0.0, %v145
  %v147 = vpop.f32.mrf.mxu0
  %v148 = vpop.f32.mrf.mxu0
  %v149 = vadd.f32 0.0, %v148
  %v150 = vpop.f32.mrf.mxu0
  %151 = vdwg.mxu0
  %v152 = vadd.f32 %v37, %v146
  %v153 = vadd.f32 %v38, %v149
  %154 = vst [vmem:[#allocation2] sm:$0xff] %v152
  %155 = vst [vmem:[#allocation2 + $0x8] sm:$0xff] %v153
  // Predicated region
  $region30: #{bert_seq_noft_forward.17} parent=0 // pred_check
    %p156 = pneg %p24
  $region31: #{bert_seq_noft_forward.17} parent=0 // pred_check_branch
    %158 = sbr.rel (%p156) target = $region33
  $region32: #{bert_seq_noft_forward.17} parent=0 // pred_region
    %v159 = vld [vmem:[#allocation2] sm:$0xff]
    %v160 = vld [vmem:[#allocation2 + $0x8] sm:$0xff]
    %v161 = vld [vmem:[%s3] sm:$0xf]
    %v162 = vld [vmem:[%s3 + $0x4] sm:$0xf]
    %v163 = vunpack.c.l.bf16 %v161
    %v164 = vunpack.c.l.bf16 %v162
    %v165 = vadd.f32 %v159, %v163
    %v166 = vadd.f32 %v160, %v164
    %167 = vadd.xlane.f32.xlu0 %v165
    %v168 = vpop.xlane.xlu0 %167
    %169 = vadd.xlane.f32.xlu0 %v166
    %v170 = vpop.xlane.xlu0 %169
    %v171 = vrcp.pop 128.0
    %v172 = vmul.f32 %v168, %v171
    %v173 = vmul.f32 %v170, %v171
    %v174 = vsub.f32 %v165, %v172
    %v175 = vsub.f32 %v166, %v173
    %v176 = vmul.f32 %v174, %v174
    %v177 = vmul.f32 %v175, %v175
    %178 = vadd.xlane.f32.xlu0 %v176
    %v179 = vpop.xlane.xlu0 %178
    %180 = vadd.xlane.f32.xlu0 %v177
    %v181 = vpop.xlane.xlu0 %180
    %v182 = vmul.f32 %v179, %v171
    %v183 = vmul.f32 %v181, %v171
    %v184 = vadd.f32 %v182, 1e-12
    %v185 = vadd.f32 %v183, 1e-12
    %v186 = vrsqrt.pop %v184
    %v187 = vrsqrt.pop %v185
    %v188 = vmul.f32 %v174, %v186
    %v189 = vmul.f32 %v175, %v187
    %v190 = vld [vmem:[%s4] sm:$0x1]
    %v192 = vlaneseq
    %v193 = vshrl.u32 %v192, 7
    %v194 = vsub.s32 0, %v193
    %v195 = vrot.slane %v190, %v194
    %v197 = vmul.f32 %v188, %v195
    %v198 = vmul.f32 %v189, %v195
    %v199 = vld [vmem:[%s5] sm:$0x1]
    %v201 = vlaneseq
    %v202 = vshrl.u32 %v201, 7
    %v203 = vsub.s32 0, %v202
    %v204 = vrot.slane %v199, %v203
    %v206 = vadd.f32 %v197, %v204
    %v207 = vadd.f32 %v198, %v204
    %v208 = vpack.c.bf16 %v207, %v206
    %v210 = vunpack.c.l.b16 %v208
    %v211 = vunpack.c.h.b16 %v208
    %v212 = vpack.c.b16 %v210, %v210
    %v213 = vpack.c.b16 %v211, %v211
    %216 = vst [vmem:[%s6] sm:$0xf] %v212
    %217 = vst [vmem:[%s6 + $0x4] sm:$0xf] %v213
  $region33: #{bert_seq_noft_forward.17} parent=0 // pred_fallthru
    _
  // Predicated region
  $region34: #{bert_seq_noft_forward.17} parent=0 // pred_check
    _
  $region35: #{bert_seq_noft_forward.17} parent=0 // pred_check_branch
    %219 = sbr.rel (0) target = $region37
  $region36: #{bert_seq_noft_forward.17} parent=0 // pred_region
    _
  $region37: #{bert_seq_noft_forward.17} parent=0 // pred_fallthru
    _
  // Predicated region
  $region38: #{bert_seq_noft_forward.17} parent=0 // pred_check
    _
  $region39: #{bert_seq_noft_forward.17} parent=0 // pred_check_branch
    %221 = sbr.rel (0) target = $region41
  $region40: #{bert_seq_noft_forward.17} parent=0 // pred_region
    _
  $region41: #{bert_seq_noft_forward.17} parent=0 // pred_fallthru
    _

// kernel: bert_seq_noft_forward.14
$region0: #{bert_seq_noft_forward.14}
  #allocation0 [shape = 'u32[]', space=smem, size = 0x4, offset = 0x4, fixed_abs, tag = 'smem constant byte address 0x4 - core index']
  #allocation1 [shape = 'u32[144,128]{1,0:T(1,128)}', space=vmem, size = 0x12000, scoped, tag = 'internal scratch']
  %s0 = inlined_call_operand.vmem [shape: bf16[16,128], index: 0, kind: input, shape index: {}]
  %s1 = inlined_call_operand.vmem [shape: bf16[128,512], index: 1, kind: input, shape index: {}]
  %s2 = inlined_call_operand.hbm [shape: f32[1,512], index: 2, kind: input, shape index: {}]
  %s3 = inlined_call_operand.vmem [shape: bf16[512,128], index: 3, kind: input, shape index: {}]
  %s4 = inlined_call_operand.hbm [shape: f32[1,128], index: 4, kind: input, shape index: {}]
  %s5 = inlined_call_operand.hbm [shape: f32[1,128], index: 5, kind: input, shape index: {}]
  %s6 = inlined_call_operand.hbm [shape: f32[1,128], index: 6, kind: input, shape index: {}]
  %s7 = inlined_call_operand.vmem [shape: bf16[16,128], index: 7, kind: output, shape index: {}]
  %s8 = sld [smem:[#allocation0]]
  $region54: #{bert_seq_noft_forward.14} parent=0
    _
  %s10 = ssub.s32 1, %s8
  %s11 = scalar_select 0, %s10, %s8
  $region1: #{bert_seq_noft_forward.14} parent=0
    #allocation2 [shape = 'u8[2048]{0}', space=vmem, size = 0x800, scoped, tag = 'input window, operand 2, single buffered']
    #allocation3 [shape = 's32[1]{0}', space=sflag, size = 0x4, scoped, tag = 'scoped memory for bert_seq_noft_forward.14']
    #allocation4 [shape = 'u8[512]{0}', space=vmem, size = 0x400, scoped, tag = 'input window, operand 4, single buffered']
    #allocation5 [shape = 's32[1]{0}', space=sflag, size = 0x4, scoped, tag = 'scoped memory for bert_seq_noft_forward.14']
    #allocation6 [shape = 'u8[512]{0}', space=vmem, size = 0x400, scoped, tag = 'input window, operand 5, single buffered']
    #allocation7 [shape = 'u8[512]{0}', space=vmem, size = 0x400, scoped, tag = 'input window, operand 6, single buffered']
    #allocation8 [shape = 's32[1]{0}', space=sflag, size = 0x4, scoped, tag = 'scoped memory for bert_seq_noft_forward.14']
    %12 = vsyncpa [#allocation3], 0
    %13 = vsyncpa [#allocation5], 0
    %14 = vsyncpa [#allocation8], 0
    // Predicated region
    $region2: #{bert_seq_noft_forward.14} parent=1 // pred_check
      _
    $region3: #{bert_seq_noft_forward.14} parent=1 // pred_check_branch
      %16 = sbr.rel (0) target = $region5
    $region4: #{bert_seq_noft_forward.14} parent=1 // pred_region
      _
    $region5: #{bert_seq_noft_forward.14} parent=1 // pred_fallthru
      _
    // Predicated region
    $region6: #{bert_seq_noft_forward.14} parent=1 // pred_check
      _
    $region7: #{bert_seq_noft_forward.14} parent=1 // pred_check_branch
      %18 = sbr.rel (0) target = $region9
    $region8: #{bert_seq_noft_forward.14} parent=1 // pred_region
      _
    $region9: #{bert_seq_noft_forward.14} parent=1 // pred_fallthru
      _
    // Predicated region
    $region10: #{bert_seq_noft_forward.14} parent=1 // pred_check
      _
    $region11: #{bert_seq_noft_forward.14} parent=1 // pred_check_branch
      %20 = sbr.rel (0) target = $region13
    $region12: #{bert_seq_noft_forward.14} parent=1 // pred_region
      %s22 = ssub.s32 64, 64
      %23 = vsyncadd [#allocation3], %s22
      %s25 = sshll.u32 [#allocation2], 4
      %s26 = int_to_ptr.vmem [resolvable:$true] %s25
      %28 = dma.hbm_to_vmem [thread:$0]  %s2, 64, %s26, [#allocation3]
    $region13: #{bert_seq_noft_forward.14} parent=1 // pred_fallthru
      _
    // Predicated region
    $region14: #{bert_seq_noft_forward.14} parent=1 // pred_check
      _
    $region15: #{bert_seq_noft_forward.14} parent=1 // pred_check_branch
      %30 = sbr.rel (0) target = $region17
    $region16: #{bert_seq_noft_forward.14} parent=1 // pred_region
      _
    $region17: #{bert_seq_noft_forward.14} parent=1 // pred_fallthru
      _
    // Predicated region
    $region18: #{bert_seq_noft_forward.14} parent=1 // pred_check
      _
    $region19: #{bert_seq_noft_forward.14} parent=1 // pred_check_branch
      %32 = sbr.rel (0) target = $region21
    $region20: #{bert_seq_noft_forward.14} parent=1 // pred_region
      %s34 = ssub.s32 16, 16
      %35 = vsyncadd [#allocation5], %s34
      %s37 = sshll.u32 [#allocation4], 4
      %s38 = int_to_ptr.vmem [resolvable:$true] %s37
      %40 = dma.hbm_to_vmem [thread:$0]  %s4, 16, %s38, [#allocation5]
    $region21: #{bert_seq_noft_forward.14} parent=1 // pred_fallthru
      _
    // Predicated region
    $region22: #{bert_seq_noft_forward.14} parent=1 // pred_check
      _
    $region23: #{bert_seq_noft_forward.14} parent=1 // pred_check_branch
      %42 = sbr.rel (0) target = $region25
    $region24: #{bert_seq_noft_forward.14} parent=1 // pred_region
      %s44 = ssub.s32 16, 16
      %45 = vsyncadd [#allocation5], %s44
      %s47 = sshll.u32 [#allocation6], 4
      %s48 = int_to_ptr.vmem [resolvable:$true] %s47
      %50 = dma.hbm_to_vmem [thread:$0]  %s5, 16, %s48, [#allocation5]
    $region25: #{bert_seq_noft_forward.14} parent=1 // pred_fallthru
      _
    // Predicated region
    $region26: #{bert_seq_noft_forward.14} parent=1 // pred_check
      _
    $region27: #{bert_seq_noft_forward.14} parent=1 // pred_check_branch
      %52 = sbr.rel (0) target = $region29
    $region28: #{bert_seq_noft_forward.14} parent=1 // pred_region
      %s54 = ssub.s32 16, 16
      %55 = vsyncadd [#allocation8], %s54
      %s57 = sshll.u32 [#allocation7], 4
      %s58 = int_to_ptr.vmem [resolvable:$true] %s57
      %60 = dma.hbm_to_vmem [thread:$0]  %s6, 16, %s58, [#allocation8]
    $region29: #{bert_seq_noft_forward.14} parent=1 // pred_fallthru
      _
    // Predicated region
    $region30: #{bert_seq_noft_forward.14} parent=1 // pred_check
      _
    $region31: #{bert_seq_noft_forward.14} parent=1 // pred_check_branch
      %62 = sbr.rel (0) target = $region33
    $region32: #{bert_seq_noft_forward.14} parent=1 // pred_region
      %63 = dma.done [#allocation3], 64
    $region33: #{bert_seq_noft_forward.14} parent=1 // pred_fallthru
      _
    // Predicated region
    $region34: #{bert_seq_noft_forward.14} parent=1 // pred_check
      _
    $region35: #{bert_seq_noft_forward.14} parent=1 // pred_check_branch
      %65 = sbr.rel (0) target = $region37
    $region36: #{bert_seq_noft_forward.14} parent=1 // pred_region
      %66 = dma.done [#allocation5], 16
    $region37: #{bert_seq_noft_forward.14} parent=1 // pred_fallthru
      _
    // Predicated region
    $region38: #{bert_seq_noft_forward.14} parent=1 // pred_check
      _
    $region39: #{bert_seq_noft_forward.14} parent=1 // pred_check_branch
      %68 = sbr.rel (0) target = $region41
    $region40: #{bert_seq_noft_forward.14} parent=1 // pred_region
      %69 = dma.done [#allocation5], 16
    $region41: #{bert_seq_noft_forward.14} parent=1 // pred_fallthru
      _
    // Predicated region
    $region42: #{bert_seq_noft_forward.14} parent=1 // pred_check
      _
    $region43: #{bert_seq_noft_forward.14} parent=1 // pred_check_branch
      %71 = sbr.rel (0) target = $region45
    $region44: #{bert_seq_noft_forward.14} parent=1 // pred_region
      %72 = dma.done [#allocation8], 16
    $region45: #{bert_seq_noft_forward.14} parent=1 // pred_fallthru
      _
    %v74 = vld [vmem:[%s0] sm:$0xf]
    %v75 = vld [vmem:[%s0 + $0x4] sm:$0xf]
    %v76 = vld [vmem:[%s1] sm:$0xff]
    %v77 = vld [vmem:[%s1 + $0x8] sm:$0xff]
    %v78 = vld [vmem:[%s1 + $0x10] sm:$0xff]
    %v79 = vld [vmem:[%s1 + $0x18] sm:$0xff]
    %v80 = vld [vmem:[%s1 + $0x20] sm:$0xff]
    %v81 = vld [vmem:[%s1 + $0x28] sm:$0xff]
    %v82 = vld [vmem:[%s1 + $0x30] sm:$0xff]
    %v83 = vld [vmem:[%s1 + $0x38] sm:$0xff]
    %v84 = vld [vmem:[%s1 + $0x40] sm:$0xff]
    %v85 = vld [vmem:[%s1 + $0x48] sm:$0xff]
    %v86 = vld [vmem:[%s1 + $0x50] sm:$0xff]
    %v87 = vld [vmem:[%s1 + $0x58] sm:$0xff]
    %v88 = vld [vmem:[%s1 + $0x60] sm:$0xff]
    %v89 = vld [vmem:[%s1 + $0x68] sm:$0xff]
    %v90 = vld [vmem:[%s1 + $0x70] sm:$0xff]
    %v91 = vld [vmem:[%s1 + $0x78] sm:$0xff]
    %v92 = vld [vmem:[%s1 + $0x80] sm:$0xff]
    %v93 = vld [vmem:[%s1 + $0x88] sm:$0xff]
    %v94 = vld [vmem:[%s1 + $0x90] sm:$0xff]
    %v95 = vld [vmem:[%s1 + $0x98] sm:$0xff]
    %v96 = vld [vmem:[%s1 + $0xa0] sm:$0xff]
    %v97 = vld [vmem:[%s1 + $0xa8] sm:$0xff]
    %v98 = vld [vmem:[%s1 + $0xb0] sm:$0xff]
    %v99 = vld [vmem:[%s1 + $0xb8] sm:$0xff]
    %v100 = vld [vmem:[%s1 + $0xc0] sm:$0xff]
    %v101 = vld [vmem:[%s1 + $0xc8] sm:$0xff]
    %v102 = vld [vmem:[%s1 + $0xd0] sm:$0xff]
    %v103 = vld [vmem:[%s1 + $0xd8] sm:$0xff]
    %v104 = vld [vmem:[%s1 + $0xe0] sm:$0xff]
    %v105 = vld [vmem:[%s1 + $0xe8] sm:$0xff]
    %v106 = vld [vmem:[%s1 + $0xf0] sm:$0xff]
    %v107 = vld [vmem:[%s1 + $0xf8] sm:$0xff]
    %v108 = vld [vmem:[#allocation2] sm:$0xf]
    %v110 = vlaneseq
    %v111 = vshrl.u32 %v110, 7
    %v112 = vsub.s32 0, %v111
    %v113 = vrot.slane %v108, %v112
    %v114 = vlaneseq
    %v115 = vshrl.u32 %v114, 7
    %v116 = vsub.s32 1, %v115
    %v117 = vrot.slane %v108, %v116
    %v118 = vlaneseq
    %v119 = vshrl.u32 %v118, 7
    %v120 = vsub.s32 2, %v119
    %v121 = vrot.slane %v108, %v120
    %v122 = vlaneseq
    %v123 = vshrl.u32 %v122, 7
    %v124 = vsub.s32 3, %v123
    %v125 = vrot.slane %v108, %v124
    %v132 = vunpack.c.l.b16 %v74
    %v133 = vunpack.c.l.b16 %v75
    %v134 = vpack.c.b16 %v133, %v132
    %v168 = vunpack.c.l.b16 %v76
    %v169 = vunpack.c.h.b16 %v76
    %v170 = vunpack.c.l.b16 %v77
    %v171 = vunpack.c.h.b16 %v77
    %v172 = vunpack.c.l.b16 %v78
    %v173 = vunpack.c.h.b16 %v78
    %v174 = vunpack.c.l.b16 %v79
    %v175 = vunpack.c.h.b16 %v79
    %v176 = vunpack.c.l.b16 %v80
    %v177 = vunpack.c.h.b16 %v80
    %v178 = vunpack.c.l.b16 %v81
    %v179 = vunpack.c.h.b16 %v81
    %v180 = vunpack.c.l.b16 %v82
    %v181 = vunpack.c.h.b16 %v82
    %v182 = vunpack.c.l.b16 %v83
    %v183 = vunpack.c.h.b16 %v83
    %v184 = vunpack.c.l.b16 %v84
    %v185 = vunpack.c.h.b16 %v84
    %v186 = vunpack.c.l.b16 %v85
    %v187 = vunpack.c.h.b16 %v85
    %v188 = vunpack.c.l.b16 %v86
    %v189 = vunpack.c.h.b16 %v86
    %v190 = vunpack.c.l.b16 %v87
    %v191 = vunpack.c.h.b16 %v87
    %v192 = vunpack.c.l.b16 %v88
    %v193 = vunpack.c.h.b16 %v88
    %v194 = vunpack.c.l.b16 %v89
    %v195 = vunpack.c.h.b16 %v89
    %v196 = vunpack.c.l.b16 %v90
    %v197 = vunpack.c.h.b16 %v90
    %v198 = vunpack.c.l.b16 %v91
    %v199 = vunpack.c.h.b16 %v91
    %v200 = vunpack.c.l.b16 %v92
    %v201 = vunpack.c.h.b16 %v92
    %v202 = vunpack.c.l.b16 %v93
    %v203 = vunpack.c.h.b16 %v93
    %v204 = vunpack.c.l.b16 %v94
    %v205 = vunpack.c.h.b16 %v94
    %v206 = vunpack.c.l.b16 %v95
    %v207 = vunpack.c.h.b16 %v95
    %v208 = vunpack.c.l.b16 %v96
    %v209 = vunpack.c.h.b16 %v96
    %v210 = vunpack.c.l.b16 %v97
    %v211 = vunpack.c.h.b16 %v97
    %v212 = vunpack.c.l.b16 %v98
    %v213 = vunpack.c.h.b16 %v98
    %v214 = vunpack.c.l.b16 %v99
    %v215 = vunpack.c.h.b16 %v99
    %v216 = vunpack.c.l.b16 %v100
    %v217 = vunpack.c.h.b16 %v100
    %v218 = vunpack.c.l.b16 %v101
    %v219 = vunpack.c.h.b16 %v101
    %v220 = vunpack.c.l.b16 %v102
    %v221 = vunpack.c.h.b16 %v102
    %v222 = vunpack.c.l.b16 %v103
    %v223 = vunpack.c.h.b16 %v103
    %v224 = vunpack.c.l.b16 %v104
    %v225 = vunpack.c.h.b16 %v104
    %v226 = vunpack.c.l.b16 %v105
    %v227 = vunpack.c.h.b16 %v105
    %v228 = vunpack.c.l.b16 %v106
    %v229 = vunpack.c.h.b16 %v106
    %v230 = vunpack.c.l.b16 %v107
    %v231 = vunpack.c.h.b16 %v107
    %v232 = vpack.c.b16 %v172, %v168
    %v233 = vpack.c.b16 %v173, %v169
    %v234 = vpack.c.b16 %v174, %v170
    %v235 = vpack.c.b16 %v175, %v171
    %v236 = vpack.c.b16 %v180, %v176
    %v237 = vpack.c.b16 %v181, %v177
    %v238 = vpack.c.b16 %v182, %v178
    %v239 = vpack.c.b16 %v183, %v179
    %v240 = vpack.c.b16 %v188, %v184
    %v241 = vpack.c.b16 %v189, %v185
    %v242 = vpack.c.b16 %v190, %v186
    %v243 = vpack.c.b16 %v191, %v187
    %v244 = vpack.c.b16 %v196, %v192
    %v245 = vpack.c.b16 %v197, %v193
    %v246 = vpack.c.b16 %v198, %v194
    %v247 = vpack.c.b16 %v199, %v195
    %v248 = vpack.c.b16 %v204, %v200
    %v249 = vpack.c.b16 %v205, %v201
    %v250 = vpack.c.b16 %v206, %v202
    %v251 = vpack.c.b16 %v207, %v203
    %v252 = vpack.c.b16 %v212, %v208
    %v253 = vpack.c.b16 %v213, %v209
    %v254 = vpack.c.b16 %v214, %v210
    %v255 = vpack.c.b16 %v215, %v211
    %v256 = vpack.c.b16 %v220, %v216
    %v257 = vpack.c.b16 %v221, %v217
    %v258 = vpack.c.b16 %v222, %v218
    %v259 = vpack.c.b16 %v223, %v219
    %v260 = vpack.c.b16 %v228, %v224
    %v261 = vpack.c.b16 %v229, %v225
    %v262 = vpack.c.b16 %v230, %v226
    %v263 = vpack.c.b16 %v231, %v227
    %296 = vmatprep.subr.bf16.mxu0 %v261
    %297 = vmatpush1.bf16.msra.mxu0 %v260
    %298 = vmatprep.subr.bf16.mxu0 %v257
    %299 = vmatpush1.bf16.msra.mxu0 %v256
    %300 = vmatprep.subr.bf16.mxu0 %v253
    %301 = vmatpush1.bf16.msra.mxu0 %v252
    %302 = vmatprep.subr.bf16.mxu0 %v249
    %303 = vmatpush1.bf16.msra.mxu0 %v248
    %304 = vmatprep.subr.bf16.mxu0 %v245
    %305 = vmatpush1.bf16.msra.mxu0 %v244
    %306 = vmatprep.subr.bf16.mxu0 %v241
    %307 = vmatpush1.bf16.msra.mxu0 %v240
    %308 = vmatprep.subr.bf16.mxu0 %v237
    %309 = vmatpush1.bf16.msra.mxu0 %v236
    %310 = vmatprep.subr.bf16.mxu0 %v233
    %311 = vmatpush1.bf16.msra.mxu0 %v232
    %312 = vmatprep.subr.bf16.mxu0 0
    %313 = vmatpush2.bf16.msra.mxu0 0
    %314 = vmatprep.subr.bf16.mxu0 0
    %315 = vmatpush2.bf16.msra.mxu0 0
    %316 = vmatprep.subr.bf16.mxu0 0
    %317 = vmatpush2.bf16.msra.mxu0 0
    %318 = vmatprep.subr.bf16.mxu0 0
    %319 = vmatpush2.bf16.msra.mxu0 0
    %320 = vmatprep.subr.bf16.mxu0 0
    %321 = vmatpush2.bf16.msra.mxu0 0
    %322 = vmatprep.subr.bf16.mxu0 0
    %323 = vmatpush2.bf16.msra.mxu0 0
    %324 = vmatprep.subr.bf16.mxu0 0
    %325 = vmatpush2.bf16.msra.mxu0 0
    %326 = vmatprep.subr.bf16.mxu0 0
    %327 = vmatpush2.bf16.msra.mxu0 0
    %328 = vmatprep.mubr.bf16.mxu0 0
    %329 = vmatmul.mubr.bf16.gmra.mxu0 %v134
    %v330 = vpop.f32.mrf.mxu0
    %v331 = vadd.f32 %v113, %v330
    %v332 = vpop.f32.mrf.mxu0
    %v333 = vadd.f32 %v117, %v332
    %v334 = vpop.f32.mrf.mxu0
    %v335 = vadd.f32 %v113, %v334
    %v336 = vpop.f32.mrf.mxu0
    %v337 = vadd.f32 %v117, %v336
    %338 = vdwg.mxu0
    %339 = vmatprep.subr.bf16.mxu0 %v263
    %340 = vmatpush1.bf16.msra.mxu0 %v262
    %341 = vmatprep.subr.bf16.mxu0 %v259
    %342 = vmatpush1.bf16.msra.mxu0 %v258
    %343 = vmatprep.subr.bf16.mxu0 %v255
    %344 = vmatpush1.bf16.msra.mxu0 %v254
    %345 = vmatprep.subr.bf16.mxu0 %v251
    %346 = vmatpush1.bf16.msra.mxu0 %v250
    %347 = vmatprep.subr.bf16.mxu0 %v247
    %348 = vmatpush1.bf16.msra.mxu0 %v246
    %349 = vmatprep.subr.bf16.mxu0 %v243
    %350 = vmatpush1.bf16.msra.mxu0 %v242
    %351 = vmatprep.subr.bf16.mxu0 %v239
    %352 = vmatpush1.bf16.msra.mxu0 %v238
    %353 = vmatprep.subr.bf16.mxu0 %v235
    %354 = vmatpush1.bf16.msra.mxu0 %v234
    %355 = vmatprep.subr.bf16.mxu0 0
    %356 = vmatpush2.bf16.msra.mxu0 0
    %357 = vmatprep.subr.bf16.mxu0 0
    %358 = vmatpush2.bf16.msra.mxu0 0
    %359 = vmatprep.subr.bf16.mxu0 0
    %360 = vmatpush2.bf16.msra.mxu0 0
    %361 = vmatprep.subr.bf16.mxu0 0
    %362 = vmatpush2.bf16.msra.mxu0 0
    %363 = vmatprep.subr.bf16.mxu0 0
    %364 = vmatpush2.bf16.msra.mxu0 0
    %365 = vmatprep.subr.bf16.mxu0 0
    %366 = vmatpush2.bf16.msra.mxu0 0
    %367 = vmatprep.subr.bf16.mxu0 0
    %368 = vmatpush2.bf16.msra.mxu0 0
    %369 = vmatprep.subr.bf16.mxu0 0
    %370 = vmatpush2.bf16.msra.mxu0 0
    %371 = vmatprep.mubr.bf16.mxu0 0
    %372 = vmatmul.mubr.bf16.gmra.mxu0 %v134
    %v373 = vpop.f32.mrf.mxu0
    %v374 = vadd.f32 %v121, %v373
    %v375 = vpop.f32.mrf.mxu0
    %v376 = vadd.f32 %v125, %v375
    %v377 = vpop.f32.mrf.mxu0
    %v378 = vadd.f32 %v121, %v377
    %v379 = vpop.f32.mrf.mxu0
    %v380 = vadd.f32 %v125, %v379
    %381 = vdwg.mxu0
    %v382 = vmul.f32 %v331, 0.5
    %v383 = vmul.f32 %v333, 0.5
    %v384 = vmul.f32 %v374, 0.5
    %v385 = vmul.f32 %v376, 0.5
    %v386 = vmul.f32 %v335, 0.5
    %v387 = vmul.f32 %v337, 0.5
    %v388 = vmul.f32 %v378, 0.5
    %v389 = vmul.f32 %v380, 0.5
    %v390 = vmul.f32 %v331, 0.044715
    %v391 = vmul.f32 %v333, 0.044715
    %v392 = vmul.f32 %v374, 0.044715
    %v393 = vmul.f32 %v376, 0.044715
    %v394 = vmul.f32 %v335, 0.044715
    %v395 = vmul.f32 %v337, 0.044715
    %v396 = vmul.f32 %v378, 0.044715
    %v397 = vmul.f32 %v380, 0.044715
    %v398 = vmul.f32 %v390, %v331
    %v399 = vmul.f32 %v391, %v333
    %v400 = vmul.f32 %v392, %v374
    %v401 = vmul.f32 %v393, %v376
    %v402 = vmul.f32 %v394, %v335
    %v403 = vmul.f32 %v395, %v337
    %v404 = vmul.f32 %v396, %v378
    %v405 = vmul.f32 %v397, %v380
    %v406 = vmul.f32 %v398, %v331
    %v407 = vmul.f32 %v399, %v333
    %v408 = vmul.f32 %v400, %v374
    %v409 = vmul.f32 %v401, %v376
    %v410 = vmul.f32 %v402, %v335
    %v411 = vmul.f32 %v403, %v337
    %v412 = vmul.f32 %v404, %v378
    %v413 = vmul.f32 %v405, %v380
    %v414 = vadd.f32 %v331, %v406
    %v415 = vadd.f32 %v333, %v407
    %v416 = vadd.f32 %v374, %v408
    %v417 = vadd.f32 %v376, %v409
    %v418 = vadd.f32 %v335, %v410
    %v419 = vadd.f32 %v337, %v411
    %v420 = vadd.f32 %v378, %v412
    %v421 = vadd.f32 %v380, %v413
    %v422 = vmul.f32 %v414, 0.7978846
    %v423 = vmul.f32 %v415, 0.7978846
    %v424 = vmul.f32 %v416, 0.7978846
    %v425 = vmul.f32 %v417, 0.7978846
    %v426 = vmul.f32 %v418, 0.7978846
    %v427 = vmul.f32 %v419, 0.7978846
    %v428 = vmul.f32 %v420, 0.7978846
    %v429 = vmul.f32 %v421, 0.7978846
    %v430 = vtanh.pop %v422
    %v431 = vtanh.pop %v423
    %v432 = vtanh.pop %v424
    %v433 = vtanh.pop %v425
    %v434 = vtanh.pop %v426
    %v435 = vtanh.pop %v427
    %v436 = vtanh.pop %v428
    %v437 = vtanh.pop %v429
    %v438 = vadd.f32 %v430, 1.0
    %v439 = vadd.f32 %v431, 1.0
    %v440 = vadd.f32 %v432, 1.0
    %v441 = vadd.f32 %v433, 1.0
    %v442 = vadd.f32 %v434, 1.0
    %v443 = vadd.f32 %v435, 1.0
    %v444 = vadd.f32 %v436, 1.0
    %v445 = vadd.f32 %v437, 1.0
    %v446 = vmul.f32 %v382, %v438
    %v447 = vmul.f32 %v383, %v439
    %v448 = vmul.f32 %v384, %v440
    %v449 = vmul.f32 %v385, %v441
    %v450 = vmul.f32 %v386, %v442
    %v451 = vmul.f32 %v387, %v443
    %v452 = vmul.f32 %v388, %v444
    %v453 = vmul.f32 %v389, %v445
    %v454 = vpack.c.bf16 %v450, %v446
    %v455 = vpack.c.bf16 %v451, %v447
    %v456 = vpack.c.bf16 %v452, %v448
    %v457 = vpack.c.bf16 %v453, %v449
    %v458 = vld [vmem:[%s3] sm:$0xf]
    %v459 = vld [vmem:[%s3 + $0x4] sm:$0xf]
    %v460 = vld [vmem:[%s3 + $0x8] sm:$0xf]
    %v461 = vld [vmem:[%s3 + $0xc] sm:$0xf]
    %v462 = vld [vmem:[%s3 + $0x10] sm:$0xf]
    %v463 = vld [vmem:[%s3 + $0x14] sm:$0xf]
    %v464 = vld [vmem:[%s3 + $0x18] sm:$0xf]
    %v465 = vld [vmem:[%s3 + $0x1c] sm:$0xf]
    %v466 = vld [vmem:[%s3 + $0x20] sm:$0xf]
    %v467 = vld [vmem:[%s3 + $0x24] sm:$0xf]
    %v468 = vld [vmem:[%s3 + $0x28] sm:$0xf]
    %v469 = vld [vmem:[%s3 + $0x2c] sm:$0xf]
    %v470 = vld [vmem:[%s3 + $0x30] sm:$0xf]
    %v471 = vld [vmem:[%s3 + $0x34] sm:$0xf]
    %v472 = vld [vmem:[%s3 + $0x38] sm:$0xf]
    %v473 = vld [vmem:[%s3 + $0x3c] sm:$0xf]
    %v474 = vld [vmem:[%s3 + $0x40] sm:$0xf]
    %v475 = vld [vmem:[%s3 + $0x44] sm:$0xf]
    %v476 = vld [vmem:[%s3 + $0x48] sm:$0xf]
    %v477 = vld [vmem:[%s3 + $0x4c] sm:$0xf]
    %v478 = vld [vmem:[%s3 + $0x50] sm:$0xf]
    %v479 = vld [vmem:[%s3 + $0x54] sm:$0xf]
    %v480 = vld [vmem:[%s3 + $0x58] sm:$0xf]
    %v481 = vld [vmem:[%s3 + $0x5c] sm:$0xf]
    %v482 = vld [vmem:[%s3 + $0x60] sm:$0xf]
    %v483 = vld [vmem:[%s3 + $0x64] sm:$0xf]
    %v484 = vld [vmem:[%s3 + $0x68] sm:$0xf]
    %v485 = vld [vmem:[%s3 + $0x6c] sm:$0xf]
    %v486 = vld [vmem:[%s3 + $0x70] sm:$0xf]
    %v487 = vld [vmem:[%s3 + $0x74] sm:$0xf]
    %v488 = vld [vmem:[%s3 + $0x78] sm:$0xf]
    %v489 = vld [vmem:[%s3 + $0x7c] sm:$0xf]
    %v490 = vld [vmem:[%s3 + $0x80] sm:$0xf]
    %v491 = vld [vmem:[%s3 + $0x84] sm:$0xf]
    %v492 = vld [vmem:[%s3 + $0x88] sm:$0xf]
    %v493 = vld [vmem:[%s3 + $0x8c] sm:$0xf]
    %v494 = vld [vmem:[%s3 + $0x90] sm:$0xf]
    %v495 = vld [vmem:[%s3 + $0x94] sm:$0xf]
    %v496 = vld [vmem:[%s3 + $0x98] sm:$0xf]
    %v497 = vld [vmem:[%s3 + $0x9c] sm:$0xf]
    %v498 = vld [vmem:[%s3 + $0xa0] sm:$0xf]
    %v499 = vld [vmem:[%s3 + $0xa4] sm:$0xf]
    %v500 = vld [vmem:[%s3 + $0xa8] sm:$0xf]
    %v501 = vld [vmem:[%s3 + $0xac] sm:$0xf]
    %v502 = vld [vmem:[%s3 + $0xb0] sm:$0xf]
    %v503 = vld [vmem:[%s3 + $0xb4] sm:$0xf]
    %v504 = vld [vmem:[%s3 + $0xb8] sm:$0xf]
    %v505 = vld [vmem:[%s3 + $0xbc] sm:$0xf]
    %v506 = vld [vmem:[%s3 + $0xc0] sm:$0xf]
    %v507 = vld [vmem:[%s3 + $0xc4] sm:$0xf]
    %v508 = vld [vmem:[%s3 + $0xc8] sm:$0xf]
    %v509 = vld [vmem:[%s3 + $0xcc] sm:$0xf]
    %v510 = vld [vmem:[%s3 + $0xd0] sm:$0xf]
    %v511 = vld [vmem:[%s3 + $0xd4] sm:$0xf]
    %v512 = vld [vmem:[%s3 + $0xd8] sm:$0xf]
    %v513 = vld [vmem:[%s3 + $0xdc] sm:$0xf]
    %v514 = vld [vmem:[%s3 + $0xe0] sm:$0xf]
    %v515 = vld [vmem:[%s3 + $0xe4] sm:$0xf]
    %v516 = vld [vmem:[%s3 + $0xe8] sm:$0xf]
    %v517 = vld [vmem:[%s3 + $0xec] sm:$0xf]
    %v518 = vld [vmem:[%s3 + $0xf0] sm:$0xf]
    %v519 = vld [vmem:[%s3 + $0xf4] sm:$0xf]
    %v520 = vld [vmem:[%s3 + $0xf8] sm:$0xf]
    %v521 = vld [vmem:[%s3 + $0xfc] sm:$0xf]
    %v522 = vld [vmem:[#allocation4] sm:$0x1]
    %v524 = vlaneseq
    %v525 = vshrl.u32 %v524, 7
    %v526 = vsub.s32 0, %v525
    %v527 = vrot.slane %v522, %v526
    %v593 = vunpack.c.l.b16 %v458
    %v594 = vunpack.c.l.b16 %v459
    %v595 = vunpack.c.l.b16 %v460
    %v596 = vunpack.c.l.b16 %v461
    %v597 = vunpack.c.l.b16 %v462
    %v598 = vunpack.c.l.b16 %v463
    %v599 = vunpack.c.l.b16 %v464
    %v600 = vunpack.c.l.b16 %v465
    %v601 = vunpack.c.l.b16 %v466
    %v602 = vunpack.c.l.b16 %v467
    %v603 = vunpack.c.l.b16 %v468
    %v604 = vunpack.c.l.b16 %v469
    %v605 = vunpack.c.l.b16 %v470
    %v606 = vunpack.c.l.b16 %v471
    %v607 = vunpack.c.l.b16 %v472
    %v608 = vunpack.c.l.b16 %v473
    %v609 = vunpack.c.l.b16 %v474
    %v610 = vunpack.c.l.b16 %v475
    %v611 = vunpack.c.l.b16 %v476
    %v612 = vunpack.c.l.b16 %v477
    %v613 = vunpack.c.l.b16 %v478
    %v614 = vunpack.c.l.b16 %v479
    %v615 = vunpack.c.l.b16 %v480
    %v616 = vunpack.c.l.b16 %v481
    %v617 = vunpack.c.l.b16 %v482
    %v618 = vunpack.c.l.b16 %v483
    %v619 = vunpack.c.l.b16 %v484
    %v620 = vunpack.c.l.b16 %v485
    %v621 = vunpack.c.l.b16 %v486
    %v622 = vunpack.c.l.b16 %v487
    %v623 = vunpack.c.l.b16 %v488
    %v624 = vunpack.c.l.b16 %v489
    %v625 = vunpack.c.l.b16 %v490
    %v626 = vunpack.c.l.b16 %v491
    %v627 = vunpack.c.l.b16 %v492
    %v628 = vunpack.c.l.b16 %v493
    %v629 = vunpack.c.l.b16 %v494
    %v630 = vunpack.c.l.b16 %v495
    %v631 = vunpack.c.l.b16 %v496
    %v632 = vunpack.c.l.b16 %v497
    %v633 = vunpack.c.l.b16 %v498
    %v634 = vunpack.c.l.b16 %v499
    %v635 = vunpack.c.l.b16 %v500
    %v636 = vunpack.c.l.b16 %v501
    %v637 = vunpack.c.l.b16 %v502
    %v638 = vunpack.c.l.b16 %v503
    %v639 = vunpack.c.l.b16 %v504
    %v640 = vunpack.c.l.b16 %v505
    %v641 = vunpack.c.l.b16 %v506
    %v642 = vunpack.c.l.b16 %v507
    %v643 = vunpack.c.l.b16 %v508
    %v644 = vunpack.c.l.b16 %v509
    %v645 = vunpack.c.l.b16 %v510
    %v646 = vunpack.c.l.b16 %v511
    %v647 = vunpack.c.l.b16 %v512
    %v648 = vunpack.c.l.b16 %v513
    %v649 = vunpack.c.l.b16 %v514
    %v650 = vunpack.c.l.b16 %v515
    %v651 = vunpack.c.l.b16 %v516
    %v652 = vunpack.c.l.b16 %v517
    %v653 = vunpack.c.l.b16 %v518
    %v654 = vunpack.c.l.b16 %v519
    %v655 = vunpack.c.l.b16 %v520
    %v656 = vunpack.c.l.b16 %v521
    %v657 = vpack.c.b16 %v594, %v593
    %v658 = vpack.c.b16 %v596, %v595
    %v659 = vpack.c.b16 %v598, %v597
    %v660 = vpack.c.b16 %v600, %v599
    %v661 = vpack.c.b16 %v602, %v601
    %v662 = vpack.c.b16 %v604, %v603
    %v663 = vpack.c.b16 %v606, %v605
    %v664 = vpack.c.b16 %v608, %v607
    %v665 = vpack.c.b16 %v610, %v609
    %v666 = vpack.c.b16 %v612, %v611
    %v667 = vpack.c.b16 %v614, %v613
    %v668 = vpack.c.b16 %v616, %v615
    %v669 = vpack.c.b16 %v618, %v617
    %v670 = vpack.c.b16 %v620, %v619
    %v671 = vpack.c.b16 %v622, %v621
    %v672 = vpack.c.b16 %v624, %v623
    %v673 = vpack.c.b16 %v626, %v625
    %v674 = vpack.c.b16 %v628, %v627
    %v675 = vpack.c.b16 %v630, %v629
    %v676 = vpack.c.b16 %v632, %v631
    %v677 = vpack.c.b16 %v634, %v633
    %v678 = vpack.c.b16 %v636, %v635
    %v679 = vpack.c.b16 %v638, %v637
    %v680 = vpack.c.b16 %v640, %v639
    %v681 = vpack.c.b16 %v642, %v641
    %v682 = vpack.c.b16 %v644, %v643
    %v683 = vpack.c.b16 %v646, %v645
    %v684 = vpack.c.b16 %v648, %v647
    %v685 = vpack.c.b16 %v650, %v649
    %v686 = vpack.c.b16 %v652, %v651
    %v687 = vpack.c.b16 %v654, %v653
    %v688 = vpack.c.b16 %v656, %v655
    %721 = vmatprep.subr.bf16.mxu0 0
    %722 = vmatpush1.bf16.msra.mxu0 %v664
    %723 = vmatprep.subr.bf16.mxu0 0
    %724 = vmatpush1.bf16.msra.mxu0 %v663
    %725 = vmatprep.subr.bf16.mxu0 0
    %726 = vmatpush1.bf16.msra.mxu0 %v662
    %727 = vmatprep.subr.bf16.mxu0 0
    %728 = vmatpush1.bf16.msra.mxu0 %v661
    %729 = vmatprep.subr.bf16.mxu0 0
    %730 = vmatpush1.bf16.msra.mxu0 %v660
    %731 = vmatprep.subr.bf16.mxu0 0
    %732 = vmatpush1.bf16.msra.mxu0 %v659
    %733 = vmatprep.subr.bf16.mxu0 0
    %734 = vmatpush1.bf16.msra.mxu0 %v658
    %735 = vmatprep.subr.bf16.mxu0 0
    %736 = vmatpush1.bf16.msra.mxu0 %v657
    %737 = vmatprep.subr.bf16.mxu0 0
    %738 = vmatpush2.bf16.msra.mxu0 %v672
    %739 = vmatprep.subr.bf16.mxu0 0
    %740 = vmatpush2.bf16.msra.mxu0 %v671
    %741 = vmatprep.subr.bf16.mxu0 0
    %742 = vmatpush2.bf16.msra.mxu0 %v670
    %743 = vmatprep.subr.bf16.mxu0 0
    %744 = vmatpush2.bf16.msra.mxu0 %v669
    %745 = vmatprep.subr.bf16.mxu0 0
    %746 = vmatpush2.bf16.msra.mxu0 %v668
    %747 = vmatprep.subr.bf16.mxu0 0
    %748 = vmatpush2.bf16.msra.mxu0 %v667
    %749 = vmatprep.subr.bf16.mxu0 0
    %750 = vmatpush2.bf16.msra.mxu0 %v666
    %751 = vmatprep.subr.bf16.mxu0 0
    %752 = vmatpush2.bf16.msra.mxu0 %v665
    %753 = vmatprep.mubr.bf16.mxu0 %v455
    %754 = vmatmul.mubr.bf16.gmra.mxu0 %v454
    %v755 = vpop.f32.mrf.mxu0
    %v756 = vadd.f32 %v527, %v755
    %v757 = vpop.f32.mrf.mxu0
    %v758 = vpop.f32.mrf.mxu0
    %v759 = vadd.f32 %v527, %v758
    %v760 = vpop.f32.mrf.mxu0
    %761 = vdwg.mxu0
    %762 = vmatprep.subr.bf16.mxu0 0
    %763 = vmatpush1.bf16.msra.mxu0 %v680
    %764 = vmatprep.subr.bf16.mxu0 0
    %765 = vmatpush1.bf16.msra.mxu0 %v679
    %766 = vmatprep.subr.bf16.mxu0 0
    %767 = vmatpush1.bf16.msra.mxu0 %v678
    %768 = vmatprep.subr.bf16.mxu0 0
    %769 = vmatpush1.bf16.msra.mxu0 %v677
    %770 = vmatprep.subr.bf16.mxu0 0
    %771 = vmatpush1.bf16.msra.mxu0 %v676
    %772 = vmatprep.subr.bf16.mxu0 0
    %773 = vmatpush1.bf16.msra.mxu0 %v675
    %774 = vmatprep.subr.bf16.mxu0 0
    %775 = vmatpush1.bf16.msra.mxu0 %v674
    %776 = vmatprep.subr.bf16.mxu0 0
    %777 = vmatpush1.bf16.msra.mxu0 %v673
    %778 = vmatprep.subr.bf16.mxu0 0
    %779 = vmatpush2.bf16.msra.mxu0 %v688
    %780 = vmatprep.subr.bf16.mxu0 0
    %781 = vmatpush2.bf16.msra.mxu0 %v687
    %782 = vmatprep.subr.bf16.mxu0 0
    %783 = vmatpush2.bf16.msra.mxu0 %v686
    %784 = vmatprep.subr.bf16.mxu0 0
    %785 = vmatpush2.bf16.msra.mxu0 %v685
    %786 = vmatprep.subr.bf16.mxu0 0
    %787 = vmatpush2.bf16.msra.mxu0 %v684
    %788 = vmatprep.subr.bf16.mxu0 0
    %789 = vmatpush2.bf16.msra.mxu0 %v683
    %790 = vmatprep.subr.bf16.mxu0 0
    %791 = vmatpush2.bf16.msra.mxu0 %v682
    %792 = vmatprep.subr.bf16.mxu0 0
    %793 = vmatpush2.bf16.msra.mxu0 %v681
    %794 = vmatprep.mubr.bf16.mxu0 %v457
    %795 = vmatmul.mubr.bf16.gmra.mxu0 %v456
    %v796 = vpop.f32.mrf.mxu0
    %v797 = vadd.f32 %v756, %v796
    %v798 = vpop.f32.mrf.mxu0
    %v799 = vpop.f32.mrf.mxu0
    %v800 = vadd.f32 %v759, %v799
    %v801 = vpop.f32.mrf.mxu0
    %802 = vdwg.mxu0
    %v803 = vunpack.c.l.bf16 %v74
    %v804 = vunpack.c.l.bf16 %v75
    %v805 = vadd.f32 %v797, %v803
    %v806 = vadd.f32 %v800, %v804
    %807 = vadd.xlane.f32.xlu0 %v805
    %v808 = vpop.xlane.xlu0 %807
    %809 = vadd.xlane.f32.xlu0 %v806
    %v810 = vpop.xlane.xlu0 %809
    %v811 = vrcp.pop 128.0
    %v812 = vmul.f32 %v808, %v811
    %v813 = vmul.f32 %v810, %v811
    %v814 = vsub.f32 %v805, %v812
    %v815 = vsub.f32 %v806, %v813
    %v816 = vmul.f32 %v814, %v814
    %v817 = vmul.f32 %v815, %v815
    %818 = vadd.xlane.f32.xlu0 %v816
    %v819 = vpop.xlane.xlu0 %818
    %820 = vadd.xlane.f32.xlu0 %v817
    %v821 = vpop.xlane.xlu0 %820
    %v822 = vmul.f32 %v819, %v811
    %v823 = vmul.f32 %v821, %v811
    %v824 = vadd.f32 %v822, 1e-12
    %v825 = vadd.f32 %v823, 1e-12
    %v826 = vrsqrt.pop %v824
    %v827 = vrsqrt.pop %v825
    %v828 = vmul.f32 %v814, %v826
    %v829 = vmul.f32 %v815, %v827
    %v830 = vld [vmem:[#allocation6] sm:$0x1]
    %v832 = vlaneseq
    %v833 = vshrl.u32 %v832, 7
    %v834 = vsub.s32 0, %v833
    %v835 = vrot.slane %v830, %v834
    %v837 = vmul.f32 %v828, %v835
    %v838 = vmul.f32 %v829, %v835
    %v839 = vld [vmem:[#allocation7] sm:$0x1]
    %v841 = vlaneseq
    %v842 = vshrl.u32 %v841, 7
    %v843 = vsub.s32 0, %v842
    %v844 = vrot.slane %v839, %v843
    %v846 = vadd.f32 %v837, %v844
    %v847 = vadd.f32 %v838, %v844
    %v848 = vpack.c.bf16 %v847, %v846
    %v850 = vunpack.c.l.b16 %v848
    %v851 = vunpack.c.h.b16 %v848
    %v852 = vpack.c.b16 %v850, %v850
    %v853 = vpack.c.b16 %v851, %v851
    %856 = vst [vmem:[%s7] sm:$0xf] %v852
    %857 = vst [vmem:[%s7 + $0x4] sm:$0xf] %v853
    // Predicated region
    $region46: #{bert_seq_noft_forward.14} parent=1 // pred_check
      _
    $region47: #{bert_seq_noft_forward.14} parent=1 // pred_check_branch
      %859 = sbr.rel (0) target = $region49
    $region48: #{bert_seq_noft_forward.14} parent=1 // pred_region
      _
    $region49: #{bert_seq_noft_forward.14} parent=1 // pred_fallthru
      _
    // Predicated region
    $region50: #{bert_seq_noft_forward.14} parent=1 // pred_check
      _
    $region51: #{bert_seq_noft_forward.14} parent=1 // pred_check_branch
      %861 = sbr.rel (0) target = $region53
    $region52: #{bert_seq_noft_forward.14} parent=1 // pred_region
      _
    $region53: #{bert_seq_noft_forward.14} parent=1 // pred_fallthru
      _
    %862 = vsyncpa [#allocation3], 1
    %863 = vsyncpa [#allocation5], 1
    %864 = vsyncpa [#allocation8], 1

// kernel: bert_seq_noft_forward.19
$region0: #{bert_seq_noft_forward.19}
  #allocation0 [shape = 'u32[]', space=smem, size = 0x4, offset = 0x4, fixed_abs, tag = 'smem constant byte address 0x4 - core index']
  #allocation1 [shape = 'u32[144,128]{1,0:T(1,128)}', space=vmem, size = 0x12000, scoped, tag = 'internal scratch']
  %s0 = inlined_call_operand.vmem [shape: bf16[2,128], index: 0, kind: input, shape index: {}]
  %s1 = inlined_call_operand.vmem [shape: bf16[128,128], index: 1, kind: input, shape index: {}]
  %s2 = inlined_call_operand.vmem [shape: f32[1,128], index: 2, kind: input, shape index: {}]
  %s3 = inlined_call_operand.vmem [shape: bf16[128,3], index: 3, kind: input, shape index: {}]
  %s4 = inlined_call_operand.vmem [shape: f32[1,3], index: 4, kind: input, shape index: {}]
  %s5 = inlined_call_operand.hbm [shape: f32[2,3], index: 5, kind: output, shape index: {}]
  %s6 = sld [smem:[#allocation0]]
  $region30: #{bert_seq_noft_forward.19} parent=0
    _
  %s8 = ssub.s32 1, %s6
  %s9 = scalar_select 0, %s8, %s6
  $region1: #{bert_seq_noft_forward.19} parent=0
    #allocation2 [shape = 'u8[1024]{0}', space=vmem, size = 0x400, scoped, tag = 'output window, operand 0, single buffered']
    #allocation3 [shape = 's32[1]{0}', space=sflag, size = 0x4, scoped, tag = 'scoped memory for bert_seq_noft_forward.19']
    %10 = vsyncpa [#allocation3], 0
    // Predicated region
    $region2: #{bert_seq_noft_forward.19} parent=1 // pred_check
      _
    $region3: #{bert_seq_noft_forward.19} parent=1 // pred_check_branch
      %12 = sbr.rel (0) target = $region5
    $region4: #{bert_seq_noft_forward.19} parent=1 // pred_region
      _
    $region5: #{bert_seq_noft_forward.19} parent=1 // pred_fallthru
      _
    // Predicated region
    $region6: #{bert_seq_noft_forward.19} parent=1 // pred_check
      _
    $region7: #{bert_seq_noft_forward.19} parent=1 // pred_check_branch
      %14 = sbr.rel (0) target = $region9
    $region8: #{bert_seq_noft_forward.19} parent=1 // pred_region
      _
    $region9: #{bert_seq_noft_forward.19} parent=1 // pred_fallthru
      _
    // Predicated region
    $region10: #{bert_seq_noft_forward.19} parent=1 // pred_check
      _
    $region11: #{bert_seq_noft_forward.19} parent=1 // pred_check_branch
      %16 = sbr.rel (0) target = $region13
    $region12: #{bert_seq_noft_forward.19} parent=1 // pred_region
      _
    $region13: #{bert_seq_noft_forward.19} parent=1 // pred_fallthru
      _
    // Predicated region
    $region14: #{bert_seq_noft_forward.19} parent=1 // pred_check
      _
    $region15: #{bert_seq_noft_forward.19} parent=1 // pred_check_branch
      %18 = sbr.rel (0) target = $region17
    $region16: #{bert_seq_noft_forward.19} parent=1 // pred_region
      _
    $region17: #{bert_seq_noft_forward.19} parent=1 // pred_fallthru
      _
    // Predicated region
    $region18: #{bert_seq_noft_forward.19} parent=1 // pred_check
      _
    $region19: #{bert_seq_noft_forward.19} parent=1 // pred_check_branch
      %20 = sbr.rel (0) target = $region21
    $region20: #{bert_seq_noft_forward.19} parent=1 // pred_region
      _
    $region21: #{bert_seq_noft_forward.19} parent=1 // pred_fallthru
      _
    %v22 = vld [vmem:[%s0] sm:$0x1]
    %v23 = vld [vmem:[%s1] sm:$0xf]
    %v24 = vld [vmem:[%s1 + $0x4] sm:$0xf]
    %v25 = vld [vmem:[%s1 + $0x8] sm:$0xf]
    %v26 = vld [vmem:[%s1 + $0xc] sm:$0xf]
    %v27 = vld [vmem:[%s1 + $0x10] sm:$0xf]
    %v28 = vld [vmem:[%s1 + $0x14] sm:$0xf]
    %v29 = vld [vmem:[%s1 + $0x18] sm:$0xf]
    %v30 = vld [vmem:[%s1 + $0x1c] sm:$0xf]
    %v31 = vld [vmem:[%s1 + $0x20] sm:$0xf]
    %v32 = vld [vmem:[%s1 + $0x24] sm:$0xf]
    %v33 = vld [vmem:[%s1 + $0x28] sm:$0xf]
    %v34 = vld [vmem:[%s1 + $0x2c] sm:$0xf]
    %v35 = vld [vmem:[%s1 + $0x30] sm:$0xf]
    %v36 = vld [vmem:[%s1 + $0x34] sm:$0xf]
    %v37 = vld [vmem:[%s1 + $0x38] sm:$0xf]
    %v38 = vld [vmem:[%s1 + $0x3c] sm:$0xf]
    %v39 = vld [vmem:[%s2] sm:$0x1]
    %v41 = vlaneseq
    %v42 = vshrl.u32 %v41, 7
    %v43 = vsub.s32 0, %v42
    %v44 = vrot.slane %v39, %v43
    %v62 = vunpack.c.l.b16 %v23
    %v63 = vunpack.c.l.b16 %v24
    %v64 = vunpack.c.l.b16 %v25
    %v65 = vunpack.c.l.b16 %v26
    %v66 = vunpack.c.l.b16 %v27
    %v67 = vunpack.c.l.b16 %v28
    %v68 = vunpack.c.l.b16 %v29
    %v69 = vunpack.c.l.b16 %v30
    %v70 = vunpack.c.l.b16 %v31
    %v71 = vunpack.c.l.b16 %v32
    %v72 = vunpack.c.l.b16 %v33
    %v73 = vunpack.c.l.b16 %v34
    %v74 = vunpack.c.l.b16 %v35
    %v75 = vunpack.c.l.b16 %v36
    %v76 = vunpack.c.l.b16 %v37
    %v77 = vunpack.c.l.b16 %v38
    %v78 = vpack.c.b16 %v63, %v62
    %v79 = vpack.c.b16 %v65, %v64
    %v80 = vpack.c.b16 %v67, %v66
    %v81 = vpack.c.b16 %v69, %v68
    %v82 = vpack.c.b16 %v71, %v70
    %v83 = vpack.c.b16 %v73, %v72
    %v84 = vpack.c.b16 %v75, %v74
    %v85 = vpack.c.b16 %v77, %v76
    %94 = vmatprep.subr.bf16.mxu0 0
    %95 = vmatpush1.bf16.msra.mxu0 %v85
    %96 = vmatprep.subr.bf16.mxu0 0
    %97 = vmatpush1.bf16.msra.mxu0 %v84
    %98 = vmatprep.subr.bf16.mxu0 0
    %99 = vmatpush1.bf16.msra.mxu0 %v83
    %100 = vmatprep.subr.bf16.mxu0 0
    %101 = vmatpush1.bf16.msra.mxu0 %v82
    %102 = vmatprep.subr.bf16.mxu0 0
    %103 = vmatpush1.bf16.msra.mxu0 %v81
    %104 = vmatprep.subr.bf16.mxu0 0
    %105 = vmatpush1.bf16.msra.mxu0 %v80
    %106 = vmatprep.subr.bf16.mxu0 0
    %107 = vmatpush1.bf16.msra.mxu0 %v79
    %108 = vmatprep.subr.bf16.mxu0 0
    %109 = vmatpush1.bf16.msra.mxu0 %v78
    %110 = vmatprep.subr.bf16.mxu0 0
    %111 = vmatpush2.bf16.msra.mxu0 0
    %112 = vmatprep.subr.bf16.mxu0 0
    %113 = vmatpush2.bf16.msra.mxu0 0
    %114 = vmatprep.subr.bf16.mxu0 0
    %115 = vmatpush2.bf16.msra.mxu0 0
    %116 = vmatprep.subr.bf16.mxu0 0
    %117 = vmatpush2.bf16.msra.mxu0 0
    %118 = vmatprep.subr.bf16.mxu0 0
    %119 = vmatpush2.bf16.msra.mxu0 0
    %120 = vmatprep.subr.bf16.mxu0 0
    %121 = vmatpush2.bf16.msra.mxu0 0
    %122 = vmatprep.subr.bf16.mxu0 0
    %123 = vmatpush2.bf16.msra.mxu0 0
    %124 = vmatprep.subr.bf16.mxu0 0
    %125 = vmatpush2.bf16.msra.mxu0 0
    %126 = vmatprep.mubr.bf16.mxu0 0
    %127 = vmatmul.mubr.bf16.gmra.mxu0 %v22
    %v128 = vpop.f32.mrf.mxu0
    %v129 = vadd.f32 %v44, %v128
    %v130 = vpop.f32.mrf.mxu0
    %v131 = vpop.f32.mrf.mxu0
    %v132 = vpop.f32.mrf.mxu0
    %133 = vdwg.mxu0
    %v134 = vtanh.pop %v129
    %v135 = vpack.c.bf16 %v134, %v134
    %v136 = vld [vmem:[%s3] sm:$0xf]
    %v137 = vld [vmem:[%s3 + $0x4] sm:$0xf]
    %v138 = vld [vmem:[%s3 + $0x8] sm:$0xf]
    %v139 = vld [vmem:[%s3 + $0xc] sm:$0xf]
    %v140 = vld [vmem:[%s3 + $0x10] sm:$0xf]
    %v141 = vld [vmem:[%s3 + $0x14] sm:$0xf]
    %v142 = vld [vmem:[%s3 + $0x18] sm:$0xf]
    %v143 = vld [vmem:[%s3 + $0x1c] sm:$0xf]
    %v144 = vld [vmem:[%s3 + $0x20] sm:$0xf]
    %v145 = vld [vmem:[%s3 + $0x24] sm:$0xf]
    %v146 = vld [vmem:[%s3 + $0x28] sm:$0xf]
    %v147 = vld [vmem:[%s3 + $0x2c] sm:$0xf]
    %v148 = vld [vmem:[%s3 + $0x30] sm:$0xf]
    %v149 = vld [vmem:[%s3 + $0x34] sm:$0xf]
    %v150 = vld [vmem:[%s3 + $0x38] sm:$0xf]
    %v151 = vld [vmem:[%s3 + $0x3c] sm:$0xf]
    %v152 = vld [vmem:[%s4] sm:$0x1]
    %v154 = vlaneseq
    %v155 = vshrl.u32 %v154, 7
    %v156 = vsub.s32 0, %v155
    %v157 = vrot.slane %v152, %v156
    %v175 = vunpack.c.l.b16 %v136
    %v176 = vunpack.c.l.b16 %v137
    %v177 = vunpack.c.l.b16 %v138
    %v178 = vunpack.c.l.b16 %v139
    %v179 = vunpack.c.l.b16 %v140
    %v180 = vunpack.c.l.b16 %v141
    %v181 = vunpack.c.l.b16 %v142
    %v182 = vunpack.c.l.b16 %v143
    %v183 = vunpack.c.l.b16 %v144
    %v184 = vunpack.c.l.b16 %v145
    %v185 = vunpack.c.l.b16 %v146
    %v186 = vunpack.c.l.b16 %v147
    %v187 = vunpack.c.l.b16 %v148
    %v188 = vunpack.c.l.b16 %v149
    %v189 = vunpack.c.l.b16 %v150
    %v190 = vunpack.c.l.b16 %v151
    %v191 = vpack.c.b16 %v176, %v175
    %v192 = vpack.c.b16 %v178, %v177
    %v193 = vpack.c.b16 %v180, %v179
    %v194 = vpack.c.b16 %v182, %v181
    %v195 = vpack.c.b16 %v184, %v183
    %v196 = vpack.c.b16 %v186, %v185
    %v197 = vpack.c.b16 %v188, %v187
    %v198 = vpack.c.b16 %v190, %v189
    %207 = vmatprep.subr.bf16.mxu0 0
    %208 = vmatpush1.bf16.msra.mxu0 %v198
    %209 = vmatprep.subr.bf16.mxu0 0
    %210 = vmatpush1.bf16.msra.mxu0 %v197
    %211 = vmatprep.subr.bf16.mxu0 0
    %212 = vmatpush1.bf16.msra.mxu0 %v196
    %213 = vmatprep.subr.bf16.mxu0 0
    %214 = vmatpush1.bf16.msra.mxu0 %v195
    %215 = vmatprep.subr.bf16.mxu0 0
    %216 = vmatpush1.bf16.msra.mxu0 %v194
    %217 = vmatprep.subr.bf16.mxu0 0
    %218 = vmatpush1.bf16.msra.mxu0 %v193
    %219 = vmatprep.subr.bf16.mxu0 0
    %220 = vmatpush1.bf16.msra.mxu0 %v192
    %221 = vmatprep.subr.bf16.mxu0 0
    %222 = vmatpush1.bf16.msra.mxu0 %v191
    %223 = vmatprep.subr.bf16.mxu0 0
    %224 = vmatpush2.bf16.msra.mxu0 0
    %225 = vmatprep.subr.bf16.mxu0 0
    %226 = vmatpush2.bf16.msra.mxu0 0
    %227 = vmatprep.subr.bf16.mxu0 0
    %228 = vmatpush2.bf16.msra.mxu0 0
    %229 = vmatprep.subr.bf16.mxu0 0
    %230 = vmatpush2.bf16.msra.mxu0 0
    %231 = vmatprep.subr.bf16.mxu0 0
    %232 = vmatpush2.bf16.msra.mxu0 0
    %233 = vmatprep.subr.bf16.mxu0 0
    %234 = vmatpush2.bf16.msra.mxu0 0
    %235 = vmatprep.subr.bf16.mxu0 0
    %236 = vmatpush2.bf16.msra.mxu0 0
    %237 = vmatprep.subr.bf16.mxu0 0
    %238 = vmatpush2.bf16.msra.mxu0 0
    %239 = vmatprep.mubr.bf16.mxu0 0
    %240 = vmatmul.mubr.bf16.gmra.mxu0 %v135
    %v241 = vpop.f32.mrf.mxu0
    %v242 = vadd.f32 %v157, %v241
    %v243 = vpop.f32.mrf.mxu0
    %v244 = vpop.f32.mrf.mxu0
    %v245 = vpop.f32.mrf.mxu0
    %246 = vdwg.mxu0
    %vm247 = vcmask 17408
    %248 = vst.msk [vmem:[#allocation2] sm:$0x3] %vm247, %v242
    // Predicated region
    $region22: #{bert_seq_noft_forward.19} parent=1 // pred_check
      _
    $region23: #{bert_seq_noft_forward.19} parent=1 // pred_check_branch
      %250 = sbr.rel (0) target = $region25
    $region24: #{bert_seq_noft_forward.19} parent=1 // pred_region
      %s252 = ssub.s32 32, 32
      %253 = vsyncadd [#allocation3], %s252
      %s255 = sshll.u32 [#allocation2], 4
      %s256 = int_to_ptr.vmem [resolvable:$true] %s255
      %258 = dma.vmem_to_hbm [thread:$0]  %s256, 32, %s5, [#allocation3]
    $region25: #{bert_seq_noft_forward.19} parent=1 // pred_fallthru
      _
    // Predicated region
    $region26: #{bert_seq_noft_forward.19} parent=1 // pred_check
      _
    $region27: #{bert_seq_noft_forward.19} parent=1 // pred_check_branch
      %260 = sbr.rel (0) target = $region29
    $region28: #{bert_seq_noft_forward.19} parent=1 // pred_region
      %261 = dma.done [#allocation3], 32
    $region29: #{bert_seq_noft_forward.19} parent=1 // pred_fallthru
      _
    %262 = vsyncpa [#allocation3], 1

// kernel: bert_seq_noft_forward.18
$region0: #{bert_seq_noft_forward.18}
  #allocation0 [shape = 'u32[]', space=smem, size = 0x4, offset = 0x4, fixed_abs, tag = 'smem constant byte address 0x4 - core index']
  #allocation1 [shape = 'u32[144,128]{1,0:T(1,128)}', space=vmem, size = 0x12000, scoped, tag = 'internal scratch']
  %s0 = inlined_call_operand.vmem [shape: bf16[16,128], index: 0, kind: input, shape index: {}]
  %s1 = inlined_call_operand.vmem [shape: bf16[128,512], index: 1, kind: input, shape index: {}]
  %s2 = inlined_call_operand.vmem [shape: f32[1,512], index: 2, kind: input, shape index: {}]
  %s3 = inlined_call_operand.vmem [shape: bf16[512,128], index: 3, kind: input, shape index: {}]
  %s4 = inlined_call_operand.vmem [shape: f32[1,128], index: 4, kind: input, shape index: {}]
  %s5 = inlined_call_operand.vmem [shape: f32[1,128], index: 5, kind: input, shape index: {}]
  %s6 = inlined_call_operand.vmem [shape: f32[1,128], index: 6, kind: input, shape index: {}]
  %s7 = inlined_call_operand.vmem [shape: bf16[16,128], index: 7, kind: output, shape index: {}]
  %s8 = sld [smem:[#allocation0]]
  $region38: #{bert_seq_noft_forward.18} parent=0
    _
  %s10 = ssub.s32 1, %s8
  %s11 = scalar_select 0, %s10, %s8
  // Predicated region
  $region2: #{bert_seq_noft_forward.18} parent=0 // pred_check
    _
  $region3: #{bert_seq_noft_forward.18} parent=0 // pred_check_branch
    %13 = sbr.rel (0) target = $region5
  $region4: #{bert_seq_noft_forward.18} parent=0 // pred_region
    _
  $region5: #{bert_seq_noft_forward.18} parent=0 // pred_fallthru
    _
  // Predicated region
  $region6: #{bert_seq_noft_forward.18} parent=0 // pred_check
    _
  $region7: #{bert_seq_noft_forward.18} parent=0 // pred_check_branch
    %15 = sbr.rel (0) target = $region9
  $region8: #{bert_seq_noft_forward.18} parent=0 // pred_region
    _
  $region9: #{bert_seq_noft_forward.18} parent=0 // pred_fallthru
    _
  // Predicated region
  $region10: #{bert_seq_noft_forward.18} parent=0 // pred_check
    _
  $region11: #{bert_seq_noft_forward.18} parent=0 // pred_check_branch
    %17 = sbr.rel (0) target = $region13
  $region12: #{bert_seq_noft_forward.18} parent=0 // pred_region
    _
  $region13: #{bert_seq_noft_forward.18} parent=0 // pred_fallthru
    _
  // Predicated region
  $region14: #{bert_seq_noft_forward.18} parent=0 // pred_check
    _
  $region15: #{bert_seq_noft_forward.18} parent=0 // pred_check_branch
    %19 = sbr.rel (0) target = $region17
  $region16: #{bert_seq_noft_forward.18} parent=0 // pred_region
    _
  $region17: #{bert_seq_noft_forward.18} parent=0 // pred_fallthru
    _
  // Predicated region
  $region18: #{bert_seq_noft_forward.18} parent=0 // pred_check
    _
  $region19: #{bert_seq_noft_forward.18} parent=0 // pred_check_branch
    %21 = sbr.rel (0) target = $region21
  $region20: #{bert_seq_noft_forward.18} parent=0 // pred_region
    _
  $region21: #{bert_seq_noft_forward.18} parent=0 // pred_fallthru
    _
  // Predicated region
  $region22: #{bert_seq_noft_forward.18} parent=0 // pred_check
    _
  $region23: #{bert_seq_noft_forward.18} parent=0 // pred_check_branch
    %23 = sbr.rel (0) target = $region25
  $region24: #{bert_seq_noft_forward.18} parent=0 // pred_region
    _
  $region25: #{bert_seq_noft_forward.18} parent=0 // pred_fallthru
    _
  // Predicated region
  $region26: #{bert_seq_noft_forward.18} parent=0 // pred_check
    _
  $region27: #{bert_seq_noft_forward.18} parent=0 // pred_check_branch
    %25 = sbr.rel (0) target = $region29
  $region28: #{bert_seq_noft_forward.18} parent=0 // pred_region
    _
  $region29: #{bert_seq_noft_forward.18} parent=0 // pred_fallthru
    _
  %v27 = vld [vmem:[%s0] sm:$0xf]
  %v28 = vld [vmem:[%s0 + $0x4] sm:$0xf]
  %v29 = vld [vmem:[%s1] sm:$0xff]
  %v30 = vld [vmem:[%s1 + $0x8] sm:$0xff]
  %v31 = vld [vmem:[%s1 + $0x10] sm:$0xff]
  %v32 = vld [vmem:[%s1 + $0x18] sm:$0xff]
  %v33 = vld [vmem:[%s1 + $0x20] sm:$0xff]
  %v34 = vld [vmem:[%s1 + $0x28] sm:$0xff]
  %v35 = vld [vmem:[%s1 + $0x30] sm:$0xff]
  %v36 = vld [vmem:[%s1 + $0x38] sm:$0xff]
  %v37 = vld [vmem:[%s1 + $0x40] sm:$0xff]
  %v38 = vld [vmem:[%s1 + $0x48] sm:$0xff]
  %v39 = vld [vmem:[%s1 + $0x50] sm:$0xff]
  %v40 = vld [vmem:[%s1 + $0x58] sm:$0xff]
  %v41 = vld [vmem:[%s1 + $0x60] sm:$0xff]
  %v42 = vld [vmem:[%s1 + $0x68] sm:$0xff]
  %v43 = vld [vmem:[%s1 + $0x70] sm:$0xff]
  %v44 = vld [vmem:[%s1 + $0x78] sm:$0xff]
  %v45 = vld [vmem:[%s1 + $0x80] sm:$0xff]
  %v46 = vld [vmem:[%s1 + $0x88] sm:$0xff]
  %v47 = vld [vmem:[%s1 + $0x90] sm:$0xff]
  %v48 = vld [vmem:[%s1 + $0x98] sm:$0xff]
  %v49 = vld [vmem:[%s1 + $0xa0] sm:$0xff]
  %v50 = vld [vmem:[%s1 + $0xa8] sm:$0xff]
  %v51 = vld [vmem:[%s1 + $0xb0] sm:$0xff]
  %v52 = vld [vmem:[%s1 + $0xb8] sm:$0xff]
  %v53 = vld [vmem:[%s1 + $0xc0] sm:$0xff]
  %v54 = vld [vmem:[%s1 + $0xc8] sm:$0xff]
  %v55 = vld [vmem:[%s1 + $0xd0] sm:$0xff]
  %v56 = vld [vmem:[%s1 + $0xd8] sm:$0xff]
  %v57 = vld [vmem:[%s1 + $0xe0] sm:$0xff]
  %v58 = vld [vmem:[%s1 + $0xe8] sm:$0xff]
  %v59 = vld [vmem:[%s1 + $0xf0] sm:$0xff]
  %v60 = vld [vmem:[%s1 + $0xf8] sm:$0xff]
  %v61 = vld [vmem:[%s2] sm:$0xf]
  %v63 = vlaneseq
  %v64 = vshrl.u32 %v63, 7
  %v65 = vsub.s32 0, %v64
  %v66 = vrot.slane %v61, %v65
  %v67 = vlaneseq
  %v68 = vshrl.u32 %v67, 7
  %v69 = vsub.s32 1, %v68
  %v70 = vrot.slane %v61, %v69
  %v71 = vlaneseq
  %v72 = vshrl.u32 %v71, 7
  %v73 = vsub.s32 2, %v72
  %v74 = vrot.slane %v61, %v73
  %v75 = vlaneseq
  %v76 = vshrl.u32 %v75, 7
  %v77 = vsub.s32 3, %v76
  %v78 = vrot.slane %v61, %v77
  %v85 = vunpack.c.l.b16 %v27
  %v86 = vunpack.c.l.b16 %v28
  %v87 = vpack.c.b16 %v86, %v85
  %v121 = vunpack.c.l.b16 %v29
  %v122 = vunpack.c.h.b16 %v29
  %v123 = vunpack.c.l.b16 %v30
  %v124 = vunpack.c.h.b16 %v30
  %v125 = vunpack.c.l.b16 %v31
  %v126 = vunpack.c.h.b16 %v31
  %v127 = vunpack.c.l.b16 %v32
  %v128 = vunpack.c.h.b16 %v32
  %v129 = vunpack.c.l.b16 %v33
  %v130 = vunpack.c.h.b16 %v33
  %v131 = vunpack.c.l.b16 %v34
  %v132 = vunpack.c.h.b16 %v34
  %v133 = vunpack.c.l.b16 %v35
  %v134 = vunpack.c.h.b16 %v35
  %v135 = vunpack.c.l.b16 %v36
  %v136 = vunpack.c.h.b16 %v36
  %v137 = vunpack.c.l.b16 %v37
  %v138 = vunpack.c.h.b16 %v37
  %v139 = vunpack.c.l.b16 %v38
  %v140 = vunpack.c.h.b16 %v38
  %v141 = vunpack.c.l.b16 %v39
  %v142 = vunpack.c.h.b16 %v39
  %v143 = vunpack.c.l.b16 %v40
  %v144 = vunpack.c.h.b16 %v40
  %v145 = vunpack.c.l.b16 %v41
  %v146 = vunpack.c.h.b16 %v41
  %v147 = vunpack.c.l.b16 %v42
  %v148 = vunpack.c.h.b16 %v42
  %v149 = vunpack.c.l.b16 %v43
  %v150 = vunpack.c.h.b16 %v43
  %v151 = vunpack.c.l.b16 %v44
  %v152 = vunpack.c.h.b16 %v44
  %v153 = vunpack.c.l.b16 %v45
  %v154 = vunpack.c.h.b16 %v45
  %v155 = vunpack.c.l.b16 %v46
  %v156 = vunpack.c.h.b16 %v46
  %v157 = vunpack.c.l.b16 %v47
  %v158 = vunpack.c.h.b16 %v47
  %v159 = vunpack.c.l.b16 %v48
  %v160 = vunpack.c.h.b16 %v48
  %v161 = vunpack.c.l.b16 %v49
  %v162 = vunpack.c.h.b16 %v49
  %v163 = vunpack.c.l.b16 %v50
  %v164 = vunpack.c.h.b16 %v50
  %v165 = vunpack.c.l.b16 %v51
  %v166 = vunpack.c.h.b16 %v51
  %v167 = vunpack.c.l.b16 %v52
  %v168 = vunpack.c.h.b16 %v52
  %v169 = vunpack.c.l.b16 %v53
  %v170 = vunpack.c.h.b16 %v53
  %v171 = vunpack.c.l.b16 %v54
  %v172 = vunpack.c.h.b16 %v54
  %v173 = vunpack.c.l.b16 %v55
  %v174 = vunpack.c.h.b16 %v55
  %v175 = vunpack.c.l.b16 %v56
  %v176 = vunpack.c.h.b16 %v56
  %v177 = vunpack.c.l.b16 %v57
  %v178 = vunpack.c.h.b16 %v57
  %v179 = vunpack.c.l.b16 %v58
  %v180 = vunpack.c.h.b16 %v58
  %v181 = vunpack.c.l.b16 %v59
  %v182 = vunpack.c.h.b16 %v59
  %v183 = vunpack.c.l.b16 %v60
  %v184 = vunpack.c.h.b16 %v60
  %v185 = vpack.c.b16 %v125, %v121
  %v186 = vpack.c.b16 %v126, %v122
  %v187 = vpack.c.b16 %v127, %v123
  %v188 = vpack.c.b16 %v128, %v124
  %v189 = vpack.c.b16 %v133, %v129
  %v190 = vpack.c.b16 %v134, %v130
  %v191 = vpack.c.b16 %v135, %v131
  %v192 = vpack.c.b16 %v136, %v132
  %v193 = vpack.c.b16 %v141, %v137
  %v194 = vpack.c.b16 %v142, %v138
  %v195 = vpack.c.b16 %v143, %v139
  %v196 = vpack.c.b16 %v144, %v140
  %v197 = vpack.c.b16 %v149, %v145
  %v198 = vpack.c.b16 %v150, %v146
  %v199 = vpack.c.b16 %v151, %v147
  %v200 = vpack.c.b16 %v152, %v148
  %v201 = vpack.c.b16 %v157, %v153
  %v202 = vpack.c.b16 %v158, %v154
  %v203 = vpack.c.b16 %v159, %v155
  %v204 = vpack.c.b16 %v160, %v156
  %v205 = vpack.c.b16 %v165, %v161
  %v206 = vpack.c.b16 %v166, %v162
  %v207 = vpack.c.b16 %v167, %v163
  %v208 = vpack.c.b16 %v168, %v164
  %v209 = vpack.c.b16 %v173, %v169
  %v210 = vpack.c.b16 %v174, %v170
  %v211 = vpack.c.b16 %v175, %v171
  %v212 = vpack.c.b16 %v176, %v172
  %v213 = vpack.c.b16 %v181, %v177
  %v214 = vpack.c.b16 %v182, %v178
  %v215 = vpack.c.b16 %v183, %v179
  %v216 = vpack.c.b16 %v184, %v180
  %249 = vmatprep.subr.bf16.mxu0 %v214
  %250 = vmatpush1.bf16.msra.mxu0 %v213
  %251 = vmatprep.subr.bf16.mxu0 %v210
  %252 = vmatpush1.bf16.msra.mxu0 %v209
  %253 = vmatprep.subr.bf16.mxu0 %v206
  %254 = vmatpush1.bf16.msra.mxu0 %v205
  %255 = vmatprep.subr.bf16.mxu0 %v202
  %256 = vmatpush1.bf16.msra.mxu0 %v201
  %257 = vmatprep.subr.bf16.mxu0 %v198
  %258 = vmatpush1.bf16.msra.mxu0 %v197
  %259 = vmatprep.subr.bf16.mxu0 %v194
  %260 = vmatpush1.bf16.msra.mxu0 %v193
  %261 = vmatprep.subr.bf16.mxu0 %v190
  %262 = vmatpush1.bf16.msra.mxu0 %v189
  %263 = vmatprep.subr.bf16.mxu0 %v186
  %264 = vmatpush1.bf16.msra.mxu0 %v185
  %265 = vmatprep.subr.bf16.mxu0 0
  %266 = vmatpush2.bf16.msra.mxu0 0
  %267 = vmatprep.subr.bf16.mxu0 0
  %268 = vmatpush2.bf16.msra.mxu0 0
  %269 = vmatprep.subr.bf16.mxu0 0
  %270 = vmatpush2.bf16.msra.mxu0 0
  %271 = vmatprep.subr.bf16.mxu0 0
  %272 = vmatpush2.bf16.msra.mxu0 0
  %273 = vmatprep.subr.bf16.mxu0 0
  %274 = vmatpush2.bf16.msra.mxu0 0
  %275 = vmatprep.subr.bf16.mxu0 0
  %276 = vmatpush2.bf16.msra.mxu0 0
  %277 = vmatprep.subr.bf16.mxu0 0
  %278 = vmatpush2.bf16.msra.mxu0 0
  %279 = vmatprep.subr.bf16.mxu0 0
  %280 = vmatpush2.bf16.msra.mxu0 0
  %281 = vmatprep.mubr.bf16.mxu0 0
  %282 = vmatmul.mubr.bf16.gmra.mxu0 %v87
  %v283 = vpop.f32.mrf.mxu0
  %v284 = vadd.f32 %v66, %v283
  %v285 = vpop.f32.mrf.mxu0
  %v286 = vadd.f32 %v70, %v285
  %v287 = vpop.f32.mrf.mxu0
  %v288 = vadd.f32 %v66, %v287
  %v289 = vpop.f32.mrf.mxu0
  %v290 = vadd.f32 %v70, %v289
  %291 = vdwg.mxu0
  %292 = vmatprep.subr.bf16.mxu0 %v216
  %293 = vmatpush1.bf16.msra.mxu0 %v215
  %294 = vmatprep.subr.bf16.mxu0 %v212
  %295 = vmatpush1.bf16.msra.mxu0 %v211
  %296 = vmatprep.subr.bf16.mxu0 %v208
  %297 = vmatpush1.bf16.msra.mxu0 %v207
  %298 = vmatprep.subr.bf16.mxu0 %v204
  %299 = vmatpush1.bf16.msra.mxu0 %v203
  %300 = vmatprep.subr.bf16.mxu0 %v200
  %301 = vmatpush1.bf16.msra.mxu0 %v199
  %302 = vmatprep.subr.bf16.mxu0 %v196
  %303 = vmatpush1.bf16.msra.mxu0 %v195
  %304 = vmatprep.subr.bf16.mxu0 %v192
  %305 = vmatpush1.bf16.msra.mxu0 %v191
  %306 = vmatprep.subr.bf16.mxu0 %v188
  %307 = vmatpush1.bf16.msra.mxu0 %v187
  %308 = vmatprep.subr.bf16.mxu0 0
  %309 = vmatpush2.bf16.msra.mxu0 0
  %310 = vmatprep.subr.bf16.mxu0 0
  %311 = vmatpush2.bf16.msra.mxu0 0
  %312 = vmatprep.subr.bf16.mxu0 0
  %313 = vmatpush2.bf16.msra.mxu0 0
  %314 = vmatprep.subr.bf16.mxu0 0
  %315 = vmatpush2.bf16.msra.mxu0 0
  %316 = vmatprep.subr.bf16.mxu0 0
  %317 = vmatpush2.bf16.msra.mxu0 0
  %318 = vmatprep.subr.bf16.mxu0 0
  %319 = vmatpush2.bf16.msra.mxu0 0
  %320 = vmatprep.subr.bf16.mxu0 0
  %321 = vmatpush2.bf16.msra.mxu0 0
  %322 = vmatprep.subr.bf16.mxu0 0
  %323 = vmatpush2.bf16.msra.mxu0 0
  %324 = vmatprep.mubr.bf16.mxu0 0
  %325 = vmatmul.mubr.bf16.gmra.mxu0 %v87
  %v326 = vpop.f32.mrf.mxu0
  %v327 = vadd.f32 %v74, %v326
  %v328 = vpop.f32.mrf.mxu0
  %v329 = vadd.f32 %v78, %v328
  %v330 = vpop.f32.mrf.mxu0
  %v331 = vadd.f32 %v74, %v330
  %v332 = vpop.f32.mrf.mxu0
  %v333 = vadd.f32 %v78, %v332
  %334 = vdwg.mxu0
  %v335 = vmul.f32 %v284, 0.5
  %v336 = vmul.f32 %v286, 0.5
  %v337 = vmul.f32 %v327, 0.5
  %v338 = vmul.f32 %v329, 0.5
  %v339 = vmul.f32 %v288, 0.5
  %v340 = vmul.f32 %v290, 0.5
  %v341 = vmul.f32 %v331, 0.5
  %v342 = vmul.f32 %v333, 0.5
  %v343 = vmul.f32 %v284, 0.044715
  %v344 = vmul.f32 %v286, 0.044715
  %v345 = vmul.f32 %v327, 0.044715
  %v346 = vmul.f32 %v329, 0.044715
  %v347 = vmul.f32 %v288, 0.044715
  %v348 = vmul.f32 %v290, 0.044715
  %v349 = vmul.f32 %v331, 0.044715
  %v350 = vmul.f32 %v333, 0.044715
  %v351 = vmul.f32 %v343, %v284
  %v352 = vmul.f32 %v344, %v286
  %v353 = vmul.f32 %v345, %v327
  %v354 = vmul.f32 %v346, %v329
  %v355 = vmul.f32 %v347, %v288
  %v356 = vmul.f32 %v348, %v290
  %v357 = vmul.f32 %v349, %v331
  %v358 = vmul.f32 %v350, %v333
  %v359 = vmul.f32 %v351, %v284
  %v360 = vmul.f32 %v352, %v286
  %v361 = vmul.f32 %v353, %v327
  %v362 = vmul.f32 %v354, %v329
  %v363 = vmul.f32 %v355, %v288
  %v364 = vmul.f32 %v356, %v290
  %v365 = vmul.f32 %v357, %v331
  %v366 = vmul.f32 %v358, %v333
  %v367 = vadd.f32 %v284, %v359
  %v368 = vadd.f32 %v286, %v360
  %v369 = vadd.f32 %v327, %v361
  %v370 = vadd.f32 %v329, %v362
  %v371 = vadd.f32 %v288, %v363
  %v372 = vadd.f32 %v290, %v364
  %v373 = vadd.f32 %v331, %v365
  %v374 = vadd.f32 %v333, %v366
  %v375 = vmul.f32 %v367, 0.7978846
  %v376 = vmul.f32 %v368, 0.7978846
  %v377 = vmul.f32 %v369, 0.7978846
  %v378 = vmul.f32 %v370, 0.7978846
  %v379 = vmul.f32 %v371, 0.7978846
  %v380 = vmul.f32 %v372, 0.7978846
  %v381 = vmul.f32 %v373, 0.7978846
  %v382 = vmul.f32 %v374, 0.7978846
  %v383 = vtanh.pop %v375
  %v384 = vtanh.pop %v376
  %v385 = vtanh.pop %v377
  %v386 = vtanh.pop %v378
  %v387 = vtanh.pop %v379
  %v388 = vtanh.pop %v380
  %v389 = vtanh.pop %v381
  %v390 = vtanh.pop %v382
  %v391 = vadd.f32 %v383, 1.0
  %v392 = vadd.f32 %v384, 1.0
  %v393 = vadd.f32 %v385, 1.0
  %v394 = vadd.f32 %v386, 1.0
  %v395 = vadd.f32 %v387, 1.0
  %v396 = vadd.f32 %v388, 1.0
  %v397 = vadd.f32 %v389, 1.0
  %v398 = vadd.f32 %v390, 1.0
  %v399 = vmul.f32 %v335, %v391
  %v400 = vmul.f32 %v336, %v392
  %v401 = vmul.f32 %v337, %v393
  %v402 = vmul.f32 %v338, %v394
  %v403 = vmul.f32 %v339, %v395
  %v404 = vmul.f32 %v340, %v396
  %v405 = vmul.f32 %v341, %v397
  %v406 = vmul.f32 %v342, %v398
  %v407 = vpack.c.bf16 %v403, %v399
  %v408 = vpack.c.bf16 %v404, %v400
  %v409 = vpack.c.bf16 %v405, %v401
  %v410 = vpack.c.bf16 %v406, %v402
  %v411 = vld [vmem:[%s3] sm:$0xf]
  %v412 = vld [vmem:[%s3 + $0x4] sm:$0xf]
  %v413 = vld [vmem:[%s3 + $0x8] sm:$0xf]
  %v414 = vld [vmem:[%s3 + $0xc] sm:$0xf]
  %v415 = vld [vmem:[%s3 + $0x10] sm:$0xf]
  %v416 = vld [vmem:[%s3 + $0x14] sm:$0xf]
  %v417 = vld [vmem:[%s3 + $0x18] sm:$0xf]
  %v418 = vld [vmem:[%s3 + $0x1c] sm:$0xf]
  %v419 = vld [vmem:[%s3 + $0x20] sm:$0xf]
  %v420 = vld [vmem:[%s3 + $0x24] sm:$0xf]
  %v421 = vld [vmem:[%s3 + $0x28] sm:$0xf]
  %v422 = vld [vmem:[%s3 + $0x2c] sm:$0xf]
  %v423 = vld [vmem:[%s3 + $0x30] sm:$0xf]
  %v424 = vld [vmem:[%s3 + $0x34] sm:$0xf]
  %v425 = vld [vmem:[%s3 + $0x38] sm:$0xf]
  %v426 = vld [vmem:[%s3 + $0x3c] sm:$0xf]
  %v427 = vld [vmem:[%s3 + $0x40] sm:$0xf]
  %v428 = vld [vmem:[%s3 + $0x44] sm:$0xf]
  %v429 = vld [vmem:[%s3 + $0x48] sm:$0xf]
  %v430 = vld [vmem:[%s3 + $0x4c] sm:$0xf]
  %v431 = vld [vmem:[%s3 + $0x50] sm:$0xf]
  %v432 = vld [vmem:[%s3 + $0x54] sm:$0xf]
  %v433 = vld [vmem:[%s3 + $0x58] sm:$0xf]
  %v434 = vld [vmem:[%s3 + $0x5c] sm:$0xf]
  %v435 = vld [vmem:[%s3 + $0x60] sm:$0xf]
  %v436 = vld [vmem:[%s3 + $0x64] sm:$0xf]
  %v437 = vld [vmem:[%s3 + $0x68] sm:$0xf]
  %v438 = vld [vmem:[%s3 + $0x6c] sm:$0xf]
  %v439 = vld [vmem:[%s3 + $0x70] sm:$0xf]
  %v440 = vld [vmem:[%s3 + $0x74] sm:$0xf]
  %v441 = vld [vmem:[%s3 + $0x78] sm:$0xf]
  %v442 = vld [vmem:[%s3 + $0x7c] sm:$0xf]
  %v443 = vld [vmem:[%s3 + $0x80] sm:$0xf]
  %v444 = vld [vmem:[%s3 + $0x84] sm:$0xf]
  %v445 = vld [vmem:[%s3 + $0x88] sm:$0xf]
  %v446 = vld [vmem:[%s3 + $0x8c] sm:$0xf]
  %v447 = vld [vmem:[%s3 + $0x90] sm:$0xf]
  %v448 = vld [vmem:[%s3 + $0x94] sm:$0xf]
  %v449 = vld [vmem:[%s3 + $0x98] sm:$0xf]
  %v450 = vld [vmem:[%s3 + $0x9c] sm:$0xf]
  %v451 = vld [vmem:[%s3 + $0xa0] sm:$0xf]
  %v452 = vld [vmem:[%s3 + $0xa4] sm:$0xf]
  %v453 = vld [vmem:[%s3 + $0xa8] sm:$0xf]
  %v454 = vld [vmem:[%s3 + $0xac] sm:$0xf]
  %v455 = vld [vmem:[%s3 + $0xb0] sm:$0xf]
  %v456 = vld [vmem:[%s3 + $0xb4] sm:$0xf]
  %v457 = vld [vmem:[%s3 + $0xb8] sm:$0xf]
  %v458 = vld [vmem:[%s3 + $0xbc] sm:$0xf]
  %v459 = vld [vmem:[%s3 + $0xc0] sm:$0xf]
  %v460 = vld [vmem:[%s3 + $0xc4] sm:$0xf]
  %v461 = vld [vmem:[%s3 + $0xc8] sm:$0xf]
  %v462 = vld [vmem:[%s3 + $0xcc] sm:$0xf]
  %v463 = vld [vmem:[%s3 + $0xd0] sm:$0xf]
  %v464 = vld [vmem:[%s3 + $0xd4] sm:$0xf]
  %v465 = vld [vmem:[%s3 + $0xd8] sm:$0xf]
  %v466 = vld [vmem:[%s3 + $0xdc] sm:$0xf]
  %v467 = vld [vmem:[%s3 + $0xe0] sm:$0xf]
  %v468 = vld [vmem:[%s3 + $0xe4] sm:$0xf]
  %v469 = vld [vmem:[%s3 + $0xe8] sm:$0xf]
  %v470 = vld [vmem:[%s3 + $0xec] sm:$0xf]
  %v471 = vld [vmem:[%s3 + $0xf0] sm:$0xf]
  %v472 = vld [vmem:[%s3 + $0xf4] sm:$0xf]
  %v473 = vld [vmem:[%s3 + $0xf8] sm:$0xf]
  %v474 = vld [vmem:[%s3 + $0xfc] sm:$0xf]
  %v475 = vld [vmem:[%s4] sm:$0x1]
  %v477 = vlaneseq
  %v478 = vshrl.u32 %v477, 7
  %v479 = vsub.s32 0, %v478
  %v480 = vrot.slane %v475, %v479
  %v546 = vunpack.c.l.b16 %v411
  %v547 = vunpack.c.l.b16 %v412
  %v548 = vunpack.c.l.b16 %v413
  %v549 = vunpack.c.l.b16 %v414
  %v550 = vunpack.c.l.b16 %v415
  %v551 = vunpack.c.l.b16 %v416
  %v552 = vunpack.c.l.b16 %v417
  %v553 = vunpack.c.l.b16 %v418
  %v554 = vunpack.c.l.b16 %v419
  %v555 = vunpack.c.l.b16 %v420
  %v556 = vunpack.c.l.b16 %v421
  %v557 = vunpack.c.l.b16 %v422
  %v558 = vunpack.c.l.b16 %v423
  %v559 = vunpack.c.l.b16 %v424
  %v560 = vunpack.c.l.b16 %v425
  %v561 = vunpack.c.l.b16 %v426
  %v562 = vunpack.c.l.b16 %v427
  %v563 = vunpack.c.l.b16 %v428
  %v564 = vunpack.c.l.b16 %v429
  %v565 = vunpack.c.l.b16 %v430
  %v566 = vunpack.c.l.b16 %v431
  %v567 = vunpack.c.l.b16 %v432
  %v568 = vunpack.c.l.b16 %v433
  %v569 = vunpack.c.l.b16 %v434
  %v570 = vunpack.c.l.b16 %v435
  %v571 = vunpack.c.l.b16 %v436
  %v572 = vunpack.c.l.b16 %v437
  %v573 = vunpack.c.l.b16 %v438
  %v574 = vunpack.c.l.b16 %v439
  %v575 = vunpack.c.l.b16 %v440
  %v576 = vunpack.c.l.b16 %v441
  %v577 = vunpack.c.l.b16 %v442
  %v578 = vunpack.c.l.b16 %v443
  %v579 = vunpack.c.l.b16 %v444
  %v580 = vunpack.c.l.b16 %v445
  %v581 = vunpack.c.l.b16 %v446
  %v582 = vunpack.c.l.b16 %v447
  %v583 = vunpack.c.l.b16 %v448
  %v584 = vunpack.c.l.b16 %v449
  %v585 = vunpack.c.l.b16 %v450
  %v586 = vunpack.c.l.b16 %v451
  %v587 = vunpack.c.l.b16 %v452
  %v588 = vunpack.c.l.b16 %v453
  %v589 = vunpack.c.l.b16 %v454
  %v590 = vunpack.c.l.b16 %v455
  %v591 = vunpack.c.l.b16 %v456
  %v592 = vunpack.c.l.b16 %v457
  %v593 = vunpack.c.l.b16 %v458
  %v594 = vunpack.c.l.b16 %v459
  %v595 = vunpack.c.l.b16 %v460
  %v596 = vunpack.c.l.b16 %v461
  %v597 = vunpack.c.l.b16 %v462
  %v598 = vunpack.c.l.b16 %v463
  %v599 = vunpack.c.l.b16 %v464
  %v600 = vunpack.c.l.b16 %v465
  %v601 = vunpack.c.l.b16 %v466
  %v602 = vunpack.c.l.b16 %v467
  %v603 = vunpack.c.l.b16 %v468
  %v604 = vunpack.c.l.b16 %v469
  %v605 = vunpack.c.l.b16 %v470
  %v606 = vunpack.c.l.b16 %v471
  %v607 = vunpack.c.l.b16 %v472
  %v608 = vunpack.c.l.b16 %v473
  %v609 = vunpack.c.l.b16 %v474
  %v610 = vpack.c.b16 %v547, %v546
  %v611 = vpack.c.b16 %v549, %v548
  %v612 = vpack.c.b16 %v551, %v550
  %v613 = vpack.c.b16 %v553, %v552
  %v614 = vpack.c.b16 %v555, %v554
  %v615 = vpack.c.b16 %v557, %v556
  %v616 = vpack.c.b16 %v559, %v558
  %v617 = vpack.c.b16 %v561, %v560
  %v618 = vpack.c.b16 %v563, %v562
  %v619 = vpack.c.b16 %v565, %v564
  %v620 = vpack.c.b16 %v567, %v566
  %v621 = vpack.c.b16 %v569, %v568
  %v622 = vpack.c.b16 %v571, %v570
  %v623 = vpack.c.b16 %v573, %v572
  %v624 = vpack.c.b16 %v575, %v574
  %v625 = vpack.c.b16 %v577, %v576
  %v626 = vpack.c.b16 %v579, %v578
  %v627 = vpack.c.b16 %v581, %v580
  %v628 = vpack.c.b16 %v583, %v582
  %v629 = vpack.c.b16 %v585, %v584
  %v630 = vpack.c.b16 %v587, %v586
  %v631 = vpack.c.b16 %v589, %v588
  %v632 = vpack.c.b16 %v591, %v590
  %v633 = vpack.c.b16 %v593, %v592
  %v634 = vpack.c.b16 %v595, %v594
  %v635 = vpack.c.b16 %v597, %v596
  %v636 = vpack.c.b16 %v599, %v598
  %v637 = vpack.c.b16 %v601, %v600
  %v638 = vpack.c.b16 %v603, %v602
  %v639 = vpack.c.b16 %v605, %v604
  %v640 = vpack.c.b16 %v607, %v606
  %v641 = vpack.c.b16 %v609, %v608
  %674 = vmatprep.subr.bf16.mxu0 0
  %675 = vmatpush1.bf16.msra.mxu0 %v617
  %676 = vmatprep.subr.bf16.mxu0 0
  %677 = vmatpush1.bf16.msra.mxu0 %v616
  %678 = vmatprep.subr.bf16.mxu0 0
  %679 = vmatpush1.bf16.msra.mxu0 %v615
  %680 = vmatprep.subr.bf16.mxu0 0
  %681 = vmatpush1.bf16.msra.mxu0 %v614
  %682 = vmatprep.subr.bf16.mxu0 0
  %683 = vmatpush1.bf16.msra.mxu0 %v613
  %684 = vmatprep.subr.bf16.mxu0 0
  %685 = vmatpush1.bf16.msra.mxu0 %v612
  %686 = vmatprep.subr.bf16.mxu0 0
  %687 = vmatpush1.bf16.msra.mxu0 %v611
  %688 = vmatprep.subr.bf16.mxu0 0
  %689 = vmatpush1.bf16.msra.mxu0 %v610
  %690 = vmatprep.subr.bf16.mxu0 0
  %691 = vmatpush2.bf16.msra.mxu0 %v625
  %692 = vmatprep.subr.bf16.mxu0 0
  %693 = vmatpush2.bf16.msra.mxu0 %v624
  %694 = vmatprep.subr.bf16.mxu0 0
  %695 = vmatpush2.bf16.msra.mxu0 %v623
  %696 = vmatprep.subr.bf16.mxu0 0
  %697 = vmatpush2.bf16.msra.mxu0 %v622
  %698 = vmatprep.subr.bf16.mxu0 0
  %699 = vmatpush2.bf16.msra.mxu0 %v621
  %700 = vmatprep.subr.bf16.mxu0 0
  %701 = vmatpush2.bf16.msra.mxu0 %v620
  %702 = vmatprep.subr.bf16.mxu0 0
  %703 = vmatpush2.bf16.msra.mxu0 %v619
  %704 = vmatprep.subr.bf16.mxu0 0
  %705 = vmatpush2.bf16.msra.mxu0 %v618
  %706 = vmatprep.mubr.bf16.mxu0 %v408
  %707 = vmatmul.mubr.bf16.gmra.mxu0 %v407
  %v708 = vpop.f32.mrf.mxu0
  %v709 = vadd.f32 %v480, %v708
  %v710 = vpop.f32.mrf.mxu0
  %v711 = vpop.f32.mrf.mxu0
  %v712 = vadd.f32 %v480, %v711
  %v713 = vpop.f32.mrf.mxu0
  %714 = vdwg.mxu0
  %715 = vmatprep.subr.bf16.mxu0 0
  %716 = vmatpush1.bf16.msra.mxu0 %v633
  %717 = vmatprep.subr.bf16.mxu0 0
  %718 = vmatpush1.bf16.msra.mxu0 %v632
  %719 = vmatprep.subr.bf16.mxu0 0
  %720 = vmatpush1.bf16.msra.mxu0 %v631
  %721 = vmatprep.subr.bf16.mxu0 0
  %722 = vmatpush1.bf16.msra.mxu0 %v630
  %723 = vmatprep.subr.bf16.mxu0 0
  %724 = vmatpush1.bf16.msra.mxu0 %v629
  %725 = vmatprep.subr.bf16.mxu0 0
  %726 = vmatpush1.bf16.msra.mxu0 %v628
  %727 = vmatprep.subr.bf16.mxu0 0
  %728 = vmatpush1.bf16.msra.mxu0 %v627
  %729 = vmatprep.subr.bf16.mxu0 0
  %730 = vmatpush1.bf16.msra.mxu0 %v626
  %731 = vmatprep.subr.bf16.mxu0 0
  %732 = vmatpush2.bf16.msra.mxu0 %v641
  %733 = vmatprep.subr.bf16.mxu0 0
  %734 = vmatpush2.bf16.msra.mxu0 %v640
  %735 = vmatprep.subr.bf16.mxu0 0
  %736 = vmatpush2.bf16.msra.mxu0 %v639
  %737 = vmatprep.subr.bf16.mxu0 0
  %738 = vmatpush2.bf16.msra.mxu0 %v638
  %739 = vmatprep.subr.bf16.mxu0 0
  %740 = vmatpush2.bf16.msra.mxu0 %v637
  %741 = vmatprep.subr.bf16.mxu0 0
  %742 = vmatpush2.bf16.msra.mxu0 %v636
  %743 = vmatprep.subr.bf16.mxu0 0
  %744 = vmatpush2.bf16.msra.mxu0 %v635
  %745 = vmatprep.subr.bf16.mxu0 0
  %746 = vmatpush2.bf16.msra.mxu0 %v634
  %747 = vmatprep.mubr.bf16.mxu0 %v410
  %748 = vmatmul.mubr.bf16.gmra.mxu0 %v409
  %v749 = vpop.f32.mrf.mxu0
  %v750 = vadd.f32 %v709, %v749
  %v751 = vpop.f32.mrf.mxu0
  %v752 = vpop.f32.mrf.mxu0
  %v753 = vadd.f32 %v712, %v752
  %v754 = vpop.f32.mrf.mxu0
  %755 = vdwg.mxu0
  %v756 = vunpack.c.l.bf16 %v27
  %v757 = vunpack.c.l.bf16 %v28
  %v758 = vadd.f32 %v750, %v756
  %v759 = vadd.f32 %v753, %v757
  %760 = vadd.xlane.f32.xlu0 %v758
  %v761 = vpop.xlane.xlu0 %760
  %762 = vadd.xlane.f32.xlu0 %v759
  %v763 = vpop.xlane.xlu0 %762
  %v764 = vrcp.pop 128.0
  %v765 = vmul.f32 %v761, %v764
  %v766 = vmul.f32 %v763, %v764
  %v767 = vsub.f32 %v758, %v765
  %v768 = vsub.f32 %v759, %v766
  %v769 = vmul.f32 %v767, %v767
  %v770 = vmul.f32 %v768, %v768
  %771 = vadd.xlane.f32.xlu0 %v769
  %v772 = vpop.xlane.xlu0 %771
  %773 = vadd.xlane.f32.xlu0 %v770
  %v774 = vpop.xlane.xlu0 %773
  %v775 = vmul.f32 %v772, %v764
  %v776 = vmul.f32 %v774, %v764
  %v777 = vadd.f32 %v775, 1e-12
  %v778 = vadd.f32 %v776, 1e-12
  %v779 = vrsqrt.pop %v777
  %v780 = vrsqrt.pop %v778
  %v781 = vmul.f32 %v767, %v779
  %v782 = vmul.f32 %v768, %v780
  %v783 = vld [vmem:[%s5] sm:$0x1]
  %v785 = vlaneseq
  %v786 = vshrl.u32 %v785, 7
  %v787 = vsub.s32 0, %v786
  %v788 = vrot.slane %v783, %v787
  %v790 = vmul.f32 %v781, %v788
  %v791 = vmul.f32 %v782, %v788
  %v792 = vld [vmem:[%s6] sm:$0x1]
  %v794 = vlaneseq
  %v795 = vshrl.u32 %v794, 7
  %v796 = vsub.s32 0, %v795
  %v797 = vrot.slane %v792, %v796
  %v799 = vadd.f32 %v790, %v797
  %v800 = vadd.f32 %v791, %v797
  %v801 = vpack.c.bf16 %v800, %v799
  %v803 = vunpack.c.l.b16 %v801
  %v804 = vunpack.c.h.b16 %v801
  %v805 = vpack.c.b16 %v803, %v803
  %v806 = vpack.c.b16 %v804, %v804
  %809 = vst [vmem:[%s7] sm:$0xf] %v805
  %810 = vst [vmem:[%s7 + $0x4] sm:$0xf] %v806
  // Predicated region
  $region30: #{bert_seq_noft_forward.18} parent=0 // pred_check
    _
  $region31: #{bert_seq_noft_forward.18} parent=0 // pred_check_branch
    %812 = sbr.rel (0) target = $region33
  $region32: #{bert_seq_noft_forward.18} parent=0 // pred_region
    _
  $region33: #{bert_seq_noft_forward.18} parent=0 // pred_fallthru
    _
  // Predicated region
  $region34: #{bert_seq_noft_forward.18} parent=0 // pred_check
    _
  $region35: #{bert_seq_noft_forward.18} parent=0 // pred_check_branch
    %814 = sbr.rel (0) target = $region37
  $region36: #{bert_seq_noft_forward.18} parent=0 // pred_region
    _
  $region37: #{bert_seq_noft_forward.18} parent=0 // pred_fallthru
    _

</llo_original>
